<compile_context>
chip_gen: v7x
topology: tpu7x:2x2x1
jax: 0.10.0
libtpu: 0.0.40
codegen_flags: <defaults>
</compile_context>

<pallas_src>
import functools

import jax
import jax.numpy as jnp
from jax.experimental import pallas as pl
from jax.experimental.pallas import tpu as pltpu

LN_EPS = 1e-5  # PyTorch nn.LayerNorm default


def _edge_processor_kernel(
    src_ref, dest_ref, edge_ref,
    w1s_ref, w1d_ref, w1e_ref, b1_ref,   # [Dn,H], [Dn,H], [De,H] (bf16); [1,H] f32
    w2_ref, b2_ref,                       # [H, H] (bf16), [1, H] (f32)
    w3_ref, b3_ref,                       # [H, De] (bf16), [1, De] (f32)
    gamma_ref, beta_ref,                  # [1, De] (f32)  -- keep 2-D!
    out_ref,
):
    bf16 = jnp.bfloat16
    f32 = jnp.float32

    edge = edge_ref[...]
    edge_f32 = edge.astype(f32)  # residual stays f32

    # Layer 1: cat([src, dest, edge]) @ W1  ==  three accumulating dots.
    # bf16 MXU operands, f32 accumulation.  (astype is a no-op if already bf16.)
    h = (
        jnp.dot(src_ref[...].astype(bf16), w1s_ref[...].astype(bf16),
                preferred_element_type=f32)
        + jnp.dot(dest_ref[...].astype(bf16), w1d_ref[...].astype(bf16),
                  preferred_element_type=f32)
        + jnp.dot(edge.astype(bf16), w1e_ref[...].astype(bf16),
                  preferred_element_type=f32)
        + b1_ref[...]
    )
    h = jnp.maximum(h, 0.0)

    # Layer 2: Linear(H -> H) + ReLU.
    h = (
        jnp.dot(h.astype(bf16), w2_ref[...].astype(bf16),
                preferred_element_type=f32)
        + b2_ref[...]
    )
    h = jnp.maximum(h, 0.0)

    # Layer 3: Linear(H -> De).
    h = (
        jnp.dot(h.astype(bf16), w3_ref[...].astype(bf16),
                preferred_element_type=f32)
        + b3_ref[...]
    )

    # LayerNorm over the feature axis (elementwise affine), in f32.
    mean = jnp.mean(h, axis=-1, keepdims=True)
    centered = h - mean
    var = jnp.mean(centered * centered, axis=-1, keepdims=True)
    inv = jax.lax.rsqrt(var + LN_EPS)
    y = centered * inv * gamma_ref[...] + beta_ref[...]

    # Residual add of the original edge attributes.  Rows past E (last partial
    # block) may be garbage/NaN here; their stores are masked by Pallas.
    out_ref[...] = (y + edge_f32).astype(out_ref.dtype)


def prepare_params(params):
    """One-off parameter preprocessing (call OUTSIDE the forward path).

    Matmul weights -> bf16 for MXU streaming; biases / LayerNorm affine stay
    f32.  Keep biases and gamma/beta 2-D ([1, H] / [1, De]).
    """
    p = dict(params)
    for k in ("w1_src", "w1_dst", "w1_edge", "w2", "w3"):
        p[k] = params[k].astype(jnp.bfloat16)
    return p


@functools.partial(jax.jit, static_argnames=("tile_m",))
def edge_processor(src, dest, edge_attr, params, *, tile_m=1024):
    """Pallas EdgeProcessor forward.

    src, dest:  [E, Dn]   node features gathered per edge (any float dtype;
                          bf16 recommended — the op is HBM-bound)
    edge_attr:  [E, De]   edge features (output dtype follows this)
    params:     dict from prepare_params() (bf16 weights, f32 biases/LN)
    returns:    [E, De]
    """
    E, Dn = src.shape
    De = edge_attr.shape[-1]
    H = params["b1"].shape[-1]
    Kin = 2 * Dn + De

    # Pick the row tile: big (amortize ~0.35us/step), but keep >= 2 grid steps
    # so the "parallel" axis can shard across v7x's two TensorCores.  Round to
    # a sublane multiple of 8 so the (8,128) block rule holds.
    tile = min(tile_m, max(8, ((pl.cdiv(E, 2) + 7) // 8) * 8))
    grid = pl.cdiv(E, tile)   # last block may be partial; Pallas masks stores

    row_n = pl.BlockSpec((tile, Dn), lambda i: (i, 0))
    row_e = pl.BlockSpec((tile, De), lambda i: (i, 0))

    def full(shape):
        return pl.BlockSpec(shape, lambda i: (0,) * len(shape))

    grid_spec = pltpu.PrefetchScalarGridSpec(
        num_scalar_prefetch=0,
        grid=(grid,),
        in_specs=[
            row_n,               # src
            row_n,               # dest
            row_e,               # edge_attr
            full((Dn, H)),       # W1_src  (bf16)
            full((Dn, H)),       # W1_dst  (bf16)
            full((De, H)),       # W1_edge (bf16)
            full((1, H)),        # b1
            full((H, H)),        # W2 (bf16)
            full((1, H)),        # b2
            full((H, De)),       # W3 (bf16)
            full((1, De)),       # b3
            full((1, De)),       # LN gamma
            full((1, De)),       # LN beta
        ],
        out_specs=pl.BlockSpec((tile, De), lambda i: (i, 0)),
    )

    def _nbytes(x):
        return x.size * jnp.dtype(x.dtype).itemsize

    weight_bytes = sum(
        _nbytes(params[k])
        for k in ("w1_src", "w1_dst", "w1_edge", "w2", "w3",
                  "b1", "b2", "b3", "gamma", "beta")
    )
    cost = pl.CostEstimate(
        flops=2 * E * (Kin * H + H * H + H * De),
        transcendentals=E,  # one rsqrt per row
        bytes_accessed=(
            _nbytes(src) + _nbytes(dest) + _nbytes(edge_attr)   # row inputs
            + E * De * jnp.dtype(edge_attr.dtype).itemsize       # output
            + weight_bytes
        ),
    )

    return pl.pallas_call(
        _edge_processor_kernel,
        out_shape=jax.ShapeDtypeStruct((E, De), edge_attr.dtype),
        grid_spec=grid_spec,
        compiler_params=pltpu.CompilerParams(
            dimension_semantics=("parallel",),
        ),
        cost_estimate=cost,
    )(
        src, dest, edge_attr,
        params["w1_src"], params["w1_dst"], params["w1_edge"], params["b1"],
        params["w2"], params["b2"],
        params["w3"], params["b3"],
        params["gamma"], params["beta"],
    )


def edge_processor_ref(src, dest, edge_attr, params):
    """Pure-f32 reference mirroring the PyTorch module (inputs upcast)."""
    f32 = jnp.float32
    src = src.astype(f32)
    dest = dest.astype(f32)
    edge = edge_attr.astype(f32)
    x = jnp.concatenate([src, dest, edge], axis=-1)
    w1 = jnp.concatenate(
        [params["w1_src"], params["w1_dst"], params["w1_edge"]], axis=0
    ).astype(f32)
    h = jax.nn.relu(x @ w1 + params["b1"])
    h = jax.nn.relu(h @ params["w2"].astype(f32) + params["b2"])
    h = h @ params["w3"].astype(f32) + params["b3"]
    mean = h.mean(-1, keepdims=True)
    var = ((h - mean) ** 2).mean(-1, keepdims=True)
    y = (h - mean) / jnp.sqrt(var + LN_EPS) * params["gamma"] + params["beta"]
    return y + edge


def edge_processor_ref_bf16(src, dest, edge_attr, params):
    """Reference mirroring the kernel's bf16-operand / f32-accum matmuls."""
    bf = jnp.bfloat16
    f32 = jnp.float32
    h = (
        jnp.dot(src.astype(bf), params["w1_src"].astype(bf),
                preferred_element_type=f32)
        + jnp.dot(dest.astype(bf), params["w1_dst"].astype(bf),
                  preferred_element_type=f32)
        + jnp.dot(edge_attr.astype(bf), params["w1_edge"].astype(bf),
                  preferred_element_type=f32)
        + params["b1"]
    )
    h = jnp.maximum(h, 0.0)
    h = jnp.dot(h.astype(bf), params["w2"].astype(bf),
                preferred_element_type=f32) + params["b2"]
    h = jnp.maximum(h, 0.0)
    h = jnp.dot(h.astype(bf), params["w3"].astype(bf),
                preferred_element_type=f32) + params["b3"]
    mean = h.mean(-1, keepdims=True)
    centered = h - mean
    var = (centered * centered).mean(-1, keepdims=True)
    y = centered * jax.lax.rsqrt(var + LN_EPS) * params["gamma"] + params["beta"]
    return y + edge_attr.astype(f32)


def init_params(key, in_dim_node, in_dim_edge, hidden_dim):
    """Deterministic synthetic parameters (shapes match the PyTorch module)."""
    ks = jax.random.split(key, 6)
    in_dim = 2 * in_dim_node + in_dim_edge
    scale1 = 1.0 / jnp.sqrt(in_dim)
    scale2 = 1.0 / jnp.sqrt(hidden_dim)
    w1 = jax.random.normal(ks[0], (in_dim, hidden_dim), jnp.float32) * scale1
    return {
        "w1_src": w1[:in_dim_node],
        "w1_dst": w1[in_dim_node:2 * in_dim_node],
        "w1_edge": w1[2 * in_dim_node:],
        "b1": jax.random.normal(ks[1], (1, hidden_dim), jnp.float32) * scale1,
        "w2": jax.random.normal(ks[2], (hidden_dim, hidden_dim), jnp.float32) * scale2,
        "b2": jax.random.normal(ks[3], (1, hidden_dim), jnp.float32) * scale2,
        "w3": jax.random.normal(ks[4], (hidden_dim, in_dim_edge), jnp.float32) * scale2,
        "b3": jax.random.normal(ks[5], (1, in_dim_edge), jnp.float32) * scale2,
        "gamma": jnp.ones((1, in_dim_edge), jnp.float32),
        "beta": jnp.zeros((1, in_dim_edge), jnp.float32),
    }


# TODO(synk): if src/dest come from a per-edge gather upstream, fuse that
# gather into this kernel (node table via memory_space=pl.ANY + edge indices
# via PrefetchScalarGridSpec scalar prefetch, batched pltpu.make_async_copy
# DMA gather) so the two [E, Dn] streams never round-trip through HBM.


if __name__ == "__main__":
    IN_DIM_NODE = 128
    IN_DIM_EDGE = 128
    HIDDEN = 128
    NUM_EDGES = 1000   # deliberately not a tile multiple: exercises masking

    key = jax.random.PRNGKey(0)
    k_src, k_dst, k_edge, k_par = jax.random.split(key, 4)
    # Stream bf16 rows (the op is HBM-bound; this is the documented contract).
    src = jax.random.normal(k_src, (NUM_EDGES, IN_DIM_NODE), jnp.float32).astype(jnp.bfloat16)
    dest = jax.random.normal(k_dst, (NUM_EDGES, IN_DIM_NODE), jnp.float32).astype(jnp.bfloat16)
    edge_attr = jax.random.normal(k_edge, (NUM_EDGES, IN_DIM_EDGE), jnp.float32).astype(jnp.bfloat16)

    params_f32 = init_params(k_par, IN_DIM_NODE, IN_DIM_EDGE, HIDDEN)
    params = prepare_params(params_f32)   # one-off bf16 weight cast, outside forward

    out = edge_processor(src, dest, edge_attr, params)
    out = jax.block_until_ready(out)
    assert out.shape == (NUM_EDGES, IN_DIM_EDGE)
    assert out.dtype == edge_attr.dtype

    out_f32 = out.astype(jnp.float32)

    # Tight check vs. a reference using the same bf16-operand matmuls
    # (difference is essentially the final bf16 output rounding).
    ref_bf16 = edge_processor_ref_bf16(src, dest, edge_attr, params_f32)
    assert jnp.allclose(out_f32, ref_bf16, atol=5e-2, rtol=5e-2), \
        "mismatch vs bf16-operand reference"

    # Loose check vs. pure-f32 module semantics (bf16 I/O + bf16 MXU operands).
    ref_f32 = edge_processor_ref(src, dest, edge_attr, params_f32)
    assert jnp.allclose(out_f32, ref_f32, atol=1e-1, rtol=1e-1), \
        "mismatch vs f32 reference"

    print("KERNEL_OK")
</pallas_src>

<mosaic_0001>
module attributes {stable_mosaic.version = 11 : i64} {
  func.func @_edge_processor_kernel(%arg0: i32, %arg1: memref<504x128xbf16, #tpu.memory_space<vmem>>, %arg2: memref<504x128xbf16, #tpu.memory_space<vmem>>, %arg3: memref<504x128xbf16, #tpu.memory_space<vmem>>, %arg4: memref<128x128xbf16, #tpu.memory_space<vmem>>, %arg5: memref<128x128xbf16, #tpu.memory_space<vmem>>, %arg6: memref<128x128xbf16, #tpu.memory_space<vmem>>, %arg7: memref<1x128xf32, #tpu.memory_space<vmem>>, %arg8: memref<128x128xbf16, #tpu.memory_space<vmem>>, %arg9: memref<1x128xf32, #tpu.memory_space<vmem>>, %arg10: memref<128x128xbf16, #tpu.memory_space<vmem>>, %arg11: memref<1x128xf32, #tpu.memory_space<vmem>>, %arg12: memref<1x128xf32, #tpu.memory_space<vmem>>, %arg13: memref<1x128xf32, #tpu.memory_space<vmem>>, %arg14: memref<504x128xbf16, #tpu.memory_space<vmem>>) attributes {dimension_semantics = [#tpu.dimension_semantics<parallel>], iteration_bounds = array<i64: 2>, scalar_prefetch = 0 : i64, scratch_operands = 0 : i64, tpu.core_type = #tpu.core_type<tc>, window_params = [{transform_indices = @transform_0, window_bounds = array<i64: 504, 128>}, {transform_indices = @transform_1, window_bounds = array<i64: 504, 128>}, {transform_indices = @transform_2, window_bounds = array<i64: 504, 128>}, {pipeline_mode = #tpu.pipeline_mode<synchronous>, transform_indices = @transform_3, window_bounds = array<i64: 128, 128>}, {pipeline_mode = #tpu.pipeline_mode<synchronous>, transform_indices = @transform_4, window_bounds = array<i64: 128, 128>}, {pipeline_mode = #tpu.pipeline_mode<synchronous>, transform_indices = @transform_5, window_bounds = array<i64: 128, 128>}, {pipeline_mode = #tpu.pipeline_mode<synchronous>, transform_indices = @transform_6, window_bounds = array<i64: 1, 128>}, {pipeline_mode = #tpu.pipeline_mode<synchronous>, transform_indices = @transform_7, window_bounds = array<i64: 128, 128>}, {pipeline_mode = #tpu.pipeline_mode<synchronous>, transform_indices = @transform_8, window_bounds = array<i64: 1, 128>}, {pipeline_mode = #tpu.pipeline_mode<synchronous>, transform_indices = @transform_9, window_bounds = array<i64: 128, 128>}, {pipeline_mode = #tpu.pipeline_mode<synchronous>, transform_indices = @transform_10, window_bounds = array<i64: 1, 128>}, {pipeline_mode = #tpu.pipeline_mode<synchronous>, transform_indices = @transform_11, window_bounds = array<i64: 1, 128>}, {pipeline_mode = #tpu.pipeline_mode<synchronous>, transform_indices = @transform_12, window_bounds = array<i64: 1, 128>}, {transform_indices = @transform_13, window_bounds = array<i64: 504, 128>}]} {
    %c0 = arith.constant 0 : index
    %c0_0 = arith.constant 0 : index
    %0 = vector.load %arg3[%c0, %c0_0] : memref<504x128xbf16, #tpu.memory_space<vmem>>, vector<504x128xbf16>
    %1 = arith.extf %0 : vector<504x128xbf16> to vector<504x128xf32>
    %c0_1 = arith.constant 0 : index
    %c0_2 = arith.constant 0 : index
    %2 = vector.load %arg1[%c0_1, %c0_2] : memref<504x128xbf16, #tpu.memory_space<vmem>>, vector<504x128xbf16>
    %c0_3 = arith.constant 0 : index
    %c0_4 = arith.constant 0 : index
    %3 = vector.load %arg4[%c0_3, %c0_4] : memref<128x128xbf16, #tpu.memory_space<vmem>>, vector<128x128xbf16>
    %cst = arith.constant dense<0.000000e+00> : vector<504x128xf32>
    %4 = tpu.matmul %2, %3, %cst {dimension_numbers = #tpu.dot_dimension_numbers<[1], [0], [0], [1], [0, 0, 1, 1], [], []>} : vector<504x128xbf16>, vector<128x128xbf16>, vector<504x128xf32> -> vector<504x128xf32>
    %c0_5 = arith.constant 0 : index
    %c0_6 = arith.constant 0 : index
    %5 = vector.load %arg2[%c0_5, %c0_6] : memref<504x128xbf16, #tpu.memory_space<vmem>>, vector<504x128xbf16>
    %c0_7 = arith.constant 0 : index
    %c0_8 = arith.constant 0 : index
    %6 = vector.load %arg5[%c0_7, %c0_8] : memref<128x128xbf16, #tpu.memory_space<vmem>>, vector<128x128xbf16>
    %cst_9 = arith.constant dense<0.000000e+00> : vector<504x128xf32>
    %7 = tpu.matmul %5, %6, %cst_9 {dimension_numbers = #tpu.dot_dimension_numbers<[1], [0], [0], [1], [0, 0, 1, 1], [], []>} : vector<504x128xbf16>, vector<128x128xbf16>, vector<504x128xf32> -> vector<504x128xf32>
    %8 = arith.addf %4, %7 : vector<504x128xf32>
    %c0_10 = arith.constant 0 : index
    %c0_11 = arith.constant 0 : index
    %9 = vector.load %arg6[%c0_10, %c0_11] : memref<128x128xbf16, #tpu.memory_space<vmem>>, vector<128x128xbf16>
    %cst_12 = arith.constant dense<0.000000e+00> : vector<504x128xf32>
    %10 = tpu.matmul %0, %9, %cst_12 {dimension_numbers = #tpu.dot_dimension_numbers<[1], [0], [0], [1], [0, 0, 1, 1], [], []>} : vector<504x128xbf16>, vector<128x128xbf16>, vector<504x128xf32> -> vector<504x128xf32>
    %11 = arith.addf %8, %10 : vector<504x128xf32>
    %c0_13 = arith.constant 0 : index
    %c0_14 = arith.constant 0 : index
    %12 = vector.load %arg7[%c0_13, %c0_14] : memref<1x128xf32, #tpu.memory_space<vmem>>, vector<1x128xf32>
    %13 = vector.broadcast %12 : vector<1x128xf32> to vector<504x128xf32>
    %14 = arith.addf %11, %13 : vector<504x128xf32>
    %cst_15 = arith.constant 0.000000e+00 : f32
    %15 = vector.broadcast %cst_15 : f32 to vector<504x128xf32>
    %16 = arith.maximumf %14, %15 : vector<504x128xf32>
    %17 = arith.truncf %16 : vector<504x128xf32> to vector<504x128xbf16>
    %c0_16 = arith.constant 0 : index
    %c0_17 = arith.constant 0 : index
    %18 = vector.load %arg8[%c0_16, %c0_17] : memref<128x128xbf16, #tpu.memory_space<vmem>>, vector<128x128xbf16>
    %cst_18 = arith.constant dense<0.000000e+00> : vector<504x128xf32>
    %19 = tpu.matmul %17, %18, %cst_18 {dimension_numbers = #tpu.dot_dimension_numbers<[1], [0], [0], [1], [0, 0, 1, 1], [], []>} : vector<504x128xbf16>, vector<128x128xbf16>, vector<504x128xf32> -> vector<504x128xf32>
    %c0_19 = arith.constant 0 : index
    %c0_20 = arith.constant 0 : index
    %20 = vector.load %arg9[%c0_19, %c0_20] : memref<1x128xf32, #tpu.memory_space<vmem>>, vector<1x128xf32>
    %21 = vector.broadcast %20 : vector<1x128xf32> to vector<504x128xf32>
    %22 = arith.addf %19, %21 : vector<504x128xf32>
    %cst_21 = arith.constant 0.000000e+00 : f32
    %23 = vector.broadcast %cst_21 : f32 to vector<504x128xf32>
    %24 = arith.maximumf %22, %23 : vector<504x128xf32>
    %25 = arith.truncf %24 : vector<504x128xf32> to vector<504x128xbf16>
    %c0_22 = arith.constant 0 : index
    %c0_23 = arith.constant 0 : index
    %26 = vector.load %arg10[%c0_22, %c0_23] : memref<128x128xbf16, #tpu.memory_space<vmem>>, vector<128x128xbf16>
    %cst_24 = arith.constant dense<0.000000e+00> : vector<504x128xf32>
    %27 = tpu.matmul %25, %26, %cst_24 {dimension_numbers = #tpu.dot_dimension_numbers<[1], [0], [0], [1], [0, 0, 1, 1], [], []>} : vector<504x128xbf16>, vector<128x128xbf16>, vector<504x128xf32> -> vector<504x128xf32>
    %c0_25 = arith.constant 0 : index
    %c0_26 = arith.constant 0 : index
    %28 = vector.load %arg11[%c0_25, %c0_26] : memref<1x128xf32, #tpu.memory_space<vmem>>, vector<1x128xf32>
    %29 = vector.broadcast %28 : vector<1x128xf32> to vector<504x128xf32>
    %30 = arith.addf %27, %29 : vector<504x128xf32>
    %cst_27 = arith.constant dense<0.000000e+00> : vector<504xf32>
    %31 = vector.multi_reduction <add>, %30, %cst_27 [1] : vector<504x128xf32> to vector<504xf32>
    %32 = vector.shape_cast %31 : vector<504xf32> to vector<504x1xf32>
    %cst_28 = arith.constant 1.280000e+02 : f32
    %33 = vector.broadcast %cst_28 : f32 to vector<504x1xf32>
    %34 = arith.divf %32, %33 : vector<504x1xf32>
    %35 = vector.broadcast %34 : vector<504x1xf32> to vector<504x128xf32>
    %36 = arith.subf %30, %35 : vector<504x128xf32>
    %37 = arith.mulf %36, %36 : vector<504x128xf32>
    %cst_29 = arith.constant dense<0.000000e+00> : vector<504xf32>
    %38 = vector.multi_reduction <add>, %37, %cst_29 [1] : vector<504x128xf32> to vector<504xf32>
    %39 = vector.shape_cast %38 : vector<504xf32> to vector<504x1xf32>
    %cst_30 = arith.constant 1.280000e+02 : f32
    %40 = vector.broadcast %cst_30 : f32 to vector<504x1xf32>
    %41 = arith.divf %39, %40 : vector<504x1xf32>
    %cst_31 = arith.constant 9.99999974E-6 : f32
    %42 = vector.broadcast %cst_31 : f32 to vector<504x1xf32>
    %43 = arith.addf %41, %42 : vector<504x1xf32>
    %44 = math.rsqrt %43 : vector<504x1xf32>
    %45 = vector.broadcast %44 : vector<504x1xf32> to vector<504x128xf32>
    %46 = arith.mulf %36, %45 : vector<504x128xf32>
    %c0_32 = arith.constant 0 : index
    %c0_33 = arith.constant 0 : index
    %47 = vector.load %arg12[%c0_32, %c0_33] : memref<1x128xf32, #tpu.memory_space<vmem>>, vector<1x128xf32>
    %48 = vector.broadcast %47 : vector<1x128xf32> to vector<504x128xf32>
    %49 = arith.mulf %46, %48 : vector<504x128xf32>
    %c0_34 = arith.constant 0 : index
    %c0_35 = arith.constant 0 : index
    %50 = vector.load %arg13[%c0_34, %c0_35] : memref<1x128xf32, #tpu.memory_space<vmem>>, vector<1x128xf32>
    %51 = vector.broadcast %50 : vector<1x128xf32> to vector<504x128xf32>
    %52 = arith.addf %49, %51 : vector<504x128xf32>
    %53 = arith.addf %52, %1 : vector<504x128xf32>
    %54 = arith.truncf %53 : vector<504x128xf32> to vector<504x128xbf16>
    %c0_36 = arith.constant 0 : index
    %c0_37 = arith.constant 0 : index
    %55 = vector.load %arg14[%c0_36, %c0_37] : memref<504x128xbf16, #tpu.memory_space<vmem>>, vector<504x128xbf16>
    tpu.vector_store %arg14[%c0_36, %c0_37], %54 {strides = array<i32>} : memref<504x128xbf16, #tpu.memory_space<vmem>>, vector<504x128xbf16>,
    return
  }
  func.func @transform_0(%arg0: i32) -> (i32, i32) {
    %c0_i32 = arith.constant 0 : i32
    %c0_i32_0 = arith.constant 0 : i32
    return %arg0, %c0_i32 : i32, i32
  }
  func.func @transform_1(%arg0: i32) -> (i32, i32) {
    %c0_i32 = arith.constant 0 : i32
    %c0_i32_0 = arith.constant 0 : i32
    return %arg0, %c0_i32 : i32, i32
  }
  func.func @transform_2(%arg0: i32) -> (i32, i32) {
    %c0_i32 = arith.constant 0 : i32
    %c0_i32_0 = arith.constant 0 : i32
    return %arg0, %c0_i32 : i32, i32
  }
  func.func @transform_3(%arg0: i32) -> (i32, i32) {
    %c0_i32 = arith.constant 0 : i32
    %c0_i32_0 = arith.constant 0 : i32
    %c0_i32_1 = arith.constant 0 : i32
    return %c0_i32, %c0_i32_0 : i32, i32
  }
  func.func @transform_4(%arg0: i32) -> (i32, i32) {
    %c0_i32 = arith.constant 0 : i32
    %c0_i32_0 = arith.constant 0 : i32
    %c0_i32_1 = arith.constant 0 : i32
    return %c0_i32, %c0_i32_0 : i32, i32
  }
  func.func @transform_5(%arg0: i32) -> (i32, i32) {
    %c0_i32 = arith.constant 0 : i32
    %c0_i32_0 = arith.constant 0 : i32
    %c0_i32_1 = arith.constant 0 : i32
    return %c0_i32, %c0_i32_0 : i32, i32
  }
  func.func @transform_6(%arg0: i32) -> (i32, i32) {
    %c0_i32 = arith.constant 0 : i32
    %c0_i32_0 = arith.constant 0 : i32
    %c0_i32_1 = arith.constant 0 : i32
    return %c0_i32, %c0_i32_0 : i32, i32
  }
  func.func @transform_7(%arg0: i32) -> (i32, i32) {
    %c0_i32 = arith.constant 0 : i32
    %c0_i32_0 = arith.constant 0 : i32
    %c0_i32_1 = arith.constant 0 : i32
    return %c0_i32, %c0_i32_0 : i32, i32
  }
  func.func @transform_8(%arg0: i32) -> (i32, i32) {
    %c0_i32 = arith.constant 0 : i32
    %c0_i32_0 = arith.constant 0 : i32
    %c0_i32_1 = arith.constant 0 : i32
    return %c0_i32, %c0_i32_0 : i32, i32
  }
  func.func @transform_9(%arg0: i32) -> (i32, i32) {
    %c0_i32 = arith.constant 0 : i32
    %c0_i32_0 = arith.constant 0 : i32
    %c0_i32_1 = arith.constant 0 : i32
    return %c0_i32, %c0_i32_0 : i32, i32
  }
  func.func @transform_10(%arg0: i32) -> (i32, i32) {
    %c0_i32 = arith.constant 0 : i32
    %c0_i32_0 = arith.constant 0 : i32
    %c0_i32_1 = arith.constant 0 : i32
    return %c0_i32, %c0_i32_0 : i32, i32
  }
  func.func @transform_11(%arg0: i32) -> (i32, i32) {
    %c0_i32 = arith.constant 0 : i32
    %c0_i32_0 = arith.constant 0 : i32
    %c0_i32_1 = arith.constant 0 : i32
    return %c0_i32, %c0_i32_0 : i32, i32
  }
  func.func @transform_12(%arg0: i32) -> (i32, i32) {
    %c0_i32 = arith.constant 0 : i32
    %c0_i32_0 = arith.constant 0 : i32
    %c0_i32_1 = arith.constant 0 : i32
    return %c0_i32, %c0_i32_0 : i32, i32
  }
  func.func @transform_13(%arg0: i32) -> (i32, i32) {
    %c0_i32 = arith.constant 0 : i32
    %c0_i32_0 = arith.constant 0 : i32
    return %arg0, %c0_i32 : i32, i32
  }
}

</mosaic_0001>

<llo_original>
// kernel: edge_processor.1
$region0: #{edge_processor.1}
  #allocation0 [shape = 'u32[]', space=smem, size = 0x4, offset = 0x4, fixed_abs, tag = 'smem constant byte address 0x4 - core index']
  #allocation1 [shape = 'u32[144,128]{1,0:T(1,128)}', space=vmem, size = 0x12000, scoped, tag = 'internal scratch']
  %s0 = inlined_call_operand.hbm [shape: bf16[1000,128], index: 0, kind: input, shape index: {}]
  %s1 = inlined_call_operand.hbm [shape: bf16[1000,128], index: 1, kind: input, shape index: {}]
  %s2 = inlined_call_operand.hbm [shape: bf16[1000,128], index: 2, kind: input, shape index: {}]
  %s3 = inlined_call_operand.hbm [shape: bf16[128,128], index: 3, kind: input, shape index: {}]
  %s4 = inlined_call_operand.hbm [shape: bf16[128,128], index: 4, kind: input, shape index: {}]
  %s5 = inlined_call_operand.hbm [shape: bf16[128,128], index: 5, kind: input, shape index: {}]
  %s6 = inlined_call_operand.vmem [shape: f32[1,128], index: 6, kind: input, shape index: {}]
  %s7 = inlined_call_operand.hbm [shape: bf16[128,128], index: 7, kind: input, shape index: {}]
  %s8 = inlined_call_operand.vmem [shape: f32[1,128], index: 8, kind: input, shape index: {}]
  %s9 = inlined_call_operand.hbm [shape: bf16[128,128], index: 9, kind: input, shape index: {}]
  %s10 = inlined_call_operand.vmem [shape: f32[1,128], index: 10, kind: input, shape index: {}]
  %s11 = inlined_call_operand.vmem [shape: f32[1,128], index: 11, kind: input, shape index: {}]
  %s12 = inlined_call_operand.vmem [shape: f32[1,128], index: 12, kind: input, shape index: {}]
  %s13 = inlined_call_operand.hbm [shape: bf16[1000,128], index: 13, kind: output, shape index: {}]
  %s14 = sld [smem:[#allocation0]]
  $region117: #{edge_processor.1} parent=0
    _
  %s16 = ssub.s32 1, %s14
  %s17 = scalar_select 0, %s16, %s14
  $region1: #{edge_processor.1} parent=0
    #allocation2 [shape = 'u8[258048]{0}', space=vmem, size = 0x3f000, scoped, tag = 'input window, operand 0']
    #allocation3 [shape = 's32[2]{0}', space=sflag, size = 0x8, scoped, tag = 'scoped memory for edge_processor.1']
    #allocation4 [shape = 's32[2]{0}', space=sflag, size = 0x8, scoped, tag = 'scoped memory for edge_processor.1']
    #allocation5 [shape = 'u8[258048]{0}', space=vmem, size = 0x3f000, scoped, tag = 'input window, operand 1']
    #allocation6 [shape = 's32[2]{0}', space=sflag, size = 0x8, scoped, tag = 'scoped memory for edge_processor.1']
    #allocation7 [shape = 'u8[258048]{0}', space=vmem, size = 0x3f000, scoped, tag = 'input window, operand 2']
    #allocation8 [shape = 'u8[32768]{0}', space=vmem, size = 0x8000, scoped, tag = 'input window, operand 3, single buffered']
    #allocation9 [shape = 's32[1]{0}', space=sflag, size = 0x4, scoped, tag = 'scoped memory for edge_processor.1']
    #allocation10 [shape = 'u8[32768]{0}', space=vmem, size = 0x8000, scoped, tag = 'input window, operand 4, single buffered']
    #allocation11 [shape = 'u8[32768]{0}', space=vmem, size = 0x8000, scoped, tag = 'input window, operand 5, single buffered']
    #allocation12 [shape = 's32[1]{0}', space=sflag, size = 0x4, scoped, tag = 'scoped memory for edge_processor.1']
    #allocation13 [shape = 'u8[32768]{0}', space=vmem, size = 0x8000, scoped, tag = 'input window, operand 7, single buffered']
    #allocation14 [shape = 'u8[32768]{0}', space=vmem, size = 0x8000, scoped, tag = 'input window, operand 9, single buffered']
    #allocation15 [shape = 's32[1]{0}', space=sflag, size = 0x4, scoped, tag = 'scoped memory for edge_processor.1']
    #allocation16 [shape = 'u8[258048]{0}', space=vmem, size = 0x3f000, scoped, tag = 'output window, operand 0']
    %18 = vsyncpa [#allocation3], 0
    %s19 = scalar_lea.sflag [#allocation3], 1
    %20 = vsyncpa %s19, 0
    %21 = vsyncpa [#allocation6], 0
    %s22 = scalar_lea.sflag [#allocation6], 1
    %23 = vsyncpa %s22, 0
    %24 = vsyncpa [#allocation9], 0
    %25 = vsyncpa [#allocation12], 0
    %26 = vsyncpa [#allocation15], 0
    %27 = vsyncpa [#allocation4], 0
    %s28 = scalar_lea.sflag [#allocation4], 1
    %29 = vsyncpa %s28, 0
    loop: start=0, step=1, limit=4
    $region2: #{edge_processor.1} parent=1 // loop_pre_header
      _
    $region3: #{edge_processor.1} parent=1 // loop_header
      %s31 = sphi 0, %s35
      %p32 = scmp.ge.s32.totalorder %s31, 4
      %s41 = sphi 0, %s43
      %s44 = sphi 0, %s41
      %s45 = sphi 0, %s44
      %s61 = sphi 0, %s45
      %s67 = sphi 0, %s69
      %s70 = sphi 0, %s67
      %s71 = sphi 0, %s70
      %s87 = sphi 0, %s71
      %s93 = sphi 0, %s95
      %s96 = sphi 0, %s93
      %s97 = sphi 0, %s96
      %s113 = sphi 0, %s97
      %s117 = sphi 0, %s117
      %s119 = sphi 0, %s117
      %s120 = sphi 0, %s119
      %s134 = sphi 0, %s120
      %s138 = sphi 0, %s138
      %s140 = sphi 0, %s138
      %s141 = sphi 0, %s140
      %s155 = sphi 0, %s141
      %s159 = sphi 0, %s159
      %s161 = sphi 0, %s159
      %s162 = sphi 0, %s161
      %s176 = sphi 0, %s162
      %s180 = sphi 0, %s180
      %s182 = sphi 0, %s180
      %s183 = sphi 0, %s182
      %s197 = sphi 0, %s183
      %s201 = sphi 0, %s201
      %s203 = sphi 0, %s201
      %s204 = sphi 0, %s203
      %s218 = sphi 0, %s204
      %s222 = sphi 0, %s222
      %s224 = sphi 0, %s222
      %s225 = sphi 0, %s224
      %s239 = sphi 0, %s225
      %s243 = sphi 0, %s243
      %s245 = sphi 0, %s243
      %s246 = sphi 0, %s245
      %s260 = sphi 0, %s246
      %s264 = sphi 0, %s264
      %s266 = sphi 0, %s264
      %s267 = sphi 0, %s266
      %s281 = sphi 0, %s267
      %s285 = sphi 0, %s285
      %s287 = sphi 0, %s285
      %s288 = sphi 0, %s287
      %s302 = sphi 0, %s288
      %s306 = sphi 0, %s306
      %s308 = sphi 0, %s306
      %s309 = sphi 0, %s308
      %s323 = sphi 0, %s309
      %s329 = sphi 0, %s331
      %s332 = sphi 0, %s329
      %s333 = sphi 0, %s332
      %s349 = sphi 0, %s333
    $region4: #{edge_processor.1} parent=1 // loop_header_branch
      %34 = sbr.rel (%p32) target = $region8
    $region5: #{edge_processor.1} parent=1 // loop_body
      %s36 = ssub.s32 %s31, 1
      %s37 = ssub.s32 %s31, 2
      %s38 = sadd.s32 %s31, 1
      %s39 = ssub.s32 %s31, %s38
      %p40 = scmp.eq.s32.totalorder %s39, 0
      %s42 = sadd.s32 %s41, 1
      %s43 = scalar_select %p40, %s41, %s42
      %p46 = pneg %p40
      %p47 = scmp.eq.s32.totalorder %s31, 1
      %p48 = por %p46, %p47
      %p49 = scmp.ne.s32.totalorder %s41, %s44
      %p50 = scmp.eq.s32.totalorder %s31, 0
      %p51 = por %p49, %p50
      %p52 = scmp.ne.s32.totalorder %s41, %s44
      %p53 = scmp.eq.s32.totalorder %s36, 1
      %p54 = por %p52, %p53
      %p55 = scmp.ne.s32.totalorder %s44, %s45
      %p56 = scmp.eq.s32.totalorder %s36, 0
      %p57 = por %p55, %p56
      %p58 = scmp.ne.s32.totalorder %s44, %s45
      %p59 = scmp.eq.s32.totalorder %s37, 1
      %p60 = por %p58, %p59
      %p62 = scmp.ne.s32.totalorder %s45, %s61
      %p63 = scmp.eq.s32.totalorder %s37, 0
      %p64 = por %p62, %p63
      %s65 = ssub.s32 %s31, %s38
      %p66 = scmp.eq.s32.totalorder %s65, 0
      %s68 = sadd.s32 %s67, 1
      %s69 = scalar_select %p66, %s67, %s68
      %p72 = pneg %p66
      %p73 = scmp.eq.s32.totalorder %s31, 1
      %p74 = por %p72, %p73
      %p75 = scmp.ne.s32.totalorder %s67, %s70
      %p76 = scmp.eq.s32.totalorder %s31, 0
      %p77 = por %p75, %p76
      %p78 = scmp.ne.s32.totalorder %s67, %s70
      %p79 = scmp.eq.s32.totalorder %s36, 1
      %p80 = por %p78, %p79
      %p81 = scmp.ne.s32.totalorder %s70, %s71
      %p82 = scmp.eq.s32.totalorder %s36, 0
      %p83 = por %p81, %p82
      %p84 = scmp.ne.s32.totalorder %s70, %s71
      %p85 = scmp.eq.s32.totalorder %s37, 1
      %p86 = por %p84, %p85
      %p88 = scmp.ne.s32.totalorder %s71, %s87
      %p89 = scmp.eq.s32.totalorder %s37, 0
      %p90 = por %p88, %p89
      %s91 = ssub.s32 %s31, %s38
      %p92 = scmp.eq.s32.totalorder %s91, 0
      %s94 = sadd.s32 %s93, 1
      %s95 = scalar_select %p92, %s93, %s94
      %p98 = pneg %p92
      %p99 = scmp.eq.s32.totalorder %s31, 1
      %p100 = por %p98, %p99
      %p101 = scmp.ne.s32.totalorder %s93, %s96
      %p102 = scmp.eq.s32.totalorder %s31, 0
      %p103 = por %p101, %p102
      %p104 = scmp.ne.s32.totalorder %s93, %s96
      %p105 = scmp.eq.s32.totalorder %s36, 1
      %p106 = por %p104, %p105
      %p107 = scmp.ne.s32.totalorder %s96, %s97
      %p108 = scmp.eq.s32.totalorder %s36, 0
      %p109 = por %p107, %p108
      %p110 = scmp.ne.s32.totalorder %s96, %s97
      %p111 = scmp.eq.s32.totalorder %s37, 1
      %p112 = por %p110, %p111
      %p114 = scmp.ne.s32.totalorder %s97, %s113
      %p115 = scmp.eq.s32.totalorder %s37, 0
      %p116 = por %p114, %p115
      %s118 = sadd.s32 %s117, 1
      %p121 = scmp.eq.s32.totalorder %s31, 1
      %p122 = scmp.ne.s32.totalorder %s117, %s119
      %p123 = scmp.eq.s32.totalorder %s31, 0
      %p124 = por %p122, %p123
      %p125 = scmp.ne.s32.totalorder %s117, %s119
      %p126 = scmp.eq.s32.totalorder %s36, 1
      %p127 = por %p125, %p126
      %p128 = scmp.ne.s32.totalorder %s119, %s120
      %p129 = scmp.eq.s32.totalorder %s36, 0
      %p130 = por %p128, %p129
      %p131 = scmp.ne.s32.totalorder %s119, %s120
      %p132 = scmp.eq.s32.totalorder %s37, 1
      %p133 = por %p131, %p132
      %p135 = scmp.ne.s32.totalorder %s120, %s134
      %p136 = scmp.eq.s32.totalorder %s37, 0
      %p137 = por %p135, %p136
      %s139 = sadd.s32 %s138, 1
      %p142 = scmp.eq.s32.totalorder %s31, 1
      %p143 = scmp.ne.s32.totalorder %s138, %s140
      %p144 = scmp.eq.s32.totalorder %s31, 0
      %p145 = por %p143, %p144
      %p146 = scmp.ne.s32.totalorder %s138, %s140
      %p147 = scmp.eq.s32.totalorder %s36, 1
      %p148 = por %p146, %p147
      %p149 = scmp.ne.s32.totalorder %s140, %s141
      %p150 = scmp.eq.s32.totalorder %s36, 0
      %p151 = por %p149, %p150
      %p152 = scmp.ne.s32.totalorder %s140, %s141
      %p153 = scmp.eq.s32.totalorder %s37, 1
      %p154 = por %p152, %p153
      %p156 = scmp.ne.s32.totalorder %s141, %s155
      %p157 = scmp.eq.s32.totalorder %s37, 0
      %p158 = por %p156, %p157
      %s160 = sadd.s32 %s159, 1
      %p163 = scmp.eq.s32.totalorder %s31, 1
      %p164 = scmp.ne.s32.totalorder %s159, %s161
      %p165 = scmp.eq.s32.totalorder %s31, 0
      %p166 = por %p164, %p165
      %p167 = scmp.ne.s32.totalorder %s159, %s161
      %p168 = scmp.eq.s32.totalorder %s36, 1
      %p169 = por %p167, %p168
      %p170 = scmp.ne.s32.totalorder %s161, %s162
      %p171 = scmp.eq.s32.totalorder %s36, 0
      %p172 = por %p170, %p171
      %p173 = scmp.ne.s32.totalorder %s161, %s162
      %p174 = scmp.eq.s32.totalorder %s37, 1
      %p175 = por %p173, %p174
      %p177 = scmp.ne.s32.totalorder %s162, %s176
      %p178 = scmp.eq.s32.totalorder %s37, 0
      %p179 = por %p177, %p178
      %s181 = sadd.s32 %s180, 1
      %p184 = scmp.eq.s32.totalorder %s31, 1
      %p185 = scmp.ne.s32.totalorder %s180, %s182
      %p186 = scmp.eq.s32.totalorder %s31, 0
      %p187 = por %p185, %p186
      %p188 = scmp.ne.s32.totalorder %s180, %s182
      %p189 = scmp.eq.s32.totalorder %s36, 1
      %p190 = por %p188, %p189
      %p191 = scmp.ne.s32.totalorder %s182, %s183
      %p192 = scmp.eq.s32.totalorder %s36, 0
      %p193 = por %p191, %p192
      %p194 = scmp.ne.s32.totalorder %s182, %s183
      %p195 = scmp.eq.s32.totalorder %s37, 1
      %p196 = por %p194, %p195
      %p198 = scmp.ne.s32.totalorder %s183, %s197
      %p199 = scmp.eq.s32.totalorder %s37, 0
      %p200 = por %p198, %p199
      %s202 = sadd.s32 %s201, 1
      %p205 = scmp.eq.s32.totalorder %s31, 1
      %p206 = scmp.ne.s32.totalorder %s201, %s203
      %p207 = scmp.eq.s32.totalorder %s31, 0
      %p208 = por %p206, %p207
      %p209 = scmp.ne.s32.totalorder %s201, %s203
      %p210 = scmp.eq.s32.totalorder %s36, 1
      %p211 = por %p209, %p210
      %p212 = scmp.ne.s32.totalorder %s203, %s204
      %p213 = scmp.eq.s32.totalorder %s36, 0
      %p214 = por %p212, %p213
      %p215 = scmp.ne.s32.totalorder %s203, %s204
      %p216 = scmp.eq.s32.totalorder %s37, 1
      %p217 = por %p215, %p216
      %p219 = scmp.ne.s32.totalorder %s204, %s218
      %p220 = scmp.eq.s32.totalorder %s37, 0
      %p221 = por %p219, %p220
      %s223 = sadd.s32 %s222, 1
      %p226 = scmp.eq.s32.totalorder %s31, 1
      %p227 = scmp.ne.s32.totalorder %s222, %s224
      %p228 = scmp.eq.s32.totalorder %s31, 0
      %p229 = por %p227, %p228
      %p230 = scmp.ne.s32.totalorder %s222, %s224
      %p231 = scmp.eq.s32.totalorder %s36, 1
      %p232 = por %p230, %p231
      %p233 = scmp.ne.s32.totalorder %s224, %s225
      %p234 = scmp.eq.s32.totalorder %s36, 0
      %p235 = por %p233, %p234
      %p236 = scmp.ne.s32.totalorder %s224, %s225
      %p237 = scmp.eq.s32.totalorder %s37, 1
      %p238 = por %p236, %p237
      %p240 = scmp.ne.s32.totalorder %s225, %s239
      %p241 = scmp.eq.s32.totalorder %s37, 0
      %p242 = por %p240, %p241
      %s244 = sadd.s32 %s243, 1
      %p247 = scmp.eq.s32.totalorder %s31, 1
      %p248 = scmp.ne.s32.totalorder %s243, %s245
      %p249 = scmp.eq.s32.totalorder %s31, 0
      %p250 = por %p248, %p249
      %p251 = scmp.ne.s32.totalorder %s243, %s245
      %p252 = scmp.eq.s32.totalorder %s36, 1
      %p253 = por %p251, %p252
      %p254 = scmp.ne.s32.totalorder %s245, %s246
      %p255 = scmp.eq.s32.totalorder %s36, 0
      %p256 = por %p254, %p255
      %p257 = scmp.ne.s32.totalorder %s245, %s246
      %p258 = scmp.eq.s32.totalorder %s37, 1
      %p259 = por %p257, %p258
      %p261 = scmp.ne.s32.totalorder %s246, %s260
      %p262 = scmp.eq.s32.totalorder %s37, 0
      %p263 = por %p261, %p262
      %s265 = sadd.s32 %s264, 1
      %p268 = scmp.eq.s32.totalorder %s31, 1
      %p269 = scmp.ne.s32.totalorder %s264, %s266
      %p270 = scmp.eq.s32.totalorder %s31, 0
      %p271 = por %p269, %p270
      %p272 = scmp.ne.s32.totalorder %s264, %s266
      %p273 = scmp.eq.s32.totalorder %s36, 1
      %p274 = por %p272, %p273
      %p275 = scmp.ne.s32.totalorder %s266, %s267
      %p276 = scmp.eq.s32.totalorder %s36, 0
      %p277 = por %p275, %p276
      %p278 = scmp.ne.s32.totalorder %s266, %s267
      %p279 = scmp.eq.s32.totalorder %s37, 1
      %p280 = por %p278, %p279
      %p282 = scmp.ne.s32.totalorder %s267, %s281
      %p283 = scmp.eq.s32.totalorder %s37, 0
      %p284 = por %p282, %p283
      %s286 = sadd.s32 %s285, 1
      %p289 = scmp.eq.s32.totalorder %s31, 1
      %p290 = scmp.ne.s32.totalorder %s285, %s287
      %p291 = scmp.eq.s32.totalorder %s31, 0
      %p292 = por %p290, %p291
      %p293 = scmp.ne.s32.totalorder %s285, %s287
      %p294 = scmp.eq.s32.totalorder %s36, 1
      %p295 = por %p293, %p294
      %p296 = scmp.ne.s32.totalorder %s287, %s288
      %p297 = scmp.eq.s32.totalorder %s36, 0
      %p298 = por %p296, %p297
      %p299 = scmp.ne.s32.totalorder %s287, %s288
      %p300 = scmp.eq.s32.totalorder %s37, 1
      %p301 = por %p299, %p300
      %p303 = scmp.ne.s32.totalorder %s288, %s302
      %p304 = scmp.eq.s32.totalorder %s37, 0
      %p305 = por %p303, %p304
      %s307 = sadd.s32 %s306, 1
      %p310 = scmp.eq.s32.totalorder %s31, 1
      %p311 = scmp.ne.s32.totalorder %s306, %s308
      %p312 = scmp.eq.s32.totalorder %s31, 0
      %p313 = por %p311, %p312
      %p314 = scmp.ne.s32.totalorder %s306, %s308
      %p315 = scmp.eq.s32.totalorder %s36, 1
      %p316 = por %p314, %p315
      %p317 = scmp.ne.s32.totalorder %s308, %s309
      %p318 = scmp.eq.s32.totalorder %s36, 0
      %p319 = por %p317, %p318
      %p320 = scmp.ne.s32.totalorder %s308, %s309
      %p321 = scmp.eq.s32.totalorder %s37, 1
      %p322 = por %p320, %p321
      %p324 = scmp.ne.s32.totalorder %s309, %s323
      %p325 = scmp.eq.s32.totalorder %s37, 0
      %p326 = por %p324, %p325
      %s327 = ssub.s32 %s31, %s38
      %p328 = scmp.eq.s32.totalorder %s327, 0
      %s330 = sadd.s32 %s329, 1
      %s331 = scalar_select %p328, %s329, %s330
      %p334 = pneg %p328
      %p335 = scmp.eq.s32.totalorder %s31, 1
      %p336 = por %p334, %p335
      %p337 = scmp.ne.s32.totalorder %s329, %s332
      %p338 = scmp.eq.s32.totalorder %s31, 0
      %p339 = por %p337, %p338
      %p340 = scmp.ne.s32.totalorder %s329, %s332
      %p341 = scmp.eq.s32.totalorder %s36, 1
      %p342 = por %p340, %p341
      %p343 = scmp.ne.s32.totalorder %s332, %s333
      %p344 = scmp.eq.s32.totalorder %s36, 0
      %p345 = por %p343, %p344
      %p346 = scmp.ne.s32.totalorder %s332, %s333
      %p347 = scmp.eq.s32.totalorder %s37, 1
      %p348 = por %p346, %p347
      %p350 = scmp.ne.s32.totalorder %s333, %s349
      %p351 = scmp.eq.s32.totalorder %s37, 0
      %p352 = por %p350, %p351
      %p353 = scmp.le.s32.totalorder 1, %s31
      %p354 = scmp.lt.s32.totalorder %s31, 3
      %p355 = pnand %p353, %p354
      %p356 = pneg %p355
      // Predicated region
      $region9: #{edge_processor.1} parent=5 // pred_check
        _
      $region10: #{edge_processor.1} parent=5 // pred_check_branch
        %358 = sbr.rel (%p355) target = $region12
      $region11: #{edge_processor.1} parent=5 // pred_region
        %s359 = ssub.s32 %s31, 1
        // Predicated region
        $region13: #{edge_processor.1} parent=11 // pred_check
          %p360 = pneg %p130
        $region14: #{edge_processor.1} parent=11 // pred_check_branch
          %362 = sbr.rel (%p360) target = $region16
        $region15: #{edge_processor.1} parent=11 // pred_region
          %s364 = ssub.s32 1024, 1024
          %365 = vsyncadd [#allocation9], %s364
          %s366 = sshll.u32 [#allocation8], 4
          %s367 = int_to_ptr.vmem [resolvable:$true] %s366
          %372 = dma.hbm_to_vmem [thread:$0]  %s3, 1024, %s367, [#allocation9], 64, 64, 4
        $region16: #{edge_processor.1} parent=11 // pred_fallthru
          _
        // Predicated region
        $region17: #{edge_processor.1} parent=11 // pred_check
          %p373 = pneg %p151
        $region18: #{edge_processor.1} parent=11 // pred_check_branch
          %375 = sbr.rel (%p373) target = $region20
        $region19: #{edge_processor.1} parent=11 // pred_region
          %s377 = ssub.s32 1024, 1024
          %378 = vsyncadd [#allocation9], %s377
          %s379 = sshll.u32 [#allocation10], 4
          %s380 = int_to_ptr.vmem [resolvable:$true] %s379
          %385 = dma.hbm_to_vmem [thread:$0]  %s4, 1024, %s380, [#allocation9], 64, 64, 4
        $region20: #{edge_processor.1} parent=11 // pred_fallthru
          _
        // Predicated region
        $region21: #{edge_processor.1} parent=11 // pred_check
          %p386 = pneg %p172
        $region22: #{edge_processor.1} parent=11 // pred_check_branch
          %388 = sbr.rel (%p386) target = $region24
        $region23: #{edge_processor.1} parent=11 // pred_region
          %s390 = ssub.s32 1024, 1024
          %391 = vsyncadd [#allocation12], %s390
          %s392 = sshll.u32 [#allocation11], 4
          %s393 = int_to_ptr.vmem [resolvable:$true] %s392
          %398 = dma.hbm_to_vmem [thread:$0]  %s5, 1024, %s393, [#allocation12], 64, 64, 4
        $region24: #{edge_processor.1} parent=11 // pred_fallthru
          _
        // Predicated region
        $region25: #{edge_processor.1} parent=11 // pred_check
          %p399 = pneg %p193
        $region26: #{edge_processor.1} parent=11 // pred_check_branch
          %401 = sbr.rel (%p399) target = $region28
        $region27: #{edge_processor.1} parent=11 // pred_region
          _
        $region28: #{edge_processor.1} parent=11 // pred_fallthru
          _
        // Predicated region
        $region29: #{edge_processor.1} parent=11 // pred_check
          %p402 = pneg %p214
        $region30: #{edge_processor.1} parent=11 // pred_check_branch
          %404 = sbr.rel (%p402) target = $region32
        $region31: #{edge_processor.1} parent=11 // pred_region
          %s406 = ssub.s32 1024, 1024
          %407 = vsyncadd [#allocation12], %s406
          %s408 = sshll.u32 [#allocation13], 4
          %s409 = int_to_ptr.vmem [resolvable:$true] %s408
          %414 = dma.hbm_to_vmem [thread:$0]  %s7, 1024, %s409, [#allocation12], 64, 64, 4
        $region32: #{edge_processor.1} parent=11 // pred_fallthru
          _
        // Predicated region
        $region33: #{edge_processor.1} parent=11 // pred_check
          %p415 = pneg %p235
        $region34: #{edge_processor.1} parent=11 // pred_check_branch
          %417 = sbr.rel (%p415) target = $region36
        $region35: #{edge_processor.1} parent=11 // pred_region
          _
        $region36: #{edge_processor.1} parent=11 // pred_fallthru
          _
        // Predicated region
        $region37: #{edge_processor.1} parent=11 // pred_check
          %p418 = pneg %p256
        $region38: #{edge_processor.1} parent=11 // pred_check_branch
          %420 = sbr.rel (%p418) target = $region40
        $region39: #{edge_processor.1} parent=11 // pred_region
          %s422 = ssub.s32 1024, 1024
          %423 = vsyncadd [#allocation15], %s422
          %s424 = sshll.u32 [#allocation14], 4
          %s425 = int_to_ptr.vmem [resolvable:$true] %s424
          %430 = dma.hbm_to_vmem [thread:$0]  %s9, 1024, %s425, [#allocation15], 64, 64, 4
        $region40: #{edge_processor.1} parent=11 // pred_fallthru
          _
        // Predicated region
        $region41: #{edge_processor.1} parent=11 // pred_check
          %p431 = pneg %p277
        $region42: #{edge_processor.1} parent=11 // pred_check_branch
          %433 = sbr.rel (%p431) target = $region44
        $region43: #{edge_processor.1} parent=11 // pred_region
          _
        $region44: #{edge_processor.1} parent=11 // pred_fallthru
          _
        // Predicated region
        $region45: #{edge_processor.1} parent=11 // pred_check
          %p434 = pneg %p298
        $region46: #{edge_processor.1} parent=11 // pred_check_branch
          %436 = sbr.rel (%p434) target = $region48
        $region47: #{edge_processor.1} parent=11 // pred_region
          _
        $region48: #{edge_processor.1} parent=11 // pred_fallthru
          _
        // Predicated region
        $region49: #{edge_processor.1} parent=11 // pred_check
          %p437 = pneg %p319
        $region50: #{edge_processor.1} parent=11 // pred_check_branch
          %439 = sbr.rel (%p437) target = $region52
        $region51: #{edge_processor.1} parent=11 // pred_region
          _
        $region52: #{edge_processor.1} parent=11 // pred_fallthru
          _
      $region12: #{edge_processor.1} parent=5 // pred_fallthru
        _
      %p440 = scmp.lt.s32.totalorder %s31, 2
      // Predicated region
      $region53: #{edge_processor.1} parent=5 // pred_check
        %p441 = pneg %p440
      $region54: #{edge_processor.1} parent=5 // pred_check_branch
        %443 = sbr.rel (%p441) target = $region56
      $region55: #{edge_processor.1} parent=5 // pred_region
        // Predicated region
        $region57: #{edge_processor.1} parent=55 // pred_check
          %p444 = pneg %p51
        $region58: #{edge_processor.1} parent=55 // pred_check_branch
          %446 = sbr.rel (%p444) target = $region60
        $region59: #{edge_processor.1} parent=55 // pred_region
          %s447 = sand.u32 %s41, 1
          %s448 = scalar_lea.sflag [#allocation3], %s447
          %s449 = sand.u32 %s41, 1
          %s450 = smul.addr %s449, 252
          %s451 = scalar_lea.vmem [#allocation2], %s450
          %s452 = smul.u32 63, %s31
          %s453 = ssub.s32 125, %s452
          %p454 = scmp.lt.s32.totalorder %s453, 63
          %s455 = scalar_select %p454, %s453, 63
          %s456 = smul.u32 64, %s455
          %s458 = ssub.s32 4032, %s456
          %459 = vsyncadd %s448, %s458
          %p460 = scmp.ne.s32.totalorder 0, %s456
          %s461 = smul.addr %s452, 64
          %s462 = scalar_lea.hbm %s0, %s461
          %s463 = smul.u32 4, %s455
          %s464 = sshll.u32 %s451, 4
          %s465 = int_to_ptr.vmem [resolvable:$true] %s464
          %s466 = sshll.u32 %s463, 4
          %470 = dma.hbm_to_vmem [thread:$0]  (%p460), %s462, %s466, %s465, %s448, 64, 64, 4
        $region60: #{edge_processor.1} parent=55 // pred_fallthru
          _
        // Predicated region
        $region61: #{edge_processor.1} parent=55 // pred_check
          %p471 = pneg %p77
        $region62: #{edge_processor.1} parent=55 // pred_check_branch
          %473 = sbr.rel (%p471) target = $region64
        $region63: #{edge_processor.1} parent=55 // pred_region
          %s474 = sand.u32 %s31, 1
          %s475 = scalar_lea.sflag [#allocation6], %s474
          %s476 = sand.u32 %s67, 1
          %s477 = smul.addr %s476, 252
          %s478 = scalar_lea.vmem [#allocation5], %s477
          %s479 = smul.u32 63, %s31
          %s480 = ssub.s32 125, %s479
          %p481 = scmp.lt.s32.totalorder %s480, 63
          %s482 = scalar_select %p481, %s480, 63
          %s483 = smul.u32 64, %s482
          %s485 = ssub.s32 4032, %s483
          %486 = vsyncadd %s475, %s485
          %p487 = scmp.ne.s32.totalorder 0, %s483
          %s488 = smul.addr %s479, 64
          %s489 = scalar_lea.hbm %s1, %s488
          %s490 = smul.u32 4, %s482
          %s491 = sshll.u32 %s478, 4
          %s492 = int_to_ptr.vmem [resolvable:$true] %s491
          %s493 = sshll.u32 %s490, 4
          %497 = dma.hbm_to_vmem [thread:$0]  (%p487), %s489, %s493, %s492, %s475, 64, 64, 4
        $region64: #{edge_processor.1} parent=55 // pred_fallthru
          _
        // Predicated region
        $region65: #{edge_processor.1} parent=55 // pred_check
          %p498 = pneg %p103
        $region66: #{edge_processor.1} parent=55 // pred_check_branch
          %500 = sbr.rel (%p498) target = $region68
        $region67: #{edge_processor.1} parent=55 // pred_region
          %s501 = sand.u32 %s31, 1
          %s502 = scalar_lea.sflag [#allocation6], %s501
          %s503 = sand.u32 %s93, 1
          %s504 = smul.addr %s503, 252
          %s505 = scalar_lea.vmem [#allocation7], %s504
          %s506 = smul.u32 63, %s31
          %s507 = ssub.s32 125, %s506
          %p508 = scmp.lt.s32.totalorder %s507, 63
          %s509 = scalar_select %p508, %s507, 63
          %s510 = smul.u32 64, %s509
          %s512 = ssub.s32 4032, %s510
          %513 = vsyncadd %s502, %s512
          %p514 = scmp.ne.s32.totalorder 0, %s510
          %s515 = smul.addr %s506, 64
          %s516 = scalar_lea.hbm %s2, %s515
          %s517 = smul.u32 4, %s509
          %s518 = sshll.u32 %s505, 4
          %s519 = int_to_ptr.vmem [resolvable:$true] %s518
          %s520 = sshll.u32 %s517, 4
          %524 = dma.hbm_to_vmem [thread:$0]  (%p514), %s516, %s520, %s519, %s502, 64, 64, 4
        $region68: #{edge_processor.1} parent=55 // pred_fallthru
          _
      $region56: #{edge_processor.1} parent=5 // pred_fallthru
        _
      %p525 = scmp.le.s32.totalorder 1, %s31
      %p526 = scmp.lt.s32.totalorder %s31, 3
      %p527 = pnand %p525, %p526
      %p528 = pneg %p527
      // Predicated region
      $region69: #{edge_processor.1} parent=5 // pred_check
        _
      $region70: #{edge_processor.1} parent=5 // pred_check_branch
        %530 = sbr.rel (%p527) target = $region72
      $region71: #{edge_processor.1} parent=5 // pred_region
        %s531 = ssub.s32 %s31, 1
        %s532 = sand.u32 %s44, 1
        %s533 = scalar_lea.sflag [#allocation3], %s532
        %s534 = sand.u32 %s44, 1
        %s535 = smul.addr %s534, 252
        %s536 = scalar_lea.vmem [#allocation2], %s535
        // Predicated region
        $region73: #{edge_processor.1} parent=71 // pred_check
          %p537 = pneg %p57
        $region74: #{edge_processor.1} parent=71 // pred_check_branch
          %539 = sbr.rel (%p537) target = $region76
        $region75: #{edge_processor.1} parent=71 // pred_region
          %540 = dma.done %s533, 4032
        $region76: #{edge_processor.1} parent=71 // pred_fallthru
          _
        %s541 = sand.u32 %s36, 1
        %s542 = scalar_lea.sflag [#allocation6], %s541
        %s543 = sand.u32 %s70, 1
        %s544 = smul.addr %s543, 252
        %s545 = scalar_lea.vmem [#allocation5], %s544
        // Predicated region
        $region77: #{edge_processor.1} parent=71 // pred_check
          %p546 = pneg %p83
        $region78: #{edge_processor.1} parent=71 // pred_check_branch
          %548 = sbr.rel (%p546) target = $region80
        $region79: #{edge_processor.1} parent=71 // pred_region
          %549 = dma.done %s542, 4032
        $region80: #{edge_processor.1} parent=71 // pred_fallthru
          _
        %s550 = sand.u32 %s36, 1
        %s551 = scalar_lea.sflag [#allocation6], %s550
        %s552 = sand.u32 %s96, 1
        %s553 = smul.addr %s552, 252
        %s554 = scalar_lea.vmem [#allocation7], %s553
        // Predicated region
        $region81: #{edge_processor.1} parent=71 // pred_check
          %p555 = pneg %p109
        $region82: #{edge_processor.1} parent=71 // pred_check_branch
          %557 = sbr.rel (%p555) target = $region84
        $region83: #{edge_processor.1} parent=71 // pred_region
          %558 = dma.done %s551, 4032
        $region84: #{edge_processor.1} parent=71 // pred_fallthru
          _
        // Predicated region
        $region85: #{edge_processor.1} parent=71 // pred_check
          %p559 = pneg %p130
        $region86: #{edge_processor.1} parent=71 // pred_check_branch
          %561 = sbr.rel (%p559) target = $region88
        $region87: #{edge_processor.1} parent=71 // pred_region
          %562 = dma.done [#allocation9], 1024
        $region88: #{edge_processor.1} parent=71 // pred_fallthru
          _
        // Predicated region
        $region89: #{edge_processor.1} parent=71 // pred_check
          %p563 = pneg %p151
        $region90: #{edge_processor.1} parent=71 // pred_check_branch
          %565 = sbr.rel (%p563) target = $region92
        $region91: #{edge_processor.1} parent=71 // pred_region
          %566 = dma.done [#allocation9], 1024
        $region92: #{edge_processor.1} parent=71 // pred_fallthru
          _
        // Predicated region
        $region93: #{edge_processor.1} parent=71 // pred_check
          %p567 = pneg %p172
        $region94: #{edge_processor.1} parent=71 // pred_check_branch
          %569 = sbr.rel (%p567) target = $region96
        $region95: #{edge_processor.1} parent=71 // pred_region
          %570 = dma.done [#allocation12], 1024
        $region96: #{edge_processor.1} parent=71 // pred_fallthru
          _
        // Predicated region
        $region97: #{edge_processor.1} parent=71 // pred_check
          %p571 = pneg %p214
        $region98: #{edge_processor.1} parent=71 // pred_check_branch
          %573 = sbr.rel (%p571) target = $region100
        $region99: #{edge_processor.1} parent=71 // pred_region
          %574 = dma.done [#allocation12], 1024
        $region100: #{edge_processor.1} parent=71 // pred_fallthru
          _
        // Predicated region
        $region101: #{edge_processor.1} parent=71 // pred_check
          %p575 = pneg %p256
        $region102: #{edge_processor.1} parent=71 // pred_check_branch
          %577 = sbr.rel (%p575) target = $region104
        $region103: #{edge_processor.1} parent=71 // pred_region
          %578 = dma.done [#allocation15], 1024
        $region104: #{edge_processor.1} parent=71 // pred_fallthru
          _
        %s579 = sand.u32 %s44, 1
        %s580 = scalar_lea.sflag [#allocation3], %s579
        %s581 = sand.u32 %s44, 1
        %s582 = smul.addr %s581, 252
        %s583 = scalar_lea.vmem [#allocation2], %s582
        %p584 = pneg %p57
        %p585 = pneg %p54
        %s586 = sand.u32 %s36, 1
        %s587 = scalar_lea.sflag [#allocation6], %s586
        %s588 = sand.u32 %s70, 1
        %s589 = smul.addr %s588, 252
        %s590 = scalar_lea.vmem [#allocation5], %s589
        %p591 = pneg %p83
        %p592 = pneg %p80
        %s593 = sand.u32 %s36, 1
        %s594 = scalar_lea.sflag [#allocation6], %s593
        %s595 = sand.u32 %s96, 1
        %s596 = smul.addr %s595, 252
        %s597 = scalar_lea.vmem [#allocation7], %s596
        %p598 = pneg %p109
        %p599 = pneg %p106
        %p600 = pneg %p130
        %p601 = pneg %p127
        %p602 = pneg %p151
        %p603 = pneg %p148
        %p604 = pneg %p172
        %p605 = pneg %p169
        %p606 = pneg %p193
        %p607 = pneg %p190
        %p608 = pneg %p214
        %p609 = pneg %p211
        %p610 = pneg %p235
        %p611 = pneg %p232
        %p612 = pneg %p256
        %p613 = pneg %p253
        %p614 = pneg %p277
        %p615 = pneg %p274
        %p616 = pneg %p298
        %p617 = pneg %p295
        %p618 = pneg %p319
        %p619 = pneg %p316
        %p620 = pneg %p345
        %p621 = pneg %p342
        %s622 = sand.u32 %s332, 1
        %s623 = scalar_lea.sflag [#allocation4], %s622
        %s624 = sand.u32 %s332, 1
        %s625 = smul.addr %s624, 252
        %s626 = scalar_lea.vmem [#allocation16], %s625
        %s627 = smul.u32 63, %s36
        %s628 = ssub.s32 125, %s627
        %p629 = scmp.lt.s32.totalorder %s628, 63
        %s630 = scalar_select %p629, %s628, 63
        %s631 = smul.u32 64, %s630
        %s632 = smul.u32 63, %s36
        %s633 = ssub.s32 125, %s632
        %p634 = scmp.lt.s32.totalorder %s633, 63
        %s635 = scalar_select %p634, %s633, 63
        %s636 = smul.u32 64, %s635
        %s637 = smul.u32 63, %s36
        %s638 = ssub.s32 125, %s637
        %p639 = scmp.lt.s32.totalorder %s638, 63
        %s640 = scalar_select %p639, %s638, 63
        %s641 = smul.u32 64, %s640
        %s642 = smul.u32 63, %s36
        %s643 = ssub.s32 125, %s642
        %p644 = scmp.lt.s32.totalorder %s643, 63
        %s645 = scalar_select %p644, %s643, 63
        %s646 = smul.u32 64, %s645
        %v648 = vld [vmem:[%s554] sm:$0xf]
        %v649 = vld [vmem:[%s554 + $0x4] sm:$0xf]
        %v650 = vld [vmem:[%s554 + $0x8] sm:$0xf]
        %v651 = vld [vmem:[%s554 + $0xc] sm:$0xf]
        %v652 = vld [vmem:[%s554 + $0x10] sm:$0xf]
        %v653 = vld [vmem:[%s554 + $0x14] sm:$0xf]
        %v654 = vld [vmem:[%s554 + $0x18] sm:$0xf]
        %v655 = vld [vmem:[%s554 + $0x1c] sm:$0xf]
        %v656 = vld [vmem:[%s554 + $0x20] sm:$0xf]
        %v657 = vld [vmem:[%s554 + $0x24] sm:$0xf]
        %v658 = vld [vmem:[%s554 + $0x28] sm:$0xf]
        %v659 = vld [vmem:[%s554 + $0x2c] sm:$0xf]
        %v660 = vld [vmem:[%s554 + $0x30] sm:$0xf]
        %v661 = vld [vmem:[%s554 + $0x34] sm:$0xf]
        %v662 = vld [vmem:[%s554 + $0x38] sm:$0xf]
        %v663 = vld [vmem:[%s554 + $0x3c] sm:$0xf]
        %v664 = vld [vmem:[%s554 + $0x40] sm:$0xf]
        %v665 = vld [vmem:[%s554 + $0x44] sm:$0xf]
        %v666 = vld [vmem:[%s554 + $0x48] sm:$0xf]
        %v667 = vld [vmem:[%s554 + $0x4c] sm:$0xf]
        %v668 = vld [vmem:[%s554 + $0x50] sm:$0xf]
        %v669 = vld [vmem:[%s554 + $0x54] sm:$0xf]
        %v670 = vld [vmem:[%s554 + $0x58] sm:$0xf]
        %v671 = vld [vmem:[%s554 + $0x5c] sm:$0xf]
        %v672 = vld [vmem:[%s554 + $0x60] sm:$0xf]
        %v673 = vld [vmem:[%s554 + $0x64] sm:$0xf]
        %v674 = vld [vmem:[%s554 + $0x68] sm:$0xf]
        %v675 = vld [vmem:[%s554 + $0x6c] sm:$0xf]
        %v676 = vld [vmem:[%s554 + $0x70] sm:$0xf]
        %v677 = vld [vmem:[%s554 + $0x74] sm:$0xf]
        %v678 = vld [vmem:[%s554 + $0x78] sm:$0xf]
        %v679 = vld [vmem:[%s554 + $0x7c] sm:$0xf]
        %v680 = vld [vmem:[%s554 + $0x80] sm:$0xf]
        %v681 = vld [vmem:[%s554 + $0x84] sm:$0xf]
        %v682 = vld [vmem:[%s554 + $0x88] sm:$0xf]
        %v683 = vld [vmem:[%s554 + $0x8c] sm:$0xf]
        %v684 = vld [vmem:[%s554 + $0x90] sm:$0xf]
        %v685 = vld [vmem:[%s554 + $0x94] sm:$0xf]
        %v686 = vld [vmem:[%s554 + $0x98] sm:$0xf]
        %v687 = vld [vmem:[%s554 + $0x9c] sm:$0xf]
        %v688 = vld [vmem:[%s554 + $0xa0] sm:$0xf]
        %v689 = vld [vmem:[%s554 + $0xa4] sm:$0xf]
        %v690 = vld [vmem:[%s554 + $0xa8] sm:$0xf]
        %v691 = vld [vmem:[%s554 + $0xac] sm:$0xf]
        %v692 = vld [vmem:[%s554 + $0xb0] sm:$0xf]
        %v693 = vld [vmem:[%s554 + $0xb4] sm:$0xf]
        %v694 = vld [vmem:[%s554 + $0xb8] sm:$0xf]
        %v695 = vld [vmem:[%s554 + $0xbc] sm:$0xf]
        %v696 = vld [vmem:[%s554 + $0xc0] sm:$0xf]
        %v697 = vld [vmem:[%s554 + $0xc4] sm:$0xf]
        %v698 = vld [vmem:[%s554 + $0xc8] sm:$0xf]
        %v699 = vld [vmem:[%s554 + $0xcc] sm:$0xf]
        %v700 = vld [vmem:[%s554 + $0xd0] sm:$0xf]
        %v701 = vld [vmem:[%s554 + $0xd4] sm:$0xf]
        %v702 = vld [vmem:[%s554 + $0xd8] sm:$0xf]
        %v703 = vld [vmem:[%s554 + $0xdc] sm:$0xf]
        %v704 = vld [vmem:[%s554 + $0xe0] sm:$0xf]
        %v705 = vld [vmem:[%s554 + $0xe4] sm:$0xf]
        %v706 = vld [vmem:[%s554 + $0xe8] sm:$0xf]
        %v707 = vld [vmem:[%s554 + $0xec] sm:$0xf]
        %v708 = vld [vmem:[%s554 + $0xf0] sm:$0xf]
        %v709 = vld [vmem:[%s554 + $0xf4] sm:$0xf]
        %v710 = vld [vmem:[%s554 + $0xf8] sm:$0xf]
        %v711 = vunpack.c.l.bf16 %v648
        %v712 = vunpack.c.l.bf16 %v649
        %v713 = vunpack.c.l.bf16 %v650
        %v714 = vunpack.c.l.bf16 %v651
        %v715 = vunpack.c.l.bf16 %v652
        %v716 = vunpack.c.l.bf16 %v653
        %v717 = vunpack.c.l.bf16 %v654
        %v718 = vunpack.c.l.bf16 %v655
        %v719 = vunpack.c.l.bf16 %v656
        %v720 = vunpack.c.l.bf16 %v657
        %v721 = vunpack.c.l.bf16 %v658
        %v722 = vunpack.c.l.bf16 %v659
        %v723 = vunpack.c.l.bf16 %v660
        %v724 = vunpack.c.l.bf16 %v661
        %v725 = vunpack.c.l.bf16 %v662
        %v726 = vunpack.c.l.bf16 %v663
        %v727 = vunpack.c.l.bf16 %v664
        %v728 = vunpack.c.l.bf16 %v665
        %v729 = vunpack.c.l.bf16 %v666
        %v730 = vunpack.c.l.bf16 %v667
        %v731 = vunpack.c.l.bf16 %v668
        %v732 = vunpack.c.l.bf16 %v669
        %v733 = vunpack.c.l.bf16 %v670
        %v734 = vunpack.c.l.bf16 %v671
        %v735 = vunpack.c.l.bf16 %v672
        %v736 = vunpack.c.l.bf16 %v673
        %v737 = vunpack.c.l.bf16 %v674
        %v738 = vunpack.c.l.bf16 %v675
        %v739 = vunpack.c.l.bf16 %v676
        %v740 = vunpack.c.l.bf16 %v677
        %v741 = vunpack.c.l.bf16 %v678
        %v742 = vunpack.c.l.bf16 %v679
        %v743 = vunpack.c.l.bf16 %v680
        %v744 = vunpack.c.l.bf16 %v681
        %v745 = vunpack.c.l.bf16 %v682
        %v746 = vunpack.c.l.bf16 %v683
        %v747 = vunpack.c.l.bf16 %v684
        %v748 = vunpack.c.l.bf16 %v685
        %v749 = vunpack.c.l.bf16 %v686
        %v750 = vunpack.c.l.bf16 %v687
        %v751 = vunpack.c.l.bf16 %v688
        %v752 = vunpack.c.l.bf16 %v689
        %v753 = vunpack.c.l.bf16 %v690
        %v754 = vunpack.c.l.bf16 %v691
        %v755 = vunpack.c.l.bf16 %v692
        %v756 = vunpack.c.l.bf16 %v693
        %v757 = vunpack.c.l.bf16 %v694
        %v758 = vunpack.c.l.bf16 %v695
        %v759 = vunpack.c.l.bf16 %v696
        %v760 = vunpack.c.l.bf16 %v697
        %v761 = vunpack.c.l.bf16 %v698
        %v762 = vunpack.c.l.bf16 %v699
        %v763 = vunpack.c.l.bf16 %v700
        %v764 = vunpack.c.l.bf16 %v701
        %v765 = vunpack.c.l.bf16 %v702
        %v766 = vunpack.c.l.bf16 %v703
        %v767 = vunpack.c.l.bf16 %v704
        %v768 = vunpack.c.l.bf16 %v705
        %v769 = vunpack.c.l.bf16 %v706
        %v770 = vunpack.c.l.bf16 %v707
        %v771 = vunpack.c.l.bf16 %v708
        %v772 = vunpack.c.l.bf16 %v709
        %v773 = vunpack.c.l.bf16 %v710
        %v774 = vld [vmem:[%s536] sm:$0xf]
        %v775 = vld [vmem:[%s536 + $0x4] sm:$0xf]
        %v776 = vld [vmem:[%s536 + $0x8] sm:$0xf]
        %v777 = vld [vmem:[%s536 + $0xc] sm:$0xf]
        %v778 = vld [vmem:[%s536 + $0x10] sm:$0xf]
        %v779 = vld [vmem:[%s536 + $0x14] sm:$0xf]
        %v780 = vld [vmem:[%s536 + $0x18] sm:$0xf]
        %v781 = vld [vmem:[%s536 + $0x1c] sm:$0xf]
        %v782 = vld [vmem:[%s536 + $0x20] sm:$0xf]
        %v783 = vld [vmem:[%s536 + $0x24] sm:$0xf]
        %v784 = vld [vmem:[%s536 + $0x28] sm:$0xf]
        %v785 = vld [vmem:[%s536 + $0x2c] sm:$0xf]
        %v786 = vld [vmem:[%s536 + $0x30] sm:$0xf]
        %v787 = vld [vmem:[%s536 + $0x34] sm:$0xf]
        %v788 = vld [vmem:[%s536 + $0x38] sm:$0xf]
        %v789 = vld [vmem:[%s536 + $0x3c] sm:$0xf]
        %v790 = vld [vmem:[%s536 + $0x40] sm:$0xf]
        %v791 = vld [vmem:[%s536 + $0x44] sm:$0xf]
        %v792 = vld [vmem:[%s536 + $0x48] sm:$0xf]
        %v793 = vld [vmem:[%s536 + $0x4c] sm:$0xf]
        %v794 = vld [vmem:[%s536 + $0x50] sm:$0xf]
        %v795 = vld [vmem:[%s536 + $0x54] sm:$0xf]
        %v796 = vld [vmem:[%s536 + $0x58] sm:$0xf]
        %v797 = vld [vmem:[%s536 + $0x5c] sm:$0xf]
        %v798 = vld [vmem:[%s536 + $0x60] sm:$0xf]
        %v799 = vld [vmem:[%s536 + $0x64] sm:$0xf]
        %v800 = vld [vmem:[%s536 + $0x68] sm:$0xf]
        %v801 = vld [vmem:[%s536 + $0x6c] sm:$0xf]
        %v802 = vld [vmem:[%s536 + $0x70] sm:$0xf]
        %v803 = vld [vmem:[%s536 + $0x74] sm:$0xf]
        %v804 = vld [vmem:[%s536 + $0x78] sm:$0xf]
        %v805 = vld [vmem:[%s536 + $0x7c] sm:$0xf]
        %v806 = vld [vmem:[%s536 + $0x80] sm:$0xf]
        %v807 = vld [vmem:[%s536 + $0x84] sm:$0xf]
        %v808 = vld [vmem:[%s536 + $0x88] sm:$0xf]
        %v809 = vld [vmem:[%s536 + $0x8c] sm:$0xf]
        %v810 = vld [vmem:[%s536 + $0x90] sm:$0xf]
        %v811 = vld [vmem:[%s536 + $0x94] sm:$0xf]
        %v812 = vld [vmem:[%s536 + $0x98] sm:$0xf]
        %v813 = vld [vmem:[%s536 + $0x9c] sm:$0xf]
        %v814 = vld [vmem:[%s536 + $0xa0] sm:$0xf]
        %v815 = vld [vmem:[%s536 + $0xa4] sm:$0xf]
        %v816 = vld [vmem:[%s536 + $0xa8] sm:$0xf]
        %v817 = vld [vmem:[%s536 + $0xac] sm:$0xf]
        %v818 = vld [vmem:[%s536 + $0xb0] sm:$0xf]
        %v819 = vld [vmem:[%s536 + $0xb4] sm:$0xf]
        %v820 = vld [vmem:[%s536 + $0xb8] sm:$0xf]
        %v821 = vld [vmem:[%s536 + $0xbc] sm:$0xf]
        %v822 = vld [vmem:[%s536 + $0xc0] sm:$0xf]
        %v823 = vld [vmem:[%s536 + $0xc4] sm:$0xf]
        %v824 = vld [vmem:[%s536 + $0xc8] sm:$0xf]
        %v825 = vld [vmem:[%s536 + $0xcc] sm:$0xf]
        %v826 = vld [vmem:[%s536 + $0xd0] sm:$0xf]
        %v827 = vld [vmem:[%s536 + $0xd4] sm:$0xf]
        %v828 = vld [vmem:[%s536 + $0xd8] sm:$0xf]
        %v829 = vld [vmem:[%s536 + $0xdc] sm:$0xf]
        %v830 = vld [vmem:[%s536 + $0xe0] sm:$0xf]
        %v831 = vld [vmem:[%s536 + $0xe4] sm:$0xf]
        %v832 = vld [vmem:[%s536 + $0xe8] sm:$0xf]
        %v833 = vld [vmem:[%s536 + $0xec] sm:$0xf]
        %v834 = vld [vmem:[%s536 + $0xf0] sm:$0xf]
        %v835 = vld [vmem:[%s536 + $0xf4] sm:$0xf]
        %v836 = vld [vmem:[%s536 + $0xf8] sm:$0xf]
        %v837 = vld [vmem:[#allocation8] sm:$0xf]
        %v838 = vld [vmem:[#allocation8 + $0x4] sm:$0xf]
        %v839 = vld [vmem:[#allocation8 + $0x8] sm:$0xf]
        %v840 = vld [vmem:[#allocation8 + $0xc] sm:$0xf]
        %v841 = vld [vmem:[#allocation8 + $0x10] sm:$0xf]
        %v842 = vld [vmem:[#allocation8 + $0x14] sm:$0xf]
        %v843 = vld [vmem:[#allocation8 + $0x18] sm:$0xf]
        %v844 = vld [vmem:[#allocation8 + $0x1c] sm:$0xf]
        %v845 = vld [vmem:[#allocation8 + $0x20] sm:$0xf]
        %v846 = vld [vmem:[#allocation8 + $0x24] sm:$0xf]
        %v847 = vld [vmem:[#allocation8 + $0x28] sm:$0xf]
        %v848 = vld [vmem:[#allocation8 + $0x2c] sm:$0xf]
        %v849 = vld [vmem:[#allocation8 + $0x30] sm:$0xf]
        %v850 = vld [vmem:[#allocation8 + $0x34] sm:$0xf]
        %v851 = vld [vmem:[#allocation8 + $0x38] sm:$0xf]
        %v852 = vld [vmem:[#allocation8 + $0x3c] sm:$0xf]
        %v853 = vld [vmem:[%s545] sm:$0xf]
        %v854 = vld [vmem:[%s545 + $0x4] sm:$0xf]
        %v855 = vld [vmem:[%s545 + $0x8] sm:$0xf]
        %v856 = vld [vmem:[%s545 + $0xc] sm:$0xf]
        %v857 = vld [vmem:[%s545 + $0x10] sm:$0xf]
        %v858 = vld [vmem:[%s545 + $0x14] sm:$0xf]
        %v859 = vld [vmem:[%s545 + $0x18] sm:$0xf]
        %v860 = vld [vmem:[%s545 + $0x1c] sm:$0xf]
        %v861 = vld [vmem:[%s545 + $0x20] sm:$0xf]
        %v862 = vld [vmem:[%s545 + $0x24] sm:$0xf]
        %v863 = vld [vmem:[%s545 + $0x28] sm:$0xf]
        %v864 = vld [vmem:[%s545 + $0x2c] sm:$0xf]
        %v865 = vld [vmem:[%s545 + $0x30] sm:$0xf]
        %v866 = vld [vmem:[%s545 + $0x34] sm:$0xf]
        %v867 = vld [vmem:[%s545 + $0x38] sm:$0xf]
        %v868 = vld [vmem:[%s545 + $0x3c] sm:$0xf]
        %v869 = vld [vmem:[%s545 + $0x40] sm:$0xf]
        %v870 = vld [vmem:[%s545 + $0x44] sm:$0xf]
        %v871 = vld [vmem:[%s545 + $0x48] sm:$0xf]
        %v872 = vld [vmem:[%s545 + $0x4c] sm:$0xf]
        %v873 = vld [vmem:[%s545 + $0x50] sm:$0xf]
        %v874 = vld [vmem:[%s545 + $0x54] sm:$0xf]
        %v875 = vld [vmem:[%s545 + $0x58] sm:$0xf]
        %v876 = vld [vmem:[%s545 + $0x5c] sm:$0xf]
        %v877 = vld [vmem:[%s545 + $0x60] sm:$0xf]
        %v878 = vld [vmem:[%s545 + $0x64] sm:$0xf]
        %v879 = vld [vmem:[%s545 + $0x68] sm:$0xf]
        %v880 = vld [vmem:[%s545 + $0x6c] sm:$0xf]
        %v881 = vld [vmem:[%s545 + $0x70] sm:$0xf]
        %v882 = vld [vmem:[%s545 + $0x74] sm:$0xf]
        %v883 = vld [vmem:[%s545 + $0x78] sm:$0xf]
        %v884 = vld [vmem:[%s545 + $0x7c] sm:$0xf]
        %v885 = vld [vmem:[%s545 + $0x80] sm:$0xf]
        %v886 = vld [vmem:[%s545 + $0x84] sm:$0xf]
        %v887 = vld [vmem:[%s545 + $0x88] sm:$0xf]
        %v888 = vld [vmem:[%s545 + $0x8c] sm:$0xf]
        %v889 = vld [vmem:[%s545 + $0x90] sm:$0xf]
        %v890 = vld [vmem:[%s545 + $0x94] sm:$0xf]
        %v891 = vld [vmem:[%s545 + $0x98] sm:$0xf]
        %v892 = vld [vmem:[%s545 + $0x9c] sm:$0xf]
        %v893 = vld [vmem:[%s545 + $0xa0] sm:$0xf]
        %v894 = vld [vmem:[%s545 + $0xa4] sm:$0xf]
        %v895 = vld [vmem:[%s545 + $0xa8] sm:$0xf]
        %v896 = vld [vmem:[%s545 + $0xac] sm:$0xf]
        %v897 = vld [vmem:[%s545 + $0xb0] sm:$0xf]
        %v898 = vld [vmem:[%s545 + $0xb4] sm:$0xf]
        %v899 = vld [vmem:[%s545 + $0xb8] sm:$0xf]
        %v900 = vld [vmem:[%s545 + $0xbc] sm:$0xf]
        %v901 = vld [vmem:[%s545 + $0xc0] sm:$0xf]
        %v902 = vld [vmem:[%s545 + $0xc4] sm:$0xf]
        %v903 = vld [vmem:[%s545 + $0xc8] sm:$0xf]
        %v904 = vld [vmem:[%s545 + $0xcc] sm:$0xf]
        %v905 = vld [vmem:[%s545 + $0xd0] sm:$0xf]
        %v906 = vld [vmem:[%s545 + $0xd4] sm:$0xf]
        %v907 = vld [vmem:[%s545 + $0xd8] sm:$0xf]
        %v908 = vld [vmem:[%s545 + $0xdc] sm:$0xf]
        %v909 = vld [vmem:[%s545 + $0xe0] sm:$0xf]
        %v910 = vld [vmem:[%s545 + $0xe4] sm:$0xf]
        %v911 = vld [vmem:[%s545 + $0xe8] sm:$0xf]
        %v912 = vld [vmem:[%s545 + $0xec] sm:$0xf]
        %v913 = vld [vmem:[%s545 + $0xf0] sm:$0xf]
        %v914 = vld [vmem:[%s545 + $0xf4] sm:$0xf]
        %v915 = vld [vmem:[%s545 + $0xf8] sm:$0xf]
        %v916 = vld [vmem:[#allocation10] sm:$0xf]
        %v917 = vld [vmem:[#allocation10 + $0x4] sm:$0xf]
        %v918 = vld [vmem:[#allocation10 + $0x8] sm:$0xf]
        %v919 = vld [vmem:[#allocation10 + $0xc] sm:$0xf]
        %v920 = vld [vmem:[#allocation10 + $0x10] sm:$0xf]
        %v921 = vld [vmem:[#allocation10 + $0x14] sm:$0xf]
        %v922 = vld [vmem:[#allocation10 + $0x18] sm:$0xf]
        %v923 = vld [vmem:[#allocation10 + $0x1c] sm:$0xf]
        %v924 = vld [vmem:[#allocation10 + $0x20] sm:$0xf]
        %v925 = vld [vmem:[#allocation10 + $0x24] sm:$0xf]
        %v926 = vld [vmem:[#allocation10 + $0x28] sm:$0xf]
        %v927 = vld [vmem:[#allocation10 + $0x2c] sm:$0xf]
        %v928 = vld [vmem:[#allocation10 + $0x30] sm:$0xf]
        %v929 = vld [vmem:[#allocation10 + $0x34] sm:$0xf]
        %v930 = vld [vmem:[#allocation10 + $0x38] sm:$0xf]
        %v931 = vld [vmem:[#allocation10 + $0x3c] sm:$0xf]
        %v995 = vunpack.c.l.b16 %v853
        %v996 = vunpack.c.l.b16 %v854
        %v997 = vunpack.c.l.b16 %v855
        %v998 = vunpack.c.l.b16 %v856
        %v999 = vunpack.c.l.b16 %v857
        %v1000 = vunpack.c.l.b16 %v858
        %v1001 = vunpack.c.l.b16 %v859
        %v1002 = vunpack.c.l.b16 %v860
        %v1003 = vunpack.c.l.b16 %v861
        %v1004 = vunpack.c.l.b16 %v862
        %v1005 = vunpack.c.l.b16 %v863
        %v1006 = vunpack.c.l.b16 %v864
        %v1007 = vunpack.c.l.b16 %v865
        %v1008 = vunpack.c.l.b16 %v866
        %v1009 = vunpack.c.l.b16 %v867
        %v1010 = vunpack.c.l.b16 %v868
        %v1011 = vunpack.c.l.b16 %v869
        %v1012 = vunpack.c.l.b16 %v870
        %v1013 = vunpack.c.l.b16 %v871
        %v1014 = vunpack.c.l.b16 %v872
        %v1015 = vunpack.c.l.b16 %v873
        %v1016 = vunpack.c.l.b16 %v874
        %v1017 = vunpack.c.l.b16 %v875
        %v1018 = vunpack.c.l.b16 %v876
        %v1019 = vunpack.c.l.b16 %v877
        %v1020 = vunpack.c.l.b16 %v878
        %v1021 = vunpack.c.l.b16 %v879
        %v1022 = vunpack.c.l.b16 %v880
        %v1023 = vunpack.c.l.b16 %v881
        %v1024 = vunpack.c.l.b16 %v882
        %v1025 = vunpack.c.l.b16 %v883
        %v1026 = vunpack.c.l.b16 %v884
        %v1027 = vunpack.c.l.b16 %v885
        %v1028 = vunpack.c.l.b16 %v886
        %v1029 = vunpack.c.l.b16 %v887
        %v1030 = vunpack.c.l.b16 %v888
        %v1031 = vunpack.c.l.b16 %v889
        %v1032 = vunpack.c.l.b16 %v890
        %v1033 = vunpack.c.l.b16 %v891
        %v1034 = vunpack.c.l.b16 %v892
        %v1035 = vunpack.c.l.b16 %v893
        %v1036 = vunpack.c.l.b16 %v894
        %v1037 = vunpack.c.l.b16 %v895
        %v1038 = vunpack.c.l.b16 %v896
        %v1039 = vunpack.c.l.b16 %v897
        %v1040 = vunpack.c.l.b16 %v898
        %v1041 = vunpack.c.l.b16 %v899
        %v1042 = vunpack.c.l.b16 %v900
        %v1043 = vunpack.c.l.b16 %v901
        %v1044 = vunpack.c.l.b16 %v902
        %v1045 = vunpack.c.l.b16 %v903
        %v1046 = vunpack.c.l.b16 %v904
        %v1047 = vunpack.c.l.b16 %v905
        %v1048 = vunpack.c.l.b16 %v906
        %v1049 = vunpack.c.l.b16 %v907
        %v1050 = vunpack.c.l.b16 %v908
        %v1051 = vunpack.c.l.b16 %v909
        %v1052 = vunpack.c.l.b16 %v910
        %v1053 = vunpack.c.l.b16 %v911
        %v1054 = vunpack.c.l.b16 %v912
        %v1055 = vunpack.c.l.b16 %v913
        %v1056 = vunpack.c.l.b16 %v914
        %v1057 = vunpack.c.l.b16 %v915
        %v1058 = vpack.c.b16 %v996, %v995
        %v1059 = vpack.c.b16 %v998, %v997
        %v1060 = vpack.c.b16 %v1000, %v999
        %v1061 = vpack.c.b16 %v1002, %v1001
        %v1062 = vpack.c.b16 %v1004, %v1003
        %v1063 = vpack.c.b16 %v1006, %v1005
        %v1064 = vpack.c.b16 %v1008, %v1007
        %v1065 = vpack.c.b16 %v1010, %v1009
        %v1066 = vpack.c.b16 %v1012, %v1011
        %v1067 = vpack.c.b16 %v1014, %v1013
        %v1068 = vpack.c.b16 %v1016, %v1015
        %v1069 = vpack.c.b16 %v1018, %v1017
        %v1070 = vpack.c.b16 %v1020, %v1019
        %v1071 = vpack.c.b16 %v1022, %v1021
        %v1072 = vpack.c.b16 %v1024, %v1023
        %v1073 = vpack.c.b16 %v1026, %v1025
        %v1074 = vpack.c.b16 %v1028, %v1027
        %v1075 = vpack.c.b16 %v1030, %v1029
        %v1076 = vpack.c.b16 %v1032, %v1031
        %v1077 = vpack.c.b16 %v1034, %v1033
        %v1078 = vpack.c.b16 %v1036, %v1035
        %v1079 = vpack.c.b16 %v1038, %v1037
        %v1080 = vpack.c.b16 %v1040, %v1039
        %v1081 = vpack.c.b16 %v1042, %v1041
        %v1082 = vpack.c.b16 %v1044, %v1043
        %v1083 = vpack.c.b16 %v1046, %v1045
        %v1084 = vpack.c.b16 %v1048, %v1047
        %v1085 = vpack.c.b16 %v1050, %v1049
        %v1086 = vpack.c.b16 %v1052, %v1051
        %v1087 = vpack.c.b16 %v1054, %v1053
        %v1088 = vpack.c.b16 %v1056, %v1055
        %v1089 = vpack.c.b16 %v1057, %v1057
        %v1138 = vunpack.c.l.b16 %v916
        %v1139 = vunpack.c.l.b16 %v917
        %v1140 = vunpack.c.l.b16 %v918
        %v1141 = vunpack.c.l.b16 %v919
        %v1142 = vunpack.c.l.b16 %v920
        %v1143 = vunpack.c.l.b16 %v921
        %v1144 = vunpack.c.l.b16 %v922
        %v1145 = vunpack.c.l.b16 %v923
        %v1146 = vunpack.c.l.b16 %v924
        %v1147 = vunpack.c.l.b16 %v925
        %v1148 = vunpack.c.l.b16 %v926
        %v1149 = vunpack.c.l.b16 %v927
        %v1150 = vunpack.c.l.b16 %v928
        %v1151 = vunpack.c.l.b16 %v929
        %v1152 = vunpack.c.l.b16 %v930
        %v1153 = vunpack.c.l.b16 %v931
        %v1154 = vpack.c.b16 %v1139, %v1138
        %v1155 = vpack.c.b16 %v1141, %v1140
        %v1156 = vpack.c.b16 %v1143, %v1142
        %v1157 = vpack.c.b16 %v1145, %v1144
        %v1158 = vpack.c.b16 %v1147, %v1146
        %v1159 = vpack.c.b16 %v1149, %v1148
        %v1160 = vpack.c.b16 %v1151, %v1150
        %v1161 = vpack.c.b16 %v1153, %v1152
        %1170 = vmatprep.subr.bf16.mxu0 0
        %1171 = vmatpush1.bf16.msra.mxu0 %v1154
        %1172 = vmatprep.subr.bf16.mxu0 0
        %1173 = vmatpush1.bf16.msra.mxu0 %v1155
        %1174 = vmatprep.subr.bf16.mxu0 0
        %1175 = vmatpush1.bf16.msra.mxu0 %v1156
        %1176 = vmatprep.subr.bf16.mxu0 0
        %1177 = vmatpush1.bf16.msra.mxu0 %v1157
        %1178 = vmatprep.subr.bf16.mxu0 0
        %1179 = vmatpush1.bf16.msra.mxu0 %v1158
        %1180 = vmatprep.subr.bf16.mxu0 0
        %1181 = vmatpush1.bf16.msra.mxu0 %v1159
        %1182 = vmatprep.subr.bf16.mxu0 0
        %1183 = vmatpush1.bf16.msra.mxu0 %v1160
        %1184 = vmatprep.subr.bf16.mxu0 0
        %1185 = vmatpush1.bf16.msra.mxu0 %v1161
        %1186 = vmatprep.subr.bf16.mxu0 0
        %1187 = vmatpush1.bf16.msra.mxu0 0
        %1188 = vmatprep.subr.bf16.mxu0 0
        %1189 = vmatpush1.bf16.msra.mxu0 0
        %1190 = vmatprep.subr.bf16.mxu0 0
        %1191 = vmatpush1.bf16.msra.mxu0 0
        %1192 = vmatprep.subr.bf16.mxu0 0
        %1193 = vmatpush1.bf16.msra.mxu0 0
        %1194 = vmatprep.subr.bf16.mxu0 0
        %1195 = vmatpush1.bf16.msra.mxu0 0
        %1196 = vmatprep.subr.bf16.mxu0 0
        %1197 = vmatpush1.bf16.msra.mxu0 0
        %1198 = vmatprep.subr.bf16.mxu0 0
        %1199 = vmatpush1.bf16.msra.mxu0 0
        %1200 = vmatprep.subr.bf16.mxu0 0
        %1201 = vmatpush1.bf16.msra.mxu0 0
        %1202 = vmatprep.mubr.bf16.mxu0 0
        %1203 = vmatmul.mubr.bf16.gmra.mrb[0].mxu0 %v1058
        %v1204 = vpop.f32.mrb[0].mxu0
        %v1205 = vadd.f32 0.0, %v1204
        %v1206 = vpop.f32.mrb[0].mxu0
        %v1207 = vpop.f32.mrb[0].mxu0
        %v1208 = vadd.f32 0.0, %v1207
        %v1209 = vpop.f32.mrb[0].mxu0
        %1210 = vmatprep.mubr.bf16.mxu0 0
        %1211 = vmatmul.mubr.bf16.gmra.mrb[0].mxu0 %v1059
        %v1212 = vpop.f32.mrb[0].mxu0
        %v1213 = vadd.f32 0.0, %v1212
        %v1214 = vpop.f32.mrb[0].mxu0
        %v1215 = vpop.f32.mrb[0].mxu0
        %v1216 = vadd.f32 0.0, %v1215
        %v1217 = vpop.f32.mrb[0].mxu0
        %1218 = vmatprep.mubr.bf16.mxu0 0
        %1219 = vmatmul.mubr.bf16.gmra.mrb[0].mxu0 %v1060
        %v1220 = vpop.f32.mrb[0].mxu0
        %v1221 = vadd.f32 0.0, %v1220
        %v1222 = vpop.f32.mrb[0].mxu0
        %v1223 = vpop.f32.mrb[0].mxu0
        %v1224 = vadd.f32 0.0, %v1223
        %v1225 = vpop.f32.mrb[0].mxu0
        %1226 = vmatprep.mubr.bf16.mxu0 0
        %1227 = vmatmul.mubr.bf16.gmra.mrb[0].mxu0 %v1061
        %v1228 = vpop.f32.mrb[0].mxu0
        %v1229 = vadd.f32 0.0, %v1228
        %v1230 = vpop.f32.mrb[0].mxu0
        %v1231 = vpop.f32.mrb[0].mxu0
        %v1232 = vadd.f32 0.0, %v1231
        %v1233 = vpop.f32.mrb[0].mxu0
        %1234 = vmatprep.mubr.bf16.mxu0 0
        %1235 = vmatmul.mubr.bf16.gmra.mrb[0].mxu0 %v1062
        %v1236 = vpop.f32.mrb[0].mxu0
        %v1237 = vadd.f32 0.0, %v1236
        %v1238 = vpop.f32.mrb[0].mxu0
        %v1239 = vpop.f32.mrb[0].mxu0
        %v1240 = vadd.f32 0.0, %v1239
        %v1241 = vpop.f32.mrb[0].mxu0
        %1242 = vmatprep.mubr.bf16.mxu0 0
        %1243 = vmatmul.mubr.bf16.gmra.mrb[0].mxu0 %v1063
        %v1244 = vpop.f32.mrb[0].mxu0
        %v1245 = vadd.f32 0.0, %v1244
        %v1246 = vpop.f32.mrb[0].mxu0
        %v1247 = vpop.f32.mrb[0].mxu0
        %v1248 = vadd.f32 0.0, %v1247
        %v1249 = vpop.f32.mrb[0].mxu0
        %1250 = vmatprep.mubr.bf16.mxu0 0
        %1251 = vmatmul.mubr.bf16.gmra.mrb[0].mxu0 %v1064
        %v1252 = vpop.f32.mrb[0].mxu0
        %v1253 = vadd.f32 0.0, %v1252
        %v1254 = vpop.f32.mrb[0].mxu0
        %v1255 = vpop.f32.mrb[0].mxu0
        %v1256 = vadd.f32 0.0, %v1255
        %v1257 = vpop.f32.mrb[0].mxu0
        %1258 = vmatprep.mubr.bf16.mxu0 0
        %1259 = vmatmul.mubr.bf16.gmra.mrb[0].mxu0 %v1065
        %v1260 = vpop.f32.mrb[0].mxu0
        %v1261 = vadd.f32 0.0, %v1260
        %v1262 = vpop.f32.mrb[0].mxu0
        %v1263 = vpop.f32.mrb[0].mxu0
        %v1264 = vadd.f32 0.0, %v1263
        %v1265 = vpop.f32.mrb[0].mxu0
        %1266 = vmatprep.mubr.bf16.mxu0 0
        %1267 = vmatmul.mubr.bf16.gmra.mrb[0].mxu0 %v1066
        %v1268 = vpop.f32.mrb[0].mxu0
        %v1269 = vadd.f32 0.0, %v1268
        %v1270 = vpop.f32.mrb[0].mxu0
        %v1271 = vpop.f32.mrb[0].mxu0
        %v1272 = vadd.f32 0.0, %v1271
        %v1273 = vpop.f32.mrb[0].mxu0
        %1274 = vmatprep.mubr.bf16.mxu0 0
        %1275 = vmatmul.mubr.bf16.gmra.mrb[0].mxu0 %v1067
        %v1276 = vpop.f32.mrb[0].mxu0
        %v1277 = vadd.f32 0.0, %v1276
        %v1278 = vpop.f32.mrb[0].mxu0
        %v1279 = vpop.f32.mrb[0].mxu0
        %v1280 = vadd.f32 0.0, %v1279
        %v1281 = vpop.f32.mrb[0].mxu0
        %1282 = vmatprep.mubr.bf16.mxu0 0
        %1283 = vmatmul.mubr.bf16.gmra.mrb[0].mxu0 %v1068
        %v1284 = vpop.f32.mrb[0].mxu0
        %v1285 = vadd.f32 0.0, %v1284
        %v1286 = vpop.f32.mrb[0].mxu0
        %v1287 = vpop.f32.mrb[0].mxu0
        %v1288 = vadd.f32 0.0, %v1287
        %v1289 = vpop.f32.mrb[0].mxu0
        %1290 = vmatprep.mubr.bf16.mxu0 0
        %1291 = vmatmul.mubr.bf16.gmra.mrb[0].mxu0 %v1069
        %v1292 = vpop.f32.mrb[0].mxu0
        %v1293 = vadd.f32 0.0, %v1292
        %v1294 = vpop.f32.mrb[0].mxu0
        %v1295 = vpop.f32.mrb[0].mxu0
        %v1296 = vadd.f32 0.0, %v1295
        %v1297 = vpop.f32.mrb[0].mxu0
        %1298 = vmatprep.mubr.bf16.mxu0 0
        %1299 = vmatmul.mubr.bf16.gmra.mrb[0].mxu0 %v1070
        %v1300 = vpop.f32.mrb[0].mxu0
        %v1301 = vadd.f32 0.0, %v1300
        %v1302 = vpop.f32.mrb[0].mxu0
        %v1303 = vpop.f32.mrb[0].mxu0
        %v1304 = vadd.f32 0.0, %v1303
        %v1305 = vpop.f32.mrb[0].mxu0
        %1306 = vmatprep.mubr.bf16.mxu0 0
        %1307 = vmatmul.mubr.bf16.gmra.mrb[0].mxu0 %v1071
        %v1308 = vpop.f32.mrb[0].mxu0
        %v1309 = vadd.f32 0.0, %v1308
        %v1310 = vpop.f32.mrb[0].mxu0
        %v1311 = vpop.f32.mrb[0].mxu0
        %v1312 = vadd.f32 0.0, %v1311
        %v1313 = vpop.f32.mrb[0].mxu0
        %1314 = vmatprep.mubr.bf16.mxu0 0
        %1315 = vmatmul.mubr.bf16.gmra.mrb[0].mxu0 %v1072
        %v1316 = vpop.f32.mrb[0].mxu0
        %v1317 = vadd.f32 0.0, %v1316
        %v1318 = vpop.f32.mrb[0].mxu0
        %v1319 = vpop.f32.mrb[0].mxu0
        %v1320 = vadd.f32 0.0, %v1319
        %v1321 = vpop.f32.mrb[0].mxu0
        %1322 = vmatprep.mubr.bf16.mxu0 0
        %1323 = vmatmul.mubr.bf16.gmra.mrb[0].mxu0 %v1073
        %v1324 = vpop.f32.mrb[0].mxu0
        %v1325 = vadd.f32 0.0, %v1324
        %v1326 = vpop.f32.mrb[0].mxu0
        %v1327 = vpop.f32.mrb[0].mxu0
        %v1328 = vadd.f32 0.0, %v1327
        %v1329 = vpop.f32.mrb[0].mxu0
        %1330 = vmatprep.mubr.bf16.mxu0 0
        %1331 = vmatmul.mubr.bf16.gmra.mrb[0].mxu0 %v1074
        %v1332 = vpop.f32.mrb[0].mxu0
        %v1333 = vadd.f32 0.0, %v1332
        %v1334 = vpop.f32.mrb[0].mxu0
        %v1335 = vpop.f32.mrb[0].mxu0
        %v1336 = vadd.f32 0.0, %v1335
        %v1337 = vpop.f32.mrb[0].mxu0
        %1338 = vmatprep.mubr.bf16.mxu0 0
        %1339 = vmatmul.mubr.bf16.gmra.mrb[0].mxu0 %v1075
        %v1340 = vpop.f32.mrb[0].mxu0
        %v1341 = vadd.f32 0.0, %v1340
        %v1342 = vpop.f32.mrb[0].mxu0
        %v1343 = vpop.f32.mrb[0].mxu0
        %v1344 = vadd.f32 0.0, %v1343
        %v1345 = vpop.f32.mrb[0].mxu0
        %1346 = vmatprep.mubr.bf16.mxu0 0
        %1347 = vmatmul.mubr.bf16.gmra.mrb[0].mxu0 %v1076
        %v1348 = vpop.f32.mrb[0].mxu0
        %v1349 = vadd.f32 0.0, %v1348
        %v1350 = vpop.f32.mrb[0].mxu0
        %v1351 = vpop.f32.mrb[0].mxu0
        %v1352 = vadd.f32 0.0, %v1351
        %v1353 = vpop.f32.mrb[0].mxu0
        %1354 = vmatprep.mubr.bf16.mxu0 0
        %1355 = vmatmul.mubr.bf16.gmra.mrb[0].mxu0 %v1077
        %v1356 = vpop.f32.mrb[0].mxu0
        %v1357 = vadd.f32 0.0, %v1356
        %v1358 = vpop.f32.mrb[0].mxu0
        %v1359 = vpop.f32.mrb[0].mxu0
        %v1360 = vadd.f32 0.0, %v1359
        %v1361 = vpop.f32.mrb[0].mxu0
        %1362 = vmatprep.mubr.bf16.mxu0 0
        %1363 = vmatmul.mubr.bf16.gmra.mrb[0].mxu0 %v1078
        %v1364 = vpop.f32.mrb[0].mxu0
        %v1365 = vadd.f32 0.0, %v1364
        %v1366 = vpop.f32.mrb[0].mxu0
        %v1367 = vpop.f32.mrb[0].mxu0
        %v1368 = vadd.f32 0.0, %v1367
        %v1369 = vpop.f32.mrb[0].mxu0
        %1370 = vmatprep.mubr.bf16.mxu0 0
        %1371 = vmatmul.mubr.bf16.gmra.mrb[0].mxu0 %v1079
        %v1372 = vpop.f32.mrb[0].mxu0
        %v1373 = vadd.f32 0.0, %v1372
        %v1374 = vpop.f32.mrb[0].mxu0
        %v1375 = vpop.f32.mrb[0].mxu0
        %v1376 = vadd.f32 0.0, %v1375
        %v1377 = vpop.f32.mrb[0].mxu0
        %1378 = vmatprep.mubr.bf16.mxu0 0
        %1379 = vmatmul.mubr.bf16.gmra.mrb[0].mxu0 %v1080
        %v1380 = vpop.f32.mrb[0].mxu0
        %v1381 = vadd.f32 0.0, %v1380
        %v1382 = vpop.f32.mrb[0].mxu0
        %v1383 = vpop.f32.mrb[0].mxu0
        %v1384 = vadd.f32 0.0, %v1383
        %v1385 = vpop.f32.mrb[0].mxu0
        %1386 = vmatprep.mubr.bf16.mxu0 0
        %1387 = vmatmul.mubr.bf16.gmra.mrb[0].mxu0 %v1081
        %v1388 = vpop.f32.mrb[0].mxu0
        %v1389 = vadd.f32 0.0, %v1388
        %v1390 = vpop.f32.mrb[0].mxu0
        %v1391 = vpop.f32.mrb[0].mxu0
        %v1392 = vadd.f32 0.0, %v1391
        %v1393 = vpop.f32.mrb[0].mxu0
        %1394 = vmatprep.mubr.bf16.mxu0 0
        %1395 = vmatmul.mubr.bf16.gmra.mrb[0].mxu0 %v1082
        %v1396 = vpop.f32.mrb[0].mxu0
        %v1397 = vadd.f32 0.0, %v1396
        %v1398 = vpop.f32.mrb[0].mxu0
        %v1399 = vpop.f32.mrb[0].mxu0
        %v1400 = vadd.f32 0.0, %v1399
        %v1401 = vpop.f32.mrb[0].mxu0
        %1402 = vmatprep.mubr.bf16.mxu0 0
        %1403 = vmatmul.mubr.bf16.gmra.mrb[0].mxu0 %v1083
        %v1404 = vpop.f32.mrb[0].mxu0
        %v1405 = vadd.f32 0.0, %v1404
        %v1406 = vpop.f32.mrb[0].mxu0
        %v1407 = vpop.f32.mrb[0].mxu0
        %v1408 = vadd.f32 0.0, %v1407
        %v1409 = vpop.f32.mrb[0].mxu0
        %1410 = vmatprep.mubr.bf16.mxu0 0
        %1411 = vmatmul.mubr.bf16.gmra.mrb[0].mxu0 %v1084
        %v1412 = vpop.f32.mrb[0].mxu0
        %v1413 = vadd.f32 0.0, %v1412
        %v1414 = vpop.f32.mrb[0].mxu0
        %v1415 = vpop.f32.mrb[0].mxu0
        %v1416 = vadd.f32 0.0, %v1415
        %v1417 = vpop.f32.mrb[0].mxu0
        %1418 = vmatprep.mubr.bf16.mxu0 0
        %1419 = vmatmul.mubr.bf16.gmra.mrb[0].mxu0 %v1085
        %v1420 = vpop.f32.mrb[0].mxu0
        %v1421 = vadd.f32 0.0, %v1420
        %v1422 = vpop.f32.mrb[0].mxu0
        %v1423 = vpop.f32.mrb[0].mxu0
        %v1424 = vadd.f32 0.0, %v1423
        %v1425 = vpop.f32.mrb[0].mxu0
        %1426 = vmatprep.mubr.bf16.mxu0 0
        %1427 = vmatmul.mubr.bf16.gmra.mrb[0].mxu0 %v1086
        %v1428 = vpop.f32.mrb[0].mxu0
        %v1429 = vadd.f32 0.0, %v1428
        %v1430 = vpop.f32.mrb[0].mxu0
        %v1431 = vpop.f32.mrb[0].mxu0
        %v1432 = vadd.f32 0.0, %v1431
        %v1433 = vpop.f32.mrb[0].mxu0
        %1434 = vmatprep.mubr.bf16.mxu0 0
        %1435 = vmatmul.mubr.bf16.gmra.mrb[0].mxu0 %v1087
        %v1436 = vpop.f32.mrb[0].mxu0
        %v1437 = vadd.f32 0.0, %v1436
        %v1438 = vpop.f32.mrb[0].mxu0
        %v1439 = vpop.f32.mrb[0].mxu0
        %v1440 = vadd.f32 0.0, %v1439
        %v1441 = vpop.f32.mrb[0].mxu0
        %1442 = vmatprep.mubr.bf16.mxu0 0
        %1443 = vmatmul.mubr.bf16.gmra.mrb[0].mxu0 %v1088
        %v1444 = vpop.f32.mrb[0].mxu0
        %v1445 = vadd.f32 0.0, %v1444
        %v1446 = vpop.f32.mrb[0].mxu0
        %v1447 = vpop.f32.mrb[0].mxu0
        %v1448 = vadd.f32 0.0, %v1447
        %v1449 = vpop.f32.mrb[0].mxu0
        %1450 = vmatprep.mubr.bf16.mxu0 0
        %1451 = vmatmul.mubr.bf16.gmra.mrb[0].mxu0 %v1089
        %v1452 = vpop.f32.mrb[0].mxu0
        %v1453 = vadd.f32 0.0, %v1452
        %v1454 = vpop.f32.mrb[0].mxu0
        %v1455 = vpop.f32.mrb[0].mxu0
        %v1456 = vpop.f32.mrb[0].mxu0
        %1457 = vdwg.mxu0
        %v1521 = vunpack.c.l.b16 %v774
        %v1522 = vunpack.c.l.b16 %v775
        %v1523 = vunpack.c.l.b16 %v776
        %v1524 = vunpack.c.l.b16 %v777
        %v1525 = vunpack.c.l.b16 %v778
        %v1526 = vunpack.c.l.b16 %v779
        %v1527 = vunpack.c.l.b16 %v780
        %v1528 = vunpack.c.l.b16 %v781
        %v1529 = vunpack.c.l.b16 %v782
        %v1530 = vunpack.c.l.b16 %v783
        %v1531 = vunpack.c.l.b16 %v784
        %v1532 = vunpack.c.l.b16 %v785
        %v1533 = vunpack.c.l.b16 %v786
        %v1534 = vunpack.c.l.b16 %v787
        %v1535 = vunpack.c.l.b16 %v788
        %v1536 = vunpack.c.l.b16 %v789
        %v1537 = vunpack.c.l.b16 %v790
        %v1538 = vunpack.c.l.b16 %v791
        %v1539 = vunpack.c.l.b16 %v792
        %v1540 = vunpack.c.l.b16 %v793
        %v1541 = vunpack.c.l.b16 %v794
        %v1542 = vunpack.c.l.b16 %v795
        %v1543 = vunpack.c.l.b16 %v796
        %v1544 = vunpack.c.l.b16 %v797
        %v1545 = vunpack.c.l.b16 %v798
        %v1546 = vunpack.c.l.b16 %v799
        %v1547 = vunpack.c.l.b16 %v800
        %v1548 = vunpack.c.l.b16 %v801
        %v1549 = vunpack.c.l.b16 %v802
        %v1550 = vunpack.c.l.b16 %v803
        %v1551 = vunpack.c.l.b16 %v804
        %v1552 = vunpack.c.l.b16 %v805
        %v1553 = vunpack.c.l.b16 %v806
        %v1554 = vunpack.c.l.b16 %v807
        %v1555 = vunpack.c.l.b16 %v808
        %v1556 = vunpack.c.l.b16 %v809
        %v1557 = vunpack.c.l.b16 %v810
        %v1558 = vunpack.c.l.b16 %v811
        %v1559 = vunpack.c.l.b16 %v812
        %v1560 = vunpack.c.l.b16 %v813
        %v1561 = vunpack.c.l.b16 %v814
        %v1562 = vunpack.c.l.b16 %v815
        %v1563 = vunpack.c.l.b16 %v816
        %v1564 = vunpack.c.l.b16 %v817
        %v1565 = vunpack.c.l.b16 %v818
        %v1566 = vunpack.c.l.b16 %v819
        %v1567 = vunpack.c.l.b16 %v820
        %v1568 = vunpack.c.l.b16 %v821
        %v1569 = vunpack.c.l.b16 %v822
        %v1570 = vunpack.c.l.b16 %v823
        %v1571 = vunpack.c.l.b16 %v824
        %v1572 = vunpack.c.l.b16 %v825
        %v1573 = vunpack.c.l.b16 %v826
        %v1574 = vunpack.c.l.b16 %v827
        %v1575 = vunpack.c.l.b16 %v828
        %v1576 = vunpack.c.l.b16 %v829
        %v1577 = vunpack.c.l.b16 %v830
        %v1578 = vunpack.c.l.b16 %v831
        %v1579 = vunpack.c.l.b16 %v832
        %v1580 = vunpack.c.l.b16 %v833
        %v1581 = vunpack.c.l.b16 %v834
        %v1582 = vunpack.c.l.b16 %v835
        %v1583 = vunpack.c.l.b16 %v836
        %v1584 = vpack.c.b16 %v1522, %v1521
        %v1585 = vpack.c.b16 %v1524, %v1523
        %v1586 = vpack.c.b16 %v1526, %v1525
        %v1587 = vpack.c.b16 %v1528, %v1527
        %v1588 = vpack.c.b16 %v1530, %v1529
        %v1589 = vpack.c.b16 %v1532, %v1531
        %v1590 = vpack.c.b16 %v1534, %v1533
        %v1591 = vpack.c.b16 %v1536, %v1535
        %v1592 = vpack.c.b16 %v1538, %v1537
        %v1593 = vpack.c.b16 %v1540, %v1539
        %v1594 = vpack.c.b16 %v1542, %v1541
        %v1595 = vpack.c.b16 %v1544, %v1543
        %v1596 = vpack.c.b16 %v1546, %v1545
        %v1597 = vpack.c.b16 %v1548, %v1547
        %v1598 = vpack.c.b16 %v1550, %v1549
        %v1599 = vpack.c.b16 %v1552, %v1551
        %v1600 = vpack.c.b16 %v1554, %v1553
        %v1601 = vpack.c.b16 %v1556, %v1555
        %v1602 = vpack.c.b16 %v1558, %v1557
        %v1603 = vpack.c.b16 %v1560, %v1559
        %v1604 = vpack.c.b16 %v1562, %v1561
        %v1605 = vpack.c.b16 %v1564, %v1563
        %v1606 = vpack.c.b16 %v1566, %v1565
        %v1607 = vpack.c.b16 %v1568, %v1567
        %v1608 = vpack.c.b16 %v1570, %v1569
        %v1609 = vpack.c.b16 %v1572, %v1571
        %v1610 = vpack.c.b16 %v1574, %v1573
        %v1611 = vpack.c.b16 %v1576, %v1575
        %v1612 = vpack.c.b16 %v1578, %v1577
        %v1613 = vpack.c.b16 %v1580, %v1579
        %v1614 = vpack.c.b16 %v1582, %v1581
        %v1615 = vpack.c.b16 %v1583, %v1583
        %v1664 = vunpack.c.l.b16 %v837
        %v1665 = vunpack.c.l.b16 %v838
        %v1666 = vunpack.c.l.b16 %v839
        %v1667 = vunpack.c.l.b16 %v840
        %v1668 = vunpack.c.l.b16 %v841
        %v1669 = vunpack.c.l.b16 %v842
        %v1670 = vunpack.c.l.b16 %v843
        %v1671 = vunpack.c.l.b16 %v844
        %v1672 = vunpack.c.l.b16 %v845
        %v1673 = vunpack.c.l.b16 %v846
        %v1674 = vunpack.c.l.b16 %v847
        %v1675 = vunpack.c.l.b16 %v848
        %v1676 = vunpack.c.l.b16 %v849
        %v1677 = vunpack.c.l.b16 %v850
        %v1678 = vunpack.c.l.b16 %v851
        %v1679 = vunpack.c.l.b16 %v852
        %v1680 = vpack.c.b16 %v1665, %v1664
        %v1681 = vpack.c.b16 %v1667, %v1666
        %v1682 = vpack.c.b16 %v1669, %v1668
        %v1683 = vpack.c.b16 %v1671, %v1670
        %v1684 = vpack.c.b16 %v1673, %v1672
        %v1685 = vpack.c.b16 %v1675, %v1674
        %v1686 = vpack.c.b16 %v1677, %v1676
        %v1687 = vpack.c.b16 %v1679, %v1678
        %1696 = vmatprep.subr.bf16.mxu0 0
        %1697 = vmatpush1.bf16.msra.mxu0 %v1680
        %1698 = vmatprep.subr.bf16.mxu0 0
        %1699 = vmatpush1.bf16.msra.mxu0 %v1681
        %1700 = vmatprep.subr.bf16.mxu0 0
        %1701 = vmatpush1.bf16.msra.mxu0 %v1682
        %1702 = vmatprep.subr.bf16.mxu0 0
        %1703 = vmatpush1.bf16.msra.mxu0 %v1683
        %1704 = vmatprep.subr.bf16.mxu0 0
        %1705 = vmatpush1.bf16.msra.mxu0 %v1684
        %1706 = vmatprep.subr.bf16.mxu0 0
        %1707 = vmatpush1.bf16.msra.mxu0 %v1685
        %1708 = vmatprep.subr.bf16.mxu0 0
        %1709 = vmatpush1.bf16.msra.mxu0 %v1686
        %1710 = vmatprep.subr.bf16.mxu0 0
        %1711 = vmatpush1.bf16.msra.mxu0 %v1687
        %1712 = vmatprep.subr.bf16.mxu0 0
        %1713 = vmatpush1.bf16.msra.mxu0 0
        %1714 = vmatprep.subr.bf16.mxu0 0
        %1715 = vmatpush1.bf16.msra.mxu0 0
        %1716 = vmatprep.subr.bf16.mxu0 0
        %1717 = vmatpush1.bf16.msra.mxu0 0
        %1718 = vmatprep.subr.bf16.mxu0 0
        %1719 = vmatpush1.bf16.msra.mxu0 0
        %1720 = vmatprep.subr.bf16.mxu0 0
        %1721 = vmatpush1.bf16.msra.mxu0 0
        %1722 = vmatprep.subr.bf16.mxu0 0
        %1723 = vmatpush1.bf16.msra.mxu0 0
        %1724 = vmatprep.subr.bf16.mxu0 0
        %1725 = vmatpush1.bf16.msra.mxu0 0
        %1726 = vmatprep.subr.bf16.mxu0 0
        %1727 = vmatpush1.bf16.msra.mxu0 0
        %1728 = vmatprep.mubr.bf16.mxu0 0
        %1729 = vmatmul.mubr.bf16.gmra.mrb[0].mxu0 %v1584
        %v1730 = vpop.f32.mrb[0].mxu0
        %v1731 = vadd.f32 %v1205, %v1730
        %v1732 = vpop.f32.mrb[0].mxu0
        %v1733 = vpop.f32.mrb[0].mxu0
        %v1734 = vadd.f32 %v1208, %v1733
        %v1735 = vpop.f32.mrb[0].mxu0
        %1736 = vmatprep.mubr.bf16.mxu0 0
        %1737 = vmatmul.mubr.bf16.gmra.mrb[0].mxu0 %v1585
        %v1738 = vpop.f32.mrb[0].mxu0
        %v1739 = vadd.f32 %v1213, %v1738
        %v1740 = vpop.f32.mrb[0].mxu0
        %v1741 = vpop.f32.mrb[0].mxu0
        %v1742 = vadd.f32 %v1216, %v1741
        %v1743 = vpop.f32.mrb[0].mxu0
        %1744 = vmatprep.mubr.bf16.mxu0 0
        %1745 = vmatmul.mubr.bf16.gmra.mrb[0].mxu0 %v1586
        %v1746 = vpop.f32.mrb[0].mxu0
        %v1747 = vadd.f32 %v1221, %v1746
        %v1748 = vpop.f32.mrb[0].mxu0
        %v1749 = vpop.f32.mrb[0].mxu0
        %v1750 = vadd.f32 %v1224, %v1749
        %v1751 = vpop.f32.mrb[0].mxu0
        %1752 = vmatprep.mubr.bf16.mxu0 0
        %1753 = vmatmul.mubr.bf16.gmra.mrb[0].mxu0 %v1587
        %v1754 = vpop.f32.mrb[0].mxu0
        %v1755 = vadd.f32 %v1229, %v1754
        %v1756 = vpop.f32.mrb[0].mxu0
        %v1757 = vpop.f32.mrb[0].mxu0
        %v1758 = vadd.f32 %v1232, %v1757
        %v1759 = vpop.f32.mrb[0].mxu0
        %1760 = vmatprep.mubr.bf16.mxu0 0
        %1761 = vmatmul.mubr.bf16.gmra.mrb[0].mxu0 %v1588
        %v1762 = vpop.f32.mrb[0].mxu0
        %v1763 = vadd.f32 %v1237, %v1762
        %v1764 = vpop.f32.mrb[0].mxu0
        %v1765 = vpop.f32.mrb[0].mxu0
        %v1766 = vadd.f32 %v1240, %v1765
        %v1767 = vpop.f32.mrb[0].mxu0
        %1768 = vmatprep.mubr.bf16.mxu0 0
        %1769 = vmatmul.mubr.bf16.gmra.mrb[0].mxu0 %v1589
        %v1770 = vpop.f32.mrb[0].mxu0
        %v1771 = vadd.f32 %v1245, %v1770
        %v1772 = vpop.f32.mrb[0].mxu0
        %v1773 = vpop.f32.mrb[0].mxu0
        %v1774 = vadd.f32 %v1248, %v1773
        %v1775 = vpop.f32.mrb[0].mxu0
        %1776 = vmatprep.mubr.bf16.mxu0 0
        %1777 = vmatmul.mubr.bf16.gmra.mrb[0].mxu0 %v1590
        %v1778 = vpop.f32.mrb[0].mxu0
        %v1779 = vadd.f32 %v1253, %v1778
        %v1780 = vpop.f32.mrb[0].mxu0
        %v1781 = vpop.f32.mrb[0].mxu0
        %v1782 = vadd.f32 %v1256, %v1781
        %v1783 = vpop.f32.mrb[0].mxu0
        %1784 = vmatprep.mubr.bf16.mxu0 0
        %1785 = vmatmul.mubr.bf16.gmra.mrb[0].mxu0 %v1591
        %v1786 = vpop.f32.mrb[0].mxu0
        %v1787 = vadd.f32 %v1261, %v1786
        %v1788 = vpop.f32.mrb[0].mxu0
        %v1789 = vpop.f32.mrb[0].mxu0
        %v1790 = vadd.f32 %v1264, %v1789
        %v1791 = vpop.f32.mrb[0].mxu0
        %1792 = vmatprep.mubr.bf16.mxu0 0
        %1793 = vmatmul.mubr.bf16.gmra.mrb[0].mxu0 %v1592
        %v1794 = vpop.f32.mrb[0].mxu0
        %v1795 = vadd.f32 %v1269, %v1794
        %v1796 = vpop.f32.mrb[0].mxu0
        %v1797 = vpop.f32.mrb[0].mxu0
        %v1798 = vadd.f32 %v1272, %v1797
        %v1799 = vpop.f32.mrb[0].mxu0
        %1800 = vmatprep.mubr.bf16.mxu0 0
        %1801 = vmatmul.mubr.bf16.gmra.mrb[0].mxu0 %v1593
        %v1802 = vpop.f32.mrb[0].mxu0
        %v1803 = vadd.f32 %v1277, %v1802
        %v1804 = vpop.f32.mrb[0].mxu0
        %v1805 = vpop.f32.mrb[0].mxu0
        %v1806 = vadd.f32 %v1280, %v1805
        %v1807 = vpop.f32.mrb[0].mxu0
        %1808 = vmatprep.mubr.bf16.mxu0 0
        %1809 = vmatmul.mubr.bf16.gmra.mrb[0].mxu0 %v1594
        %v1810 = vpop.f32.mrb[0].mxu0
        %v1811 = vadd.f32 %v1285, %v1810
        %v1812 = vpop.f32.mrb[0].mxu0
        %v1813 = vpop.f32.mrb[0].mxu0
        %v1814 = vadd.f32 %v1288, %v1813
        %v1815 = vpop.f32.mrb[0].mxu0
        %1816 = vmatprep.mubr.bf16.mxu0 0
        %1817 = vmatmul.mubr.bf16.gmra.mrb[0].mxu0 %v1595
        %v1818 = vpop.f32.mrb[0].mxu0
        %v1819 = vadd.f32 %v1293, %v1818
        %v1820 = vpop.f32.mrb[0].mxu0
        %v1821 = vpop.f32.mrb[0].mxu0
        %v1822 = vadd.f32 %v1296, %v1821
        %v1823 = vpop.f32.mrb[0].mxu0
        %1824 = vmatprep.mubr.bf16.mxu0 0
        %1825 = vmatmul.mubr.bf16.gmra.mrb[0].mxu0 %v1596
        %v1826 = vpop.f32.mrb[0].mxu0
        %v1827 = vadd.f32 %v1301, %v1826
        %v1828 = vpop.f32.mrb[0].mxu0
        %v1829 = vpop.f32.mrb[0].mxu0
        %v1830 = vadd.f32 %v1304, %v1829
        %v1831 = vpop.f32.mrb[0].mxu0
        %1832 = vmatprep.mubr.bf16.mxu0 0
        %1833 = vmatmul.mubr.bf16.gmra.mrb[0].mxu0 %v1597
        %v1834 = vpop.f32.mrb[0].mxu0
        %v1835 = vadd.f32 %v1309, %v1834
        %v1836 = vpop.f32.mrb[0].mxu0
        %v1837 = vpop.f32.mrb[0].mxu0
        %v1838 = vadd.f32 %v1312, %v1837
        %v1839 = vpop.f32.mrb[0].mxu0
        %1840 = vmatprep.mubr.bf16.mxu0 0
        %1841 = vmatmul.mubr.bf16.gmra.mrb[0].mxu0 %v1598
        %v1842 = vpop.f32.mrb[0].mxu0
        %v1843 = vadd.f32 %v1317, %v1842
        %v1844 = vpop.f32.mrb[0].mxu0
        %v1845 = vpop.f32.mrb[0].mxu0
        %v1846 = vadd.f32 %v1320, %v1845
        %v1847 = vpop.f32.mrb[0].mxu0
        %1848 = vmatprep.mubr.bf16.mxu0 0
        %1849 = vmatmul.mubr.bf16.gmra.mrb[0].mxu0 %v1599
        %v1850 = vpop.f32.mrb[0].mxu0
        %v1851 = vadd.f32 %v1325, %v1850
        %v1852 = vpop.f32.mrb[0].mxu0
        %v1853 = vpop.f32.mrb[0].mxu0
        %v1854 = vadd.f32 %v1328, %v1853
        %v1855 = vpop.f32.mrb[0].mxu0
        %1856 = vmatprep.mubr.bf16.mxu0 0
        %1857 = vmatmul.mubr.bf16.gmra.mrb[0].mxu0 %v1600
        %v1858 = vpop.f32.mrb[0].mxu0
        %v1859 = vadd.f32 %v1333, %v1858
        %v1860 = vpop.f32.mrb[0].mxu0
        %v1861 = vpop.f32.mrb[0].mxu0
        %v1862 = vadd.f32 %v1336, %v1861
        %v1863 = vpop.f32.mrb[0].mxu0
        %1864 = vmatprep.mubr.bf16.mxu0 0
        %1865 = vmatmul.mubr.bf16.gmra.mrb[0].mxu0 %v1601
        %v1866 = vpop.f32.mrb[0].mxu0
        %v1867 = vadd.f32 %v1341, %v1866
        %v1868 = vpop.f32.mrb[0].mxu0
        %v1869 = vpop.f32.mrb[0].mxu0
        %v1870 = vadd.f32 %v1344, %v1869
        %v1871 = vpop.f32.mrb[0].mxu0
        %1872 = vmatprep.mubr.bf16.mxu0 0
        %1873 = vmatmul.mubr.bf16.gmra.mrb[0].mxu0 %v1602
        %v1874 = vpop.f32.mrb[0].mxu0
        %v1875 = vadd.f32 %v1349, %v1874
        %v1876 = vpop.f32.mrb[0].mxu0
        %v1877 = vpop.f32.mrb[0].mxu0
        %v1878 = vadd.f32 %v1352, %v1877
        %v1879 = vpop.f32.mrb[0].mxu0
        %1880 = vmatprep.mubr.bf16.mxu0 0
        %1881 = vmatmul.mubr.bf16.gmra.mrb[0].mxu0 %v1603
        %v1882 = vpop.f32.mrb[0].mxu0
        %v1883 = vadd.f32 %v1357, %v1882
        %v1884 = vpop.f32.mrb[0].mxu0
        %v1885 = vpop.f32.mrb[0].mxu0
        %v1886 = vadd.f32 %v1360, %v1885
        %v1887 = vpop.f32.mrb[0].mxu0
        %1888 = vmatprep.mubr.bf16.mxu0 0
        %1889 = vmatmul.mubr.bf16.gmra.mrb[0].mxu0 %v1604
        %v1890 = vpop.f32.mrb[0].mxu0
        %v1891 = vadd.f32 %v1365, %v1890
        %v1892 = vpop.f32.mrb[0].mxu0
        %v1893 = vpop.f32.mrb[0].mxu0
        %v1894 = vadd.f32 %v1368, %v1893
        %v1895 = vpop.f32.mrb[0].mxu0
        %1896 = vmatprep.mubr.bf16.mxu0 0
        %1897 = vmatmul.mubr.bf16.gmra.mrb[0].mxu0 %v1605
        %v1898 = vpop.f32.mrb[0].mxu0
        %v1899 = vadd.f32 %v1373, %v1898
        %v1900 = vpop.f32.mrb[0].mxu0
        %v1901 = vpop.f32.mrb[0].mxu0
        %v1902 = vadd.f32 %v1376, %v1901
        %v1903 = vpop.f32.mrb[0].mxu0
        %1904 = vmatprep.mubr.bf16.mxu0 0
        %1905 = vmatmul.mubr.bf16.gmra.mrb[0].mxu0 %v1606
        %v1906 = vpop.f32.mrb[0].mxu0
        %v1907 = vadd.f32 %v1381, %v1906
        %v1908 = vpop.f32.mrb[0].mxu0
        %v1909 = vpop.f32.mrb[0].mxu0
        %v1910 = vadd.f32 %v1384, %v1909
        %v1911 = vpop.f32.mrb[0].mxu0
        %1912 = vmatprep.mubr.bf16.mxu0 0
        %1913 = vmatmul.mubr.bf16.gmra.mrb[0].mxu0 %v1607
        %v1914 = vpop.f32.mrb[0].mxu0
        %v1915 = vadd.f32 %v1389, %v1914
        %v1916 = vpop.f32.mrb[0].mxu0
        %v1917 = vpop.f32.mrb[0].mxu0
        %v1918 = vadd.f32 %v1392, %v1917
        %v1919 = vpop.f32.mrb[0].mxu0
        %1920 = vmatprep.mubr.bf16.mxu0 0
        %1921 = vmatmul.mubr.bf16.gmra.mrb[0].mxu0 %v1608
        %v1922 = vpop.f32.mrb[0].mxu0
        %v1923 = vadd.f32 %v1397, %v1922
        %v1924 = vpop.f32.mrb[0].mxu0
        %v1925 = vpop.f32.mrb[0].mxu0
        %v1926 = vadd.f32 %v1400, %v1925
        %v1927 = vpop.f32.mrb[0].mxu0
        %1928 = vmatprep.mubr.bf16.mxu0 0
        %1929 = vmatmul.mubr.bf16.gmra.mrb[0].mxu0 %v1609
        %v1930 = vpop.f32.mrb[0].mxu0
        %v1931 = vadd.f32 %v1405, %v1930
        %v1932 = vpop.f32.mrb[0].mxu0
        %v1933 = vpop.f32.mrb[0].mxu0
        %v1934 = vadd.f32 %v1408, %v1933
        %v1935 = vpop.f32.mrb[0].mxu0
        %1936 = vmatprep.mubr.bf16.mxu0 0
        %1937 = vmatmul.mubr.bf16.gmra.mrb[0].mxu0 %v1610
        %v1938 = vpop.f32.mrb[0].mxu0
        %v1939 = vadd.f32 %v1413, %v1938
        %v1940 = vpop.f32.mrb[0].mxu0
        %v1941 = vpop.f32.mrb[0].mxu0
        %v1942 = vadd.f32 %v1416, %v1941
        %v1943 = vpop.f32.mrb[0].mxu0
        %1944 = vmatprep.mubr.bf16.mxu0 0
        %1945 = vmatmul.mubr.bf16.gmra.mrb[0].mxu0 %v1611
        %v1946 = vpop.f32.mrb[0].mxu0
        %v1947 = vadd.f32 %v1421, %v1946
        %v1948 = vpop.f32.mrb[0].mxu0
        %v1949 = vpop.f32.mrb[0].mxu0
        %v1950 = vadd.f32 %v1424, %v1949
        %v1951 = vpop.f32.mrb[0].mxu0
        %1952 = vmatprep.mubr.bf16.mxu0 0
        %1953 = vmatmul.mubr.bf16.gmra.mrb[0].mxu0 %v1612
        %v1954 = vpop.f32.mrb[0].mxu0
        %v1955 = vadd.f32 %v1429, %v1954
        %v1956 = vpop.f32.mrb[0].mxu0
        %v1957 = vpop.f32.mrb[0].mxu0
        %v1958 = vadd.f32 %v1432, %v1957
        %v1959 = vpop.f32.mrb[0].mxu0
        %1960 = vmatprep.mubr.bf16.mxu0 0
        %1961 = vmatmul.mubr.bf16.gmra.mrb[0].mxu0 %v1613
        %v1962 = vpop.f32.mrb[0].mxu0
        %v1963 = vadd.f32 %v1437, %v1962
        %v1964 = vpop.f32.mrb[0].mxu0
        %v1965 = vpop.f32.mrb[0].mxu0
        %v1966 = vadd.f32 %v1440, %v1965
        %v1967 = vpop.f32.mrb[0].mxu0
        %1968 = vmatprep.mubr.bf16.mxu0 0
        %1969 = vmatmul.mubr.bf16.gmra.mrb[0].mxu0 %v1614
        %v1970 = vpop.f32.mrb[0].mxu0
        %v1971 = vadd.f32 %v1445, %v1970
        %v1972 = vpop.f32.mrb[0].mxu0
        %v1973 = vpop.f32.mrb[0].mxu0
        %v1974 = vadd.f32 %v1448, %v1973
        %v1975 = vpop.f32.mrb[0].mxu0
        %1976 = vmatprep.mubr.bf16.mxu0 0
        %1977 = vmatmul.mubr.bf16.gmra.mrb[0].mxu0 %v1615
        %v1978 = vpop.f32.mrb[0].mxu0
        %v1979 = vadd.f32 %v1453, %v1978
        %v1980 = vpop.f32.mrb[0].mxu0
        %v1981 = vpop.f32.mrb[0].mxu0
        %v1982 = vpop.f32.mrb[0].mxu0
        %1983 = vdwg.mxu0
        %v1984 = vld [vmem:[#allocation11] sm:$0xf]
        %v1985 = vld [vmem:[#allocation11 + $0x4] sm:$0xf]
        %v1986 = vld [vmem:[#allocation11 + $0x8] sm:$0xf]
        %v1987 = vld [vmem:[#allocation11 + $0xc] sm:$0xf]
        %v1988 = vld [vmem:[#allocation11 + $0x10] sm:$0xf]
        %v1989 = vld [vmem:[#allocation11 + $0x14] sm:$0xf]
        %v1990 = vld [vmem:[#allocation11 + $0x18] sm:$0xf]
        %v1991 = vld [vmem:[#allocation11 + $0x1c] sm:$0xf]
        %v1992 = vld [vmem:[#allocation11 + $0x20] sm:$0xf]
        %v1993 = vld [vmem:[#allocation11 + $0x24] sm:$0xf]
        %v1994 = vld [vmem:[#allocation11 + $0x28] sm:$0xf]
        %v1995 = vld [vmem:[#allocation11 + $0x2c] sm:$0xf]
        %v1996 = vld [vmem:[#allocation11 + $0x30] sm:$0xf]
        %v1997 = vld [vmem:[#allocation11 + $0x34] sm:$0xf]
        %v1998 = vld [vmem:[#allocation11 + $0x38] sm:$0xf]
        %v1999 = vld [vmem:[#allocation11 + $0x3c] sm:$0xf]
        %v2063 = vunpack.c.l.b16 %v648
        %v2064 = vunpack.c.l.b16 %v649
        %v2065 = vunpack.c.l.b16 %v650
        %v2066 = vunpack.c.l.b16 %v651
        %v2067 = vunpack.c.l.b16 %v652
        %v2068 = vunpack.c.l.b16 %v653
        %v2069 = vunpack.c.l.b16 %v654
        %v2070 = vunpack.c.l.b16 %v655
        %v2071 = vunpack.c.l.b16 %v656
        %v2072 = vunpack.c.l.b16 %v657
        %v2073 = vunpack.c.l.b16 %v658
        %v2074 = vunpack.c.l.b16 %v659
        %v2075 = vunpack.c.l.b16 %v660
        %v2076 = vunpack.c.l.b16 %v661
        %v2077 = vunpack.c.l.b16 %v662
        %v2078 = vunpack.c.l.b16 %v663
        %v2079 = vunpack.c.l.b16 %v664
        %v2080 = vunpack.c.l.b16 %v665
        %v2081 = vunpack.c.l.b16 %v666
        %v2082 = vunpack.c.l.b16 %v667
        %v2083 = vunpack.c.l.b16 %v668
        %v2084 = vunpack.c.l.b16 %v669
        %v2085 = vunpack.c.l.b16 %v670
        %v2086 = vunpack.c.l.b16 %v671
        %v2087 = vunpack.c.l.b16 %v672
        %v2088 = vunpack.c.l.b16 %v673
        %v2089 = vunpack.c.l.b16 %v674
        %v2090 = vunpack.c.l.b16 %v675
        %v2091 = vunpack.c.l.b16 %v676
        %v2092 = vunpack.c.l.b16 %v677
        %v2093 = vunpack.c.l.b16 %v678
        %v2094 = vunpack.c.l.b16 %v679
        %v2095 = vunpack.c.l.b16 %v680
        %v2096 = vunpack.c.l.b16 %v681
        %v2097 = vunpack.c.l.b16 %v682
        %v2098 = vunpack.c.l.b16 %v683
        %v2099 = vunpack.c.l.b16 %v684
        %v2100 = vunpack.c.l.b16 %v685
        %v2101 = vunpack.c.l.b16 %v686
        %v2102 = vunpack.c.l.b16 %v687
        %v2103 = vunpack.c.l.b16 %v688
        %v2104 = vunpack.c.l.b16 %v689
        %v2105 = vunpack.c.l.b16 %v690
        %v2106 = vunpack.c.l.b16 %v691
        %v2107 = vunpack.c.l.b16 %v692
        %v2108 = vunpack.c.l.b16 %v693
        %v2109 = vunpack.c.l.b16 %v694
        %v2110 = vunpack.c.l.b16 %v695
        %v2111 = vunpack.c.l.b16 %v696
        %v2112 = vunpack.c.l.b16 %v697
        %v2113 = vunpack.c.l.b16 %v698
        %v2114 = vunpack.c.l.b16 %v699
        %v2115 = vunpack.c.l.b16 %v700
        %v2116 = vunpack.c.l.b16 %v701
        %v2117 = vunpack.c.l.b16 %v702
        %v2118 = vunpack.c.l.b16 %v703
        %v2119 = vunpack.c.l.b16 %v704
        %v2120 = vunpack.c.l.b16 %v705
        %v2121 = vunpack.c.l.b16 %v706
        %v2122 = vunpack.c.l.b16 %v707
        %v2123 = vunpack.c.l.b16 %v708
        %v2124 = vunpack.c.l.b16 %v709
        %v2125 = vunpack.c.l.b16 %v710
        %v2126 = vpack.c.b16 %v2064, %v2063
        %v2127 = vpack.c.b16 %v2066, %v2065
        %v2128 = vpack.c.b16 %v2068, %v2067
        %v2129 = vpack.c.b16 %v2070, %v2069
        %v2130 = vpack.c.b16 %v2072, %v2071
        %v2131 = vpack.c.b16 %v2074, %v2073
        %v2132 = vpack.c.b16 %v2076, %v2075
        %v2133 = vpack.c.b16 %v2078, %v2077
        %v2134 = vpack.c.b16 %v2080, %v2079
        %v2135 = vpack.c.b16 %v2082, %v2081
        %v2136 = vpack.c.b16 %v2084, %v2083
        %v2137 = vpack.c.b16 %v2086, %v2085
        %v2138 = vpack.c.b16 %v2088, %v2087
        %v2139 = vpack.c.b16 %v2090, %v2089
        %v2140 = vpack.c.b16 %v2092, %v2091
        %v2141 = vpack.c.b16 %v2094, %v2093
        %v2142 = vpack.c.b16 %v2096, %v2095
        %v2143 = vpack.c.b16 %v2098, %v2097
        %v2144 = vpack.c.b16 %v2100, %v2099
        %v2145 = vpack.c.b16 %v2102, %v2101
        %v2146 = vpack.c.b16 %v2104, %v2103
        %v2147 = vpack.c.b16 %v2106, %v2105
        %v2148 = vpack.c.b16 %v2108, %v2107
        %v2149 = vpack.c.b16 %v2110, %v2109
        %v2150 = vpack.c.b16 %v2112, %v2111
        %v2151 = vpack.c.b16 %v2114, %v2113
        %v2152 = vpack.c.b16 %v2116, %v2115
        %v2153 = vpack.c.b16 %v2118, %v2117
        %v2154 = vpack.c.b16 %v2120, %v2119
        %v2155 = vpack.c.b16 %v2122, %v2121
        %v2156 = vpack.c.b16 %v2124, %v2123
        %v2157 = vpack.c.b16 %v2125, %v2125
        %v2206 = vunpack.c.l.b16 %v1984
        %v2207 = vunpack.c.l.b16 %v1985
        %v2208 = vunpack.c.l.b16 %v1986
        %v2209 = vunpack.c.l.b16 %v1987
        %v2210 = vunpack.c.l.b16 %v1988
        %v2211 = vunpack.c.l.b16 %v1989
        %v2212 = vunpack.c.l.b16 %v1990
        %v2213 = vunpack.c.l.b16 %v1991
        %v2214 = vunpack.c.l.b16 %v1992
        %v2215 = vunpack.c.l.b16 %v1993
        %v2216 = vunpack.c.l.b16 %v1994
        %v2217 = vunpack.c.l.b16 %v1995
        %v2218 = vunpack.c.l.b16 %v1996
        %v2219 = vunpack.c.l.b16 %v1997
        %v2220 = vunpack.c.l.b16 %v1998
        %v2221 = vunpack.c.l.b16 %v1999
        %v2222 = vpack.c.b16 %v2207, %v2206
        %v2223 = vpack.c.b16 %v2209, %v2208
        %v2224 = vpack.c.b16 %v2211, %v2210
        %v2225 = vpack.c.b16 %v2213, %v2212
        %v2226 = vpack.c.b16 %v2215, %v2214
        %v2227 = vpack.c.b16 %v2217, %v2216
        %v2228 = vpack.c.b16 %v2219, %v2218
        %v2229 = vpack.c.b16 %v2221, %v2220
        %2238 = vmatprep.subr.bf16.mxu0 0
        %2239 = vmatpush1.bf16.msra.mxu0 %v2222
        %2240 = vmatprep.subr.bf16.mxu0 0
        %2241 = vmatpush1.bf16.msra.mxu0 %v2223
        %2242 = vmatprep.subr.bf16.mxu0 0
        %2243 = vmatpush1.bf16.msra.mxu0 %v2224
        %2244 = vmatprep.subr.bf16.mxu0 0
        %2245 = vmatpush1.bf16.msra.mxu0 %v2225
        %2246 = vmatprep.subr.bf16.mxu0 0
        %2247 = vmatpush1.bf16.msra.mxu0 %v2226
        %2248 = vmatprep.subr.bf16.mxu0 0
        %2249 = vmatpush1.bf16.msra.mxu0 %v2227
        %2250 = vmatprep.subr.bf16.mxu0 0
        %2251 = vmatpush1.bf16.msra.mxu0 %v2228
        %2252 = vmatprep.subr.bf16.mxu0 0
        %2253 = vmatpush1.bf16.msra.mxu0 %v2229
        %2254 = vmatprep.subr.bf16.mxu0 0
        %2255 = vmatpush1.bf16.msra.mxu0 0
        %2256 = vmatprep.subr.bf16.mxu0 0
        %2257 = vmatpush1.bf16.msra.mxu0 0
        %2258 = vmatprep.subr.bf16.mxu0 0
        %2259 = vmatpush1.bf16.msra.mxu0 0
        %2260 = vmatprep.subr.bf16.mxu0 0
        %2261 = vmatpush1.bf16.msra.mxu0 0
        %2262 = vmatprep.subr.bf16.mxu0 0
        %2263 = vmatpush1.bf16.msra.mxu0 0
        %2264 = vmatprep.subr.bf16.mxu0 0
        %2265 = vmatpush1.bf16.msra.mxu0 0
        %2266 = vmatprep.subr.bf16.mxu0 0
        %2267 = vmatpush1.bf16.msra.mxu0 0
        %2268 = vmatprep.subr.bf16.mxu0 0
        %2269 = vmatpush1.bf16.msra.mxu0 0
        %2270 = vmatprep.mubr.bf16.mxu0 0
        %2271 = vmatmul.mubr.bf16.gmra.mrb[0].mxu0 %v2126
        %v2272 = vpop.f32.mrb[0].mxu0
        %v2273 = vadd.f32 0.0, %v2272
        %v2274 = vpop.f32.mrb[0].mxu0
        %v2275 = vpop.f32.mrb[0].mxu0
        %v2276 = vadd.f32 0.0, %v2275
        %v2277 = vpop.f32.mrb[0].mxu0
        %2278 = vmatprep.mubr.bf16.mxu0 0
        %2279 = vmatmul.mubr.bf16.gmra.mrb[0].mxu0 %v2127
        %v2280 = vpop.f32.mrb[0].mxu0
        %v2281 = vadd.f32 0.0, %v2280
        %v2282 = vpop.f32.mrb[0].mxu0
        %v2283 = vpop.f32.mrb[0].mxu0
        %v2284 = vadd.f32 0.0, %v2283
        %v2285 = vpop.f32.mrb[0].mxu0
        %2286 = vmatprep.mubr.bf16.mxu0 0
        %2287 = vmatmul.mubr.bf16.gmra.mrb[0].mxu0 %v2128
        %v2288 = vpop.f32.mrb[0].mxu0
        %v2289 = vadd.f32 0.0, %v2288
        %v2290 = vpop.f32.mrb[0].mxu0
        %v2291 = vpop.f32.mrb[0].mxu0
        %v2292 = vadd.f32 0.0, %v2291
        %v2293 = vpop.f32.mrb[0].mxu0
        %2294 = vmatprep.mubr.bf16.mxu0 0
        %2295 = vmatmul.mubr.bf16.gmra.mrb[0].mxu0 %v2129
        %v2296 = vpop.f32.mrb[0].mxu0
        %v2297 = vadd.f32 0.0, %v2296
        %v2298 = vpop.f32.mrb[0].mxu0
        %v2299 = vpop.f32.mrb[0].mxu0
        %v2300 = vadd.f32 0.0, %v2299
        %v2301 = vpop.f32.mrb[0].mxu0
        %2302 = vmatprep.mubr.bf16.mxu0 0
        %2303 = vmatmul.mubr.bf16.gmra.mrb[0].mxu0 %v2130
        %v2304 = vpop.f32.mrb[0].mxu0
        %v2305 = vadd.f32 0.0, %v2304
        %v2306 = vpop.f32.mrb[0].mxu0
        %v2307 = vpop.f32.mrb[0].mxu0
        %v2308 = vadd.f32 0.0, %v2307
        %v2309 = vpop.f32.mrb[0].mxu0
        %2310 = vmatprep.mubr.bf16.mxu0 0
        %2311 = vmatmul.mubr.bf16.gmra.mrb[0].mxu0 %v2131
        %v2312 = vpop.f32.mrb[0].mxu0
        %v2313 = vadd.f32 0.0, %v2312
        %v2314 = vpop.f32.mrb[0].mxu0
        %v2315 = vpop.f32.mrb[0].mxu0
        %v2316 = vadd.f32 0.0, %v2315
        %v2317 = vpop.f32.mrb[0].mxu0
        %2318 = vmatprep.mubr.bf16.mxu0 0
        %2319 = vmatmul.mubr.bf16.gmra.mrb[0].mxu0 %v2132
        %v2320 = vpop.f32.mrb[0].mxu0
        %v2321 = vadd.f32 0.0, %v2320
        %v2322 = vpop.f32.mrb[0].mxu0
        %v2323 = vpop.f32.mrb[0].mxu0
        %v2324 = vadd.f32 0.0, %v2323
        %v2325 = vpop.f32.mrb[0].mxu0
        %2326 = vmatprep.mubr.bf16.mxu0 0
        %2327 = vmatmul.mubr.bf16.gmra.mrb[0].mxu0 %v2133
        %v2328 = vpop.f32.mrb[0].mxu0
        %v2329 = vadd.f32 0.0, %v2328
        %v2330 = vpop.f32.mrb[0].mxu0
        %v2331 = vpop.f32.mrb[0].mxu0
        %v2332 = vadd.f32 0.0, %v2331
        %v2333 = vpop.f32.mrb[0].mxu0
        %2334 = vmatprep.mubr.bf16.mxu0 0
        %2335 = vmatmul.mubr.bf16.gmra.mrb[0].mxu0 %v2134
        %v2336 = vpop.f32.mrb[0].mxu0
        %v2337 = vadd.f32 0.0, %v2336
        %v2338 = vpop.f32.mrb[0].mxu0
        %v2339 = vpop.f32.mrb[0].mxu0
        %v2340 = vadd.f32 0.0, %v2339
        %v2341 = vpop.f32.mrb[0].mxu0
        %2342 = vmatprep.mubr.bf16.mxu0 0
        %2343 = vmatmul.mubr.bf16.gmra.mrb[0].mxu0 %v2135
        %v2344 = vpop.f32.mrb[0].mxu0
        %v2345 = vadd.f32 0.0, %v2344
        %v2346 = vpop.f32.mrb[0].mxu0
        %v2347 = vpop.f32.mrb[0].mxu0
        %v2348 = vadd.f32 0.0, %v2347
        %v2349 = vpop.f32.mrb[0].mxu0
        %2350 = vmatprep.mubr.bf16.mxu0 0
        %2351 = vmatmul.mubr.bf16.gmra.mrb[0].mxu0 %v2136
        %v2352 = vpop.f32.mrb[0].mxu0
        %v2353 = vadd.f32 0.0, %v2352
        %v2354 = vpop.f32.mrb[0].mxu0
        %v2355 = vpop.f32.mrb[0].mxu0
        %v2356 = vadd.f32 0.0, %v2355
        %v2357 = vpop.f32.mrb[0].mxu0
        %2358 = vmatprep.mubr.bf16.mxu0 0
        %2359 = vmatmul.mubr.bf16.gmra.mrb[0].mxu0 %v2137
        %v2360 = vpop.f32.mrb[0].mxu0
        %v2361 = vadd.f32 0.0, %v2360
        %v2362 = vpop.f32.mrb[0].mxu0
        %v2363 = vpop.f32.mrb[0].mxu0
        %v2364 = vadd.f32 0.0, %v2363
        %v2365 = vpop.f32.mrb[0].mxu0
        %2366 = vmatprep.mubr.bf16.mxu0 0
        %2367 = vmatmul.mubr.bf16.gmra.mrb[0].mxu0 %v2138
        %v2368 = vpop.f32.mrb[0].mxu0
        %v2369 = vadd.f32 0.0, %v2368
        %v2370 = vpop.f32.mrb[0].mxu0
        %v2371 = vpop.f32.mrb[0].mxu0
        %v2372 = vadd.f32 0.0, %v2371
        %v2373 = vpop.f32.mrb[0].mxu0
        %2374 = vmatprep.mubr.bf16.mxu0 0
        %2375 = vmatmul.mubr.bf16.gmra.mrb[0].mxu0 %v2139
        %v2376 = vpop.f32.mrb[0].mxu0
        %v2377 = vadd.f32 0.0, %v2376
        %v2378 = vpop.f32.mrb[0].mxu0
        %v2379 = vpop.f32.mrb[0].mxu0
        %v2380 = vadd.f32 0.0, %v2379
        %v2381 = vpop.f32.mrb[0].mxu0
        %2382 = vmatprep.mubr.bf16.mxu0 0
        %2383 = vmatmul.mubr.bf16.gmra.mrb[0].mxu0 %v2140
        %v2384 = vpop.f32.mrb[0].mxu0
        %v2385 = vadd.f32 0.0, %v2384
        %v2386 = vpop.f32.mrb[0].mxu0
        %v2387 = vpop.f32.mrb[0].mxu0
        %v2388 = vadd.f32 0.0, %v2387
        %v2389 = vpop.f32.mrb[0].mxu0
        %2390 = vmatprep.mubr.bf16.mxu0 0
        %2391 = vmatmul.mubr.bf16.gmra.mrb[0].mxu0 %v2141
        %v2392 = vpop.f32.mrb[0].mxu0
        %v2393 = vadd.f32 0.0, %v2392
        %v2394 = vpop.f32.mrb[0].mxu0
        %v2395 = vpop.f32.mrb[0].mxu0
        %v2396 = vadd.f32 0.0, %v2395
        %v2397 = vpop.f32.mrb[0].mxu0
        %2398 = vmatprep.mubr.bf16.mxu0 0
        %2399 = vmatmul.mubr.bf16.gmra.mrb[0].mxu0 %v2142
        %v2400 = vpop.f32.mrb[0].mxu0
        %v2401 = vadd.f32 0.0, %v2400
        %v2402 = vpop.f32.mrb[0].mxu0
        %v2403 = vpop.f32.mrb[0].mxu0
        %v2404 = vadd.f32 0.0, %v2403
        %v2405 = vpop.f32.mrb[0].mxu0
        %2406 = vmatprep.mubr.bf16.mxu0 0
        %2407 = vmatmul.mubr.bf16.gmra.mrb[0].mxu0 %v2143
        %v2408 = vpop.f32.mrb[0].mxu0
        %v2409 = vadd.f32 0.0, %v2408
        %v2410 = vpop.f32.mrb[0].mxu0
        %v2411 = vpop.f32.mrb[0].mxu0
        %v2412 = vadd.f32 0.0, %v2411
        %v2413 = vpop.f32.mrb[0].mxu0
        %2414 = vmatprep.mubr.bf16.mxu0 0
        %2415 = vmatmul.mubr.bf16.gmra.mrb[0].mxu0 %v2144
        %v2416 = vpop.f32.mrb[0].mxu0
        %v2417 = vadd.f32 0.0, %v2416
        %v2418 = vpop.f32.mrb[0].mxu0
        %v2419 = vpop.f32.mrb[0].mxu0
        %v2420 = vadd.f32 0.0, %v2419
        %v2421 = vpop.f32.mrb[0].mxu0
        %2422 = vmatprep.mubr.bf16.mxu0 0
        %2423 = vmatmul.mubr.bf16.gmra.mrb[0].mxu0 %v2145
        %v2424 = vpop.f32.mrb[0].mxu0
        %v2425 = vadd.f32 0.0, %v2424
        %v2426 = vpop.f32.mrb[0].mxu0
        %v2427 = vpop.f32.mrb[0].mxu0
        %v2428 = vadd.f32 0.0, %v2427
        %v2429 = vpop.f32.mrb[0].mxu0
        %2430 = vmatprep.mubr.bf16.mxu0 0
        %2431 = vmatmul.mubr.bf16.gmra.mrb[0].mxu0 %v2146
        %v2432 = vpop.f32.mrb[0].mxu0
        %v2433 = vadd.f32 0.0, %v2432
        %v2434 = vpop.f32.mrb[0].mxu0
        %v2435 = vpop.f32.mrb[0].mxu0
        %v2436 = vadd.f32 0.0, %v2435
        %v2437 = vpop.f32.mrb[0].mxu0
        %2438 = vmatprep.mubr.bf16.mxu0 0
        %2439 = vmatmul.mubr.bf16.gmra.mrb[0].mxu0 %v2147
        %v2440 = vpop.f32.mrb[0].mxu0
        %v2441 = vadd.f32 0.0, %v2440
        %v2442 = vpop.f32.mrb[0].mxu0
        %v2443 = vpop.f32.mrb[0].mxu0
        %v2444 = vadd.f32 0.0, %v2443
        %v2445 = vpop.f32.mrb[0].mxu0
        %2446 = vmatprep.mubr.bf16.mxu0 0
        %2447 = vmatmul.mubr.bf16.gmra.mrb[0].mxu0 %v2148
        %v2448 = vpop.f32.mrb[0].mxu0
        %v2449 = vadd.f32 0.0, %v2448
        %v2450 = vpop.f32.mrb[0].mxu0
        %v2451 = vpop.f32.mrb[0].mxu0
        %v2452 = vadd.f32 0.0, %v2451
        %v2453 = vpop.f32.mrb[0].mxu0
        %2454 = vmatprep.mubr.bf16.mxu0 0
        %2455 = vmatmul.mubr.bf16.gmra.mrb[0].mxu0 %v2149
        %v2456 = vpop.f32.mrb[0].mxu0
        %v2457 = vadd.f32 0.0, %v2456
        %v2458 = vpop.f32.mrb[0].mxu0
        %v2459 = vpop.f32.mrb[0].mxu0
        %v2460 = vadd.f32 0.0, %v2459
        %v2461 = vpop.f32.mrb[0].mxu0
        %2462 = vmatprep.mubr.bf16.mxu0 0
        %2463 = vmatmul.mubr.bf16.gmra.mrb[0].mxu0 %v2150
        %v2464 = vpop.f32.mrb[0].mxu0
        %v2465 = vadd.f32 0.0, %v2464
        %v2466 = vpop.f32.mrb[0].mxu0
        %v2467 = vpop.f32.mrb[0].mxu0
        %v2468 = vadd.f32 0.0, %v2467
        %v2469 = vpop.f32.mrb[0].mxu0
        %2470 = vmatprep.mubr.bf16.mxu0 0
        %2471 = vmatmul.mubr.bf16.gmra.mrb[0].mxu0 %v2151
        %v2472 = vpop.f32.mrb[0].mxu0
        %v2473 = vadd.f32 0.0, %v2472
        %v2474 = vpop.f32.mrb[0].mxu0
        %v2475 = vpop.f32.mrb[0].mxu0
        %v2476 = vadd.f32 0.0, %v2475
        %v2477 = vpop.f32.mrb[0].mxu0
        %2478 = vmatprep.mubr.bf16.mxu0 0
        %2479 = vmatmul.mubr.bf16.gmra.mrb[0].mxu0 %v2152
        %v2480 = vpop.f32.mrb[0].mxu0
        %v2481 = vadd.f32 0.0, %v2480
        %v2482 = vpop.f32.mrb[0].mxu0
        %v2483 = vpop.f32.mrb[0].mxu0
        %v2484 = vadd.f32 0.0, %v2483
        %v2485 = vpop.f32.mrb[0].mxu0
        %2486 = vmatprep.mubr.bf16.mxu0 0
        %2487 = vmatmul.mubr.bf16.gmra.mrb[0].mxu0 %v2153
        %v2488 = vpop.f32.mrb[0].mxu0
        %v2489 = vadd.f32 0.0, %v2488
        %v2490 = vpop.f32.mrb[0].mxu0
        %v2491 = vpop.f32.mrb[0].mxu0
        %v2492 = vadd.f32 0.0, %v2491
        %v2493 = vpop.f32.mrb[0].mxu0
        %2494 = vmatprep.mubr.bf16.mxu0 0
        %2495 = vmatmul.mubr.bf16.gmra.mrb[0].mxu0 %v2154
        %v2496 = vpop.f32.mrb[0].mxu0
        %v2497 = vadd.f32 0.0, %v2496
        %v2498 = vpop.f32.mrb[0].mxu0
        %v2499 = vpop.f32.mrb[0].mxu0
        %v2500 = vadd.f32 0.0, %v2499
        %v2501 = vpop.f32.mrb[0].mxu0
        %2502 = vmatprep.mubr.bf16.mxu0 0
        %2503 = vmatmul.mubr.bf16.gmra.mrb[0].mxu0 %v2155
        %v2504 = vpop.f32.mrb[0].mxu0
        %v2505 = vadd.f32 0.0, %v2504
        %v2506 = vpop.f32.mrb[0].mxu0
        %v2507 = vpop.f32.mrb[0].mxu0
        %v2508 = vadd.f32 0.0, %v2507
        %v2509 = vpop.f32.mrb[0].mxu0
        %2510 = vmatprep.mubr.bf16.mxu0 0
        %2511 = vmatmul.mubr.bf16.gmra.mrb[0].mxu0 %v2156
        %v2512 = vpop.f32.mrb[0].mxu0
        %v2513 = vadd.f32 0.0, %v2512
        %v2514 = vpop.f32.mrb[0].mxu0
        %v2515 = vpop.f32.mrb[0].mxu0
        %v2516 = vadd.f32 0.0, %v2515
        %v2517 = vpop.f32.mrb[0].mxu0
        %2518 = vmatprep.mubr.bf16.mxu0 0
        %2519 = vmatmul.mubr.bf16.gmra.mrb[0].mxu0 %v2157
        %v2520 = vpop.f32.mrb[0].mxu0
        %v2521 = vadd.f32 0.0, %v2520
        %v2522 = vpop.f32.mrb[0].mxu0
        %v2523 = vpop.f32.mrb[0].mxu0
        %v2524 = vpop.f32.mrb[0].mxu0
        %2525 = vdwg.mxu0
        %v2526 = vadd.f32 %v1731, %v2273
        %v2527 = vadd.f32 %v1734, %v2276
        %v2528 = vadd.f32 %v1739, %v2281
        %v2529 = vadd.f32 %v1742, %v2284
        %v2530 = vadd.f32 %v1747, %v2289
        %v2531 = vadd.f32 %v1750, %v2292
        %v2532 = vadd.f32 %v1755, %v2297
        %v2533 = vadd.f32 %v1758, %v2300
        %v2534 = vadd.f32 %v1763, %v2305
        %v2535 = vadd.f32 %v1766, %v2308
        %v2536 = vadd.f32 %v1771, %v2313
        %v2537 = vadd.f32 %v1774, %v2316
        %v2538 = vadd.f32 %v1779, %v2321
        %v2539 = vadd.f32 %v1782, %v2324
        %v2540 = vadd.f32 %v1787, %v2329
        %v2541 = vadd.f32 %v1790, %v2332
        %v2542 = vadd.f32 %v1795, %v2337
        %v2543 = vadd.f32 %v1798, %v2340
        %v2544 = vadd.f32 %v1803, %v2345
        %v2545 = vadd.f32 %v1806, %v2348
        %v2546 = vadd.f32 %v1811, %v2353
        %v2547 = vadd.f32 %v1814, %v2356
        %v2548 = vadd.f32 %v1819, %v2361
        %v2549 = vadd.f32 %v1822, %v2364
        %v2550 = vadd.f32 %v1827, %v2369
        %v2551 = vadd.f32 %v1830, %v2372
        %v2552 = vadd.f32 %v1835, %v2377
        %v2553 = vadd.f32 %v1838, %v2380
        %v2554 = vadd.f32 %v1843, %v2385
        %v2555 = vadd.f32 %v1846, %v2388
        %v2556 = vadd.f32 %v1851, %v2393
        %v2557 = vadd.f32 %v1854, %v2396
        %v2558 = vadd.f32 %v1859, %v2401
        %v2559 = vadd.f32 %v1862, %v2404
        %v2560 = vadd.f32 %v1867, %v2409
        %v2561 = vadd.f32 %v1870, %v2412
        %v2562 = vadd.f32 %v1875, %v2417
        %v2563 = vadd.f32 %v1878, %v2420
        %v2564 = vadd.f32 %v1883, %v2425
        %v2565 = vadd.f32 %v1886, %v2428
        %v2566 = vadd.f32 %v1891, %v2433
        %v2567 = vadd.f32 %v1894, %v2436
        %v2568 = vadd.f32 %v1899, %v2441
        %v2569 = vadd.f32 %v1902, %v2444
        %v2570 = vadd.f32 %v1907, %v2449
        %v2571 = vadd.f32 %v1910, %v2452
        %v2572 = vadd.f32 %v1915, %v2457
        %v2573 = vadd.f32 %v1918, %v2460
        %v2574 = vadd.f32 %v1923, %v2465
        %v2575 = vadd.f32 %v1926, %v2468
        %v2576 = vadd.f32 %v1931, %v2473
        %v2577 = vadd.f32 %v1934, %v2476
        %v2578 = vadd.f32 %v1939, %v2481
        %v2579 = vadd.f32 %v1942, %v2484
        %v2580 = vadd.f32 %v1947, %v2489
        %v2581 = vadd.f32 %v1950, %v2492
        %v2582 = vadd.f32 %v1955, %v2497
        %v2583 = vadd.f32 %v1958, %v2500
        %v2584 = vadd.f32 %v1963, %v2505
        %v2585 = vadd.f32 %v1966, %v2508
        %v2586 = vadd.f32 %v1971, %v2513
        %v2587 = vadd.f32 %v1974, %v2516
        %v2588 = vadd.f32 %v1979, %v2521
        %v2589 = vld [vmem:[%s6] sm:$0x1]
        %v2591 = vlaneseq
        %v2592 = vshrl.u32 %v2591, 7
        %v2593 = vsub.s32 0, %v2592
        %v2594 = vrot.slane %v2589, %v2593
        %v2596 = vadd.f32 %v2526, %v2594
        %v2597 = vadd.f32 %v2527, %v2594
        %v2598 = vadd.f32 %v2528, %v2594
        %v2599 = vadd.f32 %v2529, %v2594
        %v2600 = vadd.f32 %v2530, %v2594
        %v2601 = vadd.f32 %v2531, %v2594
        %v2602 = vadd.f32 %v2532, %v2594
        %v2603 = vadd.f32 %v2533, %v2594
        %v2604 = vadd.f32 %v2534, %v2594
        %v2605 = vadd.f32 %v2535, %v2594
        %v2606 = vadd.f32 %v2536, %v2594
        %v2607 = vadd.f32 %v2537, %v2594
        %v2608 = vadd.f32 %v2538, %v2594
        %v2609 = vadd.f32 %v2539, %v2594
        %v2610 = vadd.f32 %v2540, %v2594
        %v2611 = vadd.f32 %v2541, %v2594
        %v2612 = vadd.f32 %v2542, %v2594
        %v2613 = vadd.f32 %v2543, %v2594
        %v2614 = vadd.f32 %v2544, %v2594
        %v2615 = vadd.f32 %v2545, %v2594
        %v2616 = vadd.f32 %v2546, %v2594
        %v2617 = vadd.f32 %v2547, %v2594
        %v2618 = vadd.f32 %v2548, %v2594
        %v2619 = vadd.f32 %v2549, %v2594
        %v2620 = vadd.f32 %v2550, %v2594
        %v2621 = vadd.f32 %v2551, %v2594
        %v2622 = vadd.f32 %v2552, %v2594
        %v2623 = vadd.f32 %v2553, %v2594
        %v2624 = vadd.f32 %v2554, %v2594
        %v2625 = vadd.f32 %v2555, %v2594
        %v2626 = vadd.f32 %v2556, %v2594
        %v2627 = vadd.f32 %v2557, %v2594
        %v2628 = vadd.f32 %v2558, %v2594
        %v2629 = vadd.f32 %v2559, %v2594
        %v2630 = vadd.f32 %v2560, %v2594
        %v2631 = vadd.f32 %v2561, %v2594
        %v2632 = vadd.f32 %v2562, %v2594
        %v2633 = vadd.f32 %v2563, %v2594
        %v2634 = vadd.f32 %v2564, %v2594
        %v2635 = vadd.f32 %v2565, %v2594
        %v2636 = vadd.f32 %v2566, %v2594
        %v2637 = vadd.f32 %v2567, %v2594
        %v2638 = vadd.f32 %v2568, %v2594
        %v2639 = vadd.f32 %v2569, %v2594
        %v2640 = vadd.f32 %v2570, %v2594
        %v2641 = vadd.f32 %v2571, %v2594
        %v2642 = vadd.f32 %v2572, %v2594
        %v2643 = vadd.f32 %v2573, %v2594
        %v2644 = vadd.f32 %v2574, %v2594
        %v2645 = vadd.f32 %v2575, %v2594
        %v2646 = vadd.f32 %v2576, %v2594
        %v2647 = vadd.f32 %v2577, %v2594
        %v2648 = vadd.f32 %v2578, %v2594
        %v2649 = vadd.f32 %v2579, %v2594
        %v2650 = vadd.f32 %v2580, %v2594
        %v2651 = vadd.f32 %v2581, %v2594
        %v2652 = vadd.f32 %v2582, %v2594
        %v2653 = vadd.f32 %v2583, %v2594
        %v2654 = vadd.f32 %v2584, %v2594
        %v2655 = vadd.f32 %v2585, %v2594
        %v2656 = vadd.f32 %v2586, %v2594
        %v2657 = vadd.f32 %v2587, %v2594
        %v2658 = vadd.f32 %v2588, %v2594
        %v2659 = vmax.f32 %v2596, 0.0
        %v2660 = vmax.f32 %v2597, 0.0
        %v2661 = vmax.f32 %v2598, 0.0
        %v2662 = vmax.f32 %v2599, 0.0
        %v2663 = vmax.f32 %v2600, 0.0
        %v2664 = vmax.f32 %v2601, 0.0
        %v2665 = vmax.f32 %v2602, 0.0
        %v2666 = vmax.f32 %v2603, 0.0
        %v2667 = vmax.f32 %v2604, 0.0
        %v2668 = vmax.f32 %v2605, 0.0
        %v2669 = vmax.f32 %v2606, 0.0
        %v2670 = vmax.f32 %v2607, 0.0
        %v2671 = vmax.f32 %v2608, 0.0
        %v2672 = vmax.f32 %v2609, 0.0
        %v2673 = vmax.f32 %v2610, 0.0
        %v2674 = vmax.f32 %v2611, 0.0
        %v2675 = vmax.f32 %v2612, 0.0
        %v2676 = vmax.f32 %v2613, 0.0
        %v2677 = vmax.f32 %v2614, 0.0
        %v2678 = vmax.f32 %v2615, 0.0
        %v2679 = vmax.f32 %v2616, 0.0
        %v2680 = vmax.f32 %v2617, 0.0
        %v2681 = vmax.f32 %v2618, 0.0
        %v2682 = vmax.f32 %v2619, 0.0
        %v2683 = vmax.f32 %v2620, 0.0
        %v2684 = vmax.f32 %v2621, 0.0
        %v2685 = vmax.f32 %v2622, 0.0
        %v2686 = vmax.f32 %v2623, 0.0
        %v2687 = vmax.f32 %v2624, 0.0
        %v2688 = vmax.f32 %v2625, 0.0
        %v2689 = vmax.f32 %v2626, 0.0
        %v2690 = vmax.f32 %v2627, 0.0
        %v2691 = vmax.f32 %v2628, 0.0
        %v2692 = vmax.f32 %v2629, 0.0
        %v2693 = vmax.f32 %v2630, 0.0
        %v2694 = vmax.f32 %v2631, 0.0
        %v2695 = vmax.f32 %v2632, 0.0
        %v2696 = vmax.f32 %v2633, 0.0
        %v2697 = vmax.f32 %v2634, 0.0
        %v2698 = vmax.f32 %v2635, 0.0
        %v2699 = vmax.f32 %v2636, 0.0
        %v2700 = vmax.f32 %v2637, 0.0
        %v2701 = vmax.f32 %v2638, 0.0
        %v2702 = vmax.f32 %v2639, 0.0
        %v2703 = vmax.f32 %v2640, 0.0
        %v2704 = vmax.f32 %v2641, 0.0
        %v2705 = vmax.f32 %v2642, 0.0
        %v2706 = vmax.f32 %v2643, 0.0
        %v2707 = vmax.f32 %v2644, 0.0
        %v2708 = vmax.f32 %v2645, 0.0
        %v2709 = vmax.f32 %v2646, 0.0
        %v2710 = vmax.f32 %v2647, 0.0
        %v2711 = vmax.f32 %v2648, 0.0
        %v2712 = vmax.f32 %v2649, 0.0
        %v2713 = vmax.f32 %v2650, 0.0
        %v2714 = vmax.f32 %v2651, 0.0
        %v2715 = vmax.f32 %v2652, 0.0
        %v2716 = vmax.f32 %v2653, 0.0
        %v2717 = vmax.f32 %v2654, 0.0
        %v2718 = vmax.f32 %v2655, 0.0
        %v2719 = vmax.f32 %v2656, 0.0
        %v2720 = vmax.f32 %v2657, 0.0
        %v2721 = vmax.f32 %v2658, 0.0
        %v2722 = vpack.c.bf16 %v2660, %v2659
        %v2723 = vpack.c.bf16 %v2662, %v2661
        %v2724 = vpack.c.bf16 %v2664, %v2663
        %v2725 = vpack.c.bf16 %v2666, %v2665
        %v2726 = vpack.c.bf16 %v2668, %v2667
        %v2727 = vpack.c.bf16 %v2670, %v2669
        %v2728 = vpack.c.bf16 %v2672, %v2671
        %v2729 = vpack.c.bf16 %v2674, %v2673
        %v2730 = vpack.c.bf16 %v2676, %v2675
        %v2731 = vpack.c.bf16 %v2678, %v2677
        %v2732 = vpack.c.bf16 %v2680, %v2679
        %v2733 = vpack.c.bf16 %v2682, %v2681
        %v2734 = vpack.c.bf16 %v2684, %v2683
        %v2735 = vpack.c.bf16 %v2686, %v2685
        %v2736 = vpack.c.bf16 %v2688, %v2687
        %v2737 = vpack.c.bf16 %v2690, %v2689
        %v2738 = vpack.c.bf16 %v2692, %v2691
        %v2739 = vpack.c.bf16 %v2694, %v2693
        %v2740 = vpack.c.bf16 %v2696, %v2695
        %v2741 = vpack.c.bf16 %v2698, %v2697
        %v2742 = vpack.c.bf16 %v2700, %v2699
        %v2743 = vpack.c.bf16 %v2702, %v2701
        %v2744 = vpack.c.bf16 %v2704, %v2703
        %v2745 = vpack.c.bf16 %v2706, %v2705
        %v2746 = vpack.c.bf16 %v2708, %v2707
        %v2747 = vpack.c.bf16 %v2710, %v2709
        %v2748 = vpack.c.bf16 %v2712, %v2711
        %v2749 = vpack.c.bf16 %v2714, %v2713
        %v2750 = vpack.c.bf16 %v2716, %v2715
        %v2751 = vpack.c.bf16 %v2718, %v2717
        %v2752 = vpack.c.bf16 %v2720, %v2719
        %v2753 = vpack.c.bf16 %v2721, %v2721
        %v2754 = vld [vmem:[#allocation13] sm:$0xf]
        %v2755 = vld [vmem:[#allocation13 + $0x4] sm:$0xf]
        %v2756 = vld [vmem:[#allocation13 + $0x8] sm:$0xf]
        %v2757 = vld [vmem:[#allocation13 + $0xc] sm:$0xf]
        %v2758 = vld [vmem:[#allocation13 + $0x10] sm:$0xf]
        %v2759 = vld [vmem:[#allocation13 + $0x14] sm:$0xf]
        %v2760 = vld [vmem:[#allocation13 + $0x18] sm:$0xf]
        %v2761 = vld [vmem:[#allocation13 + $0x1c] sm:$0xf]
        %v2762 = vld [vmem:[#allocation13 + $0x20] sm:$0xf]
        %v2763 = vld [vmem:[#allocation13 + $0x24] sm:$0xf]
        %v2764 = vld [vmem:[#allocation13 + $0x28] sm:$0xf]
        %v2765 = vld [vmem:[#allocation13 + $0x2c] sm:$0xf]
        %v2766 = vld [vmem:[#allocation13 + $0x30] sm:$0xf]
        %v2767 = vld [vmem:[#allocation13 + $0x34] sm:$0xf]
        %v2768 = vld [vmem:[#allocation13 + $0x38] sm:$0xf]
        %v2769 = vld [vmem:[#allocation13 + $0x3c] sm:$0xf]
        %v2770 = vld [vmem:[%s8] sm:$0x1]
        %v2772 = vlaneseq
        %v2773 = vshrl.u32 %v2772, 7
        %v2774 = vsub.s32 0, %v2773
        %v2775 = vrot.slane %v2770, %v2774
        %v2793 = vunpack.c.l.b16 %v2754
        %v2794 = vunpack.c.l.b16 %v2755
        %v2795 = vunpack.c.l.b16 %v2756
        %v2796 = vunpack.c.l.b16 %v2757
        %v2797 = vunpack.c.l.b16 %v2758
        %v2798 = vunpack.c.l.b16 %v2759
        %v2799 = vunpack.c.l.b16 %v2760
        %v2800 = vunpack.c.l.b16 %v2761
        %v2801 = vunpack.c.l.b16 %v2762
        %v2802 = vunpack.c.l.b16 %v2763
        %v2803 = vunpack.c.l.b16 %v2764
        %v2804 = vunpack.c.l.b16 %v2765
        %v2805 = vunpack.c.l.b16 %v2766
        %v2806 = vunpack.c.l.b16 %v2767
        %v2807 = vunpack.c.l.b16 %v2768
        %v2808 = vunpack.c.l.b16 %v2769
        %v2809 = vpack.c.b16 %v2794, %v2793
        %v2810 = vpack.c.b16 %v2796, %v2795
        %v2811 = vpack.c.b16 %v2798, %v2797
        %v2812 = vpack.c.b16 %v2800, %v2799
        %v2813 = vpack.c.b16 %v2802, %v2801
        %v2814 = vpack.c.b16 %v2804, %v2803
        %v2815 = vpack.c.b16 %v2806, %v2805
        %v2816 = vpack.c.b16 %v2808, %v2807
        %2825 = vmatprep.subr.bf16.mxu0 0
        %2826 = vmatpush1.bf16.msra.mxu0 %v2809
        %2827 = vmatprep.subr.bf16.mxu0 0
        %2828 = vmatpush1.bf16.msra.mxu0 %v2810
        %2829 = vmatprep.subr.bf16.mxu0 0
        %2830 = vmatpush1.bf16.msra.mxu0 %v2811
        %2831 = vmatprep.subr.bf16.mxu0 0
        %2832 = vmatpush1.bf16.msra.mxu0 %v2812
        %2833 = vmatprep.subr.bf16.mxu0 0
        %2834 = vmatpush1.bf16.msra.mxu0 %v2813
        %2835 = vmatprep.subr.bf16.mxu0 0
        %2836 = vmatpush1.bf16.msra.mxu0 %v2814
        %2837 = vmatprep.subr.bf16.mxu0 0
        %2838 = vmatpush1.bf16.msra.mxu0 %v2815
        %2839 = vmatprep.subr.bf16.mxu0 0
        %2840 = vmatpush1.bf16.msra.mxu0 %v2816
        %2841 = vmatprep.subr.bf16.mxu0 0
        %2842 = vmatpush1.bf16.msra.mxu0 0
        %2843 = vmatprep.subr.bf16.mxu0 0
        %2844 = vmatpush1.bf16.msra.mxu0 0
        %2845 = vmatprep.subr.bf16.mxu0 0
        %2846 = vmatpush1.bf16.msra.mxu0 0
        %2847 = vmatprep.subr.bf16.mxu0 0
        %2848 = vmatpush1.bf16.msra.mxu0 0
        %2849 = vmatprep.subr.bf16.mxu0 0
        %2850 = vmatpush1.bf16.msra.mxu0 0
        %2851 = vmatprep.subr.bf16.mxu0 0
        %2852 = vmatpush1.bf16.msra.mxu0 0
        %2853 = vmatprep.subr.bf16.mxu0 0
        %2854 = vmatpush1.bf16.msra.mxu0 0
        %2855 = vmatprep.subr.bf16.mxu0 0
        %2856 = vmatpush1.bf16.msra.mxu0 0
        %2857 = vmatprep.mubr.bf16.mxu0 0
        %2858 = vmatmul.mubr.bf16.gmra.mrb[0].mxu0 %v2722
        %v2859 = vpop.f32.mrb[0].mxu0
        %v2860 = vadd.f32 %v2775, %v2859
        %v2861 = vpop.f32.mrb[0].mxu0
        %v2862 = vpop.f32.mrb[0].mxu0
        %v2863 = vadd.f32 %v2775, %v2862
        %v2864 = vpop.f32.mrb[0].mxu0
        %2865 = vmatprep.mubr.bf16.mxu0 0
        %2866 = vmatmul.mubr.bf16.gmra.mrb[0].mxu0 %v2723
        %v2867 = vpop.f32.mrb[0].mxu0
        %v2868 = vadd.f32 %v2775, %v2867
        %v2869 = vpop.f32.mrb[0].mxu0
        %v2870 = vpop.f32.mrb[0].mxu0
        %v2871 = vadd.f32 %v2775, %v2870
        %v2872 = vpop.f32.mrb[0].mxu0
        %2873 = vmatprep.mubr.bf16.mxu0 0
        %2874 = vmatmul.mubr.bf16.gmra.mrb[0].mxu0 %v2724
        %v2875 = vpop.f32.mrb[0].mxu0
        %v2876 = vadd.f32 %v2775, %v2875
        %v2877 = vpop.f32.mrb[0].mxu0
        %v2878 = vpop.f32.mrb[0].mxu0
        %v2879 = vadd.f32 %v2775, %v2878
        %v2880 = vpop.f32.mrb[0].mxu0
        %2881 = vmatprep.mubr.bf16.mxu0 0
        %2882 = vmatmul.mubr.bf16.gmra.mrb[0].mxu0 %v2725
        %v2883 = vpop.f32.mrb[0].mxu0
        %v2884 = vadd.f32 %v2775, %v2883
        %v2885 = vpop.f32.mrb[0].mxu0
        %v2886 = vpop.f32.mrb[0].mxu0
        %v2887 = vadd.f32 %v2775, %v2886
        %v2888 = vpop.f32.mrb[0].mxu0
        %2889 = vmatprep.mubr.bf16.mxu0 0
        %2890 = vmatmul.mubr.bf16.gmra.mrb[0].mxu0 %v2726
        %v2891 = vpop.f32.mrb[0].mxu0
        %v2892 = vadd.f32 %v2775, %v2891
        %v2893 = vpop.f32.mrb[0].mxu0
        %v2894 = vpop.f32.mrb[0].mxu0
        %v2895 = vadd.f32 %v2775, %v2894
        %v2896 = vpop.f32.mrb[0].mxu0
        %2897 = vmatprep.mubr.bf16.mxu0 0
        %2898 = vmatmul.mubr.bf16.gmra.mrb[0].mxu0 %v2727
        %v2899 = vpop.f32.mrb[0].mxu0
        %v2900 = vadd.f32 %v2775, %v2899
        %v2901 = vpop.f32.mrb[0].mxu0
        %v2902 = vpop.f32.mrb[0].mxu0
        %v2903 = vadd.f32 %v2775, %v2902
        %v2904 = vpop.f32.mrb[0].mxu0
        %2905 = vmatprep.mubr.bf16.mxu0 0
        %2906 = vmatmul.mubr.bf16.gmra.mrb[0].mxu0 %v2728
        %v2907 = vpop.f32.mrb[0].mxu0
        %v2908 = vadd.f32 %v2775, %v2907
        %v2909 = vpop.f32.mrb[0].mxu0
        %v2910 = vpop.f32.mrb[0].mxu0
        %v2911 = vadd.f32 %v2775, %v2910
        %v2912 = vpop.f32.mrb[0].mxu0
        %2913 = vmatprep.mubr.bf16.mxu0 0
        %2914 = vmatmul.mubr.bf16.gmra.mrb[0].mxu0 %v2729
        %v2915 = vpop.f32.mrb[0].mxu0
        %v2916 = vadd.f32 %v2775, %v2915
        %v2917 = vpop.f32.mrb[0].mxu0
        %v2918 = vpop.f32.mrb[0].mxu0
        %v2919 = vadd.f32 %v2775, %v2918
        %v2920 = vpop.f32.mrb[0].mxu0
        %2921 = vmatprep.mubr.bf16.mxu0 0
        %2922 = vmatmul.mubr.bf16.gmra.mrb[0].mxu0 %v2730
        %v2923 = vpop.f32.mrb[0].mxu0
        %v2924 = vadd.f32 %v2775, %v2923
        %v2925 = vpop.f32.mrb[0].mxu0
        %v2926 = vpop.f32.mrb[0].mxu0
        %v2927 = vadd.f32 %v2775, %v2926
        %v2928 = vpop.f32.mrb[0].mxu0
        %2929 = vmatprep.mubr.bf16.mxu0 0
        %2930 = vmatmul.mubr.bf16.gmra.mrb[0].mxu0 %v2731
        %v2931 = vpop.f32.mrb[0].mxu0
        %v2932 = vadd.f32 %v2775, %v2931
        %v2933 = vpop.f32.mrb[0].mxu0
        %v2934 = vpop.f32.mrb[0].mxu0
        %v2935 = vadd.f32 %v2775, %v2934
        %v2936 = vpop.f32.mrb[0].mxu0
        %2937 = vmatprep.mubr.bf16.mxu0 0
        %2938 = vmatmul.mubr.bf16.gmra.mrb[0].mxu0 %v2732
        %v2939 = vpop.f32.mrb[0].mxu0
        %v2940 = vadd.f32 %v2775, %v2939
        %v2941 = vpop.f32.mrb[0].mxu0
        %v2942 = vpop.f32.mrb[0].mxu0
        %v2943 = vadd.f32 %v2775, %v2942
        %v2944 = vpop.f32.mrb[0].mxu0
        %2945 = vmatprep.mubr.bf16.mxu0 0
        %2946 = vmatmul.mubr.bf16.gmra.mrb[0].mxu0 %v2733
        %v2947 = vpop.f32.mrb[0].mxu0
        %v2948 = vadd.f32 %v2775, %v2947
        %v2949 = vpop.f32.mrb[0].mxu0
        %v2950 = vpop.f32.mrb[0].mxu0
        %v2951 = vadd.f32 %v2775, %v2950
        %v2952 = vpop.f32.mrb[0].mxu0
        %2953 = vmatprep.mubr.bf16.mxu0 0
        %2954 = vmatmul.mubr.bf16.gmra.mrb[0].mxu0 %v2734
        %v2955 = vpop.f32.mrb[0].mxu0
        %v2956 = vadd.f32 %v2775, %v2955
        %v2957 = vpop.f32.mrb[0].mxu0
        %v2958 = vpop.f32.mrb[0].mxu0
        %v2959 = vadd.f32 %v2775, %v2958
        %v2960 = vpop.f32.mrb[0].mxu0
        %2961 = vmatprep.mubr.bf16.mxu0 0
        %2962 = vmatmul.mubr.bf16.gmra.mrb[0].mxu0 %v2735
        %v2963 = vpop.f32.mrb[0].mxu0
        %v2964 = vadd.f32 %v2775, %v2963
        %v2965 = vpop.f32.mrb[0].mxu0
        %v2966 = vpop.f32.mrb[0].mxu0
        %v2967 = vadd.f32 %v2775, %v2966
        %v2968 = vpop.f32.mrb[0].mxu0
        %2969 = vmatprep.mubr.bf16.mxu0 0
        %2970 = vmatmul.mubr.bf16.gmra.mrb[0].mxu0 %v2736
        %v2971 = vpop.f32.mrb[0].mxu0
        %v2972 = vadd.f32 %v2775, %v2971
        %v2973 = vpop.f32.mrb[0].mxu0
        %v2974 = vpop.f32.mrb[0].mxu0
        %v2975 = vadd.f32 %v2775, %v2974
        %v2976 = vpop.f32.mrb[0].mxu0
        %2977 = vmatprep.mubr.bf16.mxu0 0
        %2978 = vmatmul.mubr.bf16.gmra.mrb[0].mxu0 %v2737
        %v2979 = vpop.f32.mrb[0].mxu0
        %v2980 = vadd.f32 %v2775, %v2979
        %v2981 = vpop.f32.mrb[0].mxu0
        %v2982 = vpop.f32.mrb[0].mxu0
        %v2983 = vadd.f32 %v2775, %v2982
        %v2984 = vpop.f32.mrb[0].mxu0
        %2985 = vmatprep.mubr.bf16.mxu0 0
        %2986 = vmatmul.mubr.bf16.gmra.mrb[0].mxu0 %v2738
        %v2987 = vpop.f32.mrb[0].mxu0
        %v2988 = vadd.f32 %v2775, %v2987
        %v2989 = vpop.f32.mrb[0].mxu0
        %v2990 = vpop.f32.mrb[0].mxu0
        %v2991 = vadd.f32 %v2775, %v2990
        %v2992 = vpop.f32.mrb[0].mxu0
        %2993 = vmatprep.mubr.bf16.mxu0 0
        %2994 = vmatmul.mubr.bf16.gmra.mrb[0].mxu0 %v2739
        %v2995 = vpop.f32.mrb[0].mxu0
        %v2996 = vadd.f32 %v2775, %v2995
        %v2997 = vpop.f32.mrb[0].mxu0
        %v2998 = vpop.f32.mrb[0].mxu0
        %v2999 = vadd.f32 %v2775, %v2998
        %v3000 = vpop.f32.mrb[0].mxu0
        %3001 = vmatprep.mubr.bf16.mxu0 0
        %3002 = vmatmul.mubr.bf16.gmra.mrb[0].mxu0 %v2740
        %v3003 = vpop.f32.mrb[0].mxu0
        %v3004 = vadd.f32 %v2775, %v3003
        %v3005 = vpop.f32.mrb[0].mxu0
        %v3006 = vpop.f32.mrb[0].mxu0
        %v3007 = vadd.f32 %v2775, %v3006
        %v3008 = vpop.f32.mrb[0].mxu0
        %3009 = vmatprep.mubr.bf16.mxu0 0
        %3010 = vmatmul.mubr.bf16.gmra.mrb[0].mxu0 %v2741
        %v3011 = vpop.f32.mrb[0].mxu0
        %v3012 = vadd.f32 %v2775, %v3011
        %v3013 = vpop.f32.mrb[0].mxu0
        %v3014 = vpop.f32.mrb[0].mxu0
        %v3015 = vadd.f32 %v2775, %v3014
        %v3016 = vpop.f32.mrb[0].mxu0
        %3017 = vmatprep.mubr.bf16.mxu0 0
        %3018 = vmatmul.mubr.bf16.gmra.mrb[0].mxu0 %v2742
        %v3019 = vpop.f32.mrb[0].mxu0
        %v3020 = vadd.f32 %v2775, %v3019
        %v3021 = vpop.f32.mrb[0].mxu0
        %v3022 = vpop.f32.mrb[0].mxu0
        %v3023 = vadd.f32 %v2775, %v3022
        %v3024 = vpop.f32.mrb[0].mxu0
        %3025 = vmatprep.mubr.bf16.mxu0 0
        %3026 = vmatmul.mubr.bf16.gmra.mrb[0].mxu0 %v2743
        %v3027 = vpop.f32.mrb[0].mxu0
        %v3028 = vadd.f32 %v2775, %v3027
        %v3029 = vpop.f32.mrb[0].mxu0
        %v3030 = vpop.f32.mrb[0].mxu0
        %v3031 = vadd.f32 %v2775, %v3030
        %v3032 = vpop.f32.mrb[0].mxu0
        %3033 = vmatprep.mubr.bf16.mxu0 0
        %3034 = vmatmul.mubr.bf16.gmra.mrb[0].mxu0 %v2744
        %v3035 = vpop.f32.mrb[0].mxu0
        %v3036 = vadd.f32 %v2775, %v3035
        %v3037 = vpop.f32.mrb[0].mxu0
        %v3038 = vpop.f32.mrb[0].mxu0
        %v3039 = vadd.f32 %v2775, %v3038
        %v3040 = vpop.f32.mrb[0].mxu0
        %3041 = vmatprep.mubr.bf16.mxu0 0
        %3042 = vmatmul.mubr.bf16.gmra.mrb[0].mxu0 %v2745
        %v3043 = vpop.f32.mrb[0].mxu0
        %v3044 = vadd.f32 %v2775, %v3043
        %v3045 = vpop.f32.mrb[0].mxu0
        %v3046 = vpop.f32.mrb[0].mxu0
        %v3047 = vadd.f32 %v2775, %v3046
        %v3048 = vpop.f32.mrb[0].mxu0
        %3049 = vmatprep.mubr.bf16.mxu0 0
        %3050 = vmatmul.mubr.bf16.gmra.mrb[0].mxu0 %v2746
        %v3051 = vpop.f32.mrb[0].mxu0
        %v3052 = vadd.f32 %v2775, %v3051
        %v3053 = vpop.f32.mrb[0].mxu0
        %v3054 = vpop.f32.mrb[0].mxu0
        %v3055 = vadd.f32 %v2775, %v3054
        %v3056 = vpop.f32.mrb[0].mxu0
        %3057 = vmatprep.mubr.bf16.mxu0 0
        %3058 = vmatmul.mubr.bf16.gmra.mrb[0].mxu0 %v2747
        %v3059 = vpop.f32.mrb[0].mxu0
        %v3060 = vadd.f32 %v2775, %v3059
        %v3061 = vpop.f32.mrb[0].mxu0
        %v3062 = vpop.f32.mrb[0].mxu0
        %v3063 = vadd.f32 %v2775, %v3062
        %v3064 = vpop.f32.mrb[0].mxu0
        %3065 = vmatprep.mubr.bf16.mxu0 0
        %3066 = vmatmul.mubr.bf16.gmra.mrb[0].mxu0 %v2748
        %v3067 = vpop.f32.mrb[0].mxu0
        %v3068 = vadd.f32 %v2775, %v3067
        %v3069 = vpop.f32.mrb[0].mxu0
        %v3070 = vpop.f32.mrb[0].mxu0
        %v3071 = vadd.f32 %v2775, %v3070
        %v3072 = vpop.f32.mrb[0].mxu0
        %3073 = vmatprep.mubr.bf16.mxu0 0
        %3074 = vmatmul.mubr.bf16.gmra.mrb[0].mxu0 %v2749
        %v3075 = vpop.f32.mrb[0].mxu0
        %v3076 = vadd.f32 %v2775, %v3075
        %v3077 = vpop.f32.mrb[0].mxu0
        %v3078 = vpop.f32.mrb[0].mxu0
        %v3079 = vadd.f32 %v2775, %v3078
        %v3080 = vpop.f32.mrb[0].mxu0
        %3081 = vmatprep.mubr.bf16.mxu0 0
        %3082 = vmatmul.mubr.bf16.gmra.mrb[0].mxu0 %v2750
        %v3083 = vpop.f32.mrb[0].mxu0
        %v3084 = vadd.f32 %v2775, %v3083
        %v3085 = vpop.f32.mrb[0].mxu0
        %v3086 = vpop.f32.mrb[0].mxu0
        %v3087 = vadd.f32 %v2775, %v3086
        %v3088 = vpop.f32.mrb[0].mxu0
        %3089 = vmatprep.mubr.bf16.mxu0 0
        %3090 = vmatmul.mubr.bf16.gmra.mrb[0].mxu0 %v2751
        %v3091 = vpop.f32.mrb[0].mxu0
        %v3092 = vadd.f32 %v2775, %v3091
        %v3093 = vpop.f32.mrb[0].mxu0
        %v3094 = vpop.f32.mrb[0].mxu0
        %v3095 = vadd.f32 %v2775, %v3094
        %v3096 = vpop.f32.mrb[0].mxu0
        %3097 = vmatprep.mubr.bf16.mxu0 0
        %3098 = vmatmul.mubr.bf16.gmra.mrb[0].mxu0 %v2752
        %v3099 = vpop.f32.mrb[0].mxu0
        %v3100 = vadd.f32 %v2775, %v3099
        %v3101 = vpop.f32.mrb[0].mxu0
        %v3102 = vpop.f32.mrb[0].mxu0
        %v3103 = vadd.f32 %v2775, %v3102
        %v3104 = vpop.f32.mrb[0].mxu0
        %3105 = vmatprep.mubr.bf16.mxu0 0
        %3106 = vmatmul.mubr.bf16.gmra.mrb[0].mxu0 %v2753
        %v3107 = vpop.f32.mrb[0].mxu0
        %v3108 = vadd.f32 %v2775, %v3107
        %v3109 = vpop.f32.mrb[0].mxu0
        %v3110 = vpop.f32.mrb[0].mxu0
        %v3111 = vpop.f32.mrb[0].mxu0
        %3112 = vdwg.mxu0
        %v3113 = vmax.f32 %v2860, 0.0
        %v3114 = vmax.f32 %v2863, 0.0
        %v3115 = vmax.f32 %v2868, 0.0
        %v3116 = vmax.f32 %v2871, 0.0
        %v3117 = vmax.f32 %v2876, 0.0
        %v3118 = vmax.f32 %v2879, 0.0
        %v3119 = vmax.f32 %v2884, 0.0
        %v3120 = vmax.f32 %v2887, 0.0
        %v3121 = vmax.f32 %v2892, 0.0
        %v3122 = vmax.f32 %v2895, 0.0
        %v3123 = vmax.f32 %v2900, 0.0
        %v3124 = vmax.f32 %v2903, 0.0
        %v3125 = vmax.f32 %v2908, 0.0
        %v3126 = vmax.f32 %v2911, 0.0
        %v3127 = vmax.f32 %v2916, 0.0
        %v3128 = vmax.f32 %v2919, 0.0
        %v3129 = vmax.f32 %v2924, 0.0
        %v3130 = vmax.f32 %v2927, 0.0
        %v3131 = vmax.f32 %v2932, 0.0
        %v3132 = vmax.f32 %v2935, 0.0
        %v3133 = vmax.f32 %v2940, 0.0
        %v3134 = vmax.f32 %v2943, 0.0
        %v3135 = vmax.f32 %v2948, 0.0
        %v3136 = vmax.f32 %v2951, 0.0
        %v3137 = vmax.f32 %v2956, 0.0
        %v3138 = vmax.f32 %v2959, 0.0
        %v3139 = vmax.f32 %v2964, 0.0
        %v3140 = vmax.f32 %v2967, 0.0
        %v3141 = vmax.f32 %v2972, 0.0
        %v3142 = vmax.f32 %v2975, 0.0
        %v3143 = vmax.f32 %v2980, 0.0
        %v3144 = vmax.f32 %v2983, 0.0
        %v3145 = vmax.f32 %v2988, 0.0
        %v3146 = vmax.f32 %v2991, 0.0
        %v3147 = vmax.f32 %v2996, 0.0
        %v3148 = vmax.f32 %v2999, 0.0
        %v3149 = vmax.f32 %v3004, 0.0
        %v3150 = vmax.f32 %v3007, 0.0
        %v3151 = vmax.f32 %v3012, 0.0
        %v3152 = vmax.f32 %v3015, 0.0
        %v3153 = vmax.f32 %v3020, 0.0
        %v3154 = vmax.f32 %v3023, 0.0
        %v3155 = vmax.f32 %v3028, 0.0
        %v3156 = vmax.f32 %v3031, 0.0
        %v3157 = vmax.f32 %v3036, 0.0
        %v3158 = vmax.f32 %v3039, 0.0
        %v3159 = vmax.f32 %v3044, 0.0
        %v3160 = vmax.f32 %v3047, 0.0
        %v3161 = vmax.f32 %v3052, 0.0
        %v3162 = vmax.f32 %v3055, 0.0
        %v3163 = vmax.f32 %v3060, 0.0
        %v3164 = vmax.f32 %v3063, 0.0
        %v3165 = vmax.f32 %v3068, 0.0
        %v3166 = vmax.f32 %v3071, 0.0
        %v3167 = vmax.f32 %v3076, 0.0
        %v3168 = vmax.f32 %v3079, 0.0
        %v3169 = vmax.f32 %v3084, 0.0
        %v3170 = vmax.f32 %v3087, 0.0
        %v3171 = vmax.f32 %v3092, 0.0
        %v3172 = vmax.f32 %v3095, 0.0
        %v3173 = vmax.f32 %v3100, 0.0
        %v3174 = vmax.f32 %v3103, 0.0
        %v3175 = vmax.f32 %v3108, 0.0
        %v3176 = vpack.c.bf16 %v3114, %v3113
        %v3177 = vpack.c.bf16 %v3116, %v3115
        %v3178 = vpack.c.bf16 %v3118, %v3117
        %v3179 = vpack.c.bf16 %v3120, %v3119
        %v3180 = vpack.c.bf16 %v3122, %v3121
        %v3181 = vpack.c.bf16 %v3124, %v3123
        %v3182 = vpack.c.bf16 %v3126, %v3125
        %v3183 = vpack.c.bf16 %v3128, %v3127
        %v3184 = vpack.c.bf16 %v3130, %v3129
        %v3185 = vpack.c.bf16 %v3132, %v3131
        %v3186 = vpack.c.bf16 %v3134, %v3133
        %v3187 = vpack.c.bf16 %v3136, %v3135
        %v3188 = vpack.c.bf16 %v3138, %v3137
        %v3189 = vpack.c.bf16 %v3140, %v3139
        %v3190 = vpack.c.bf16 %v3142, %v3141
        %v3191 = vpack.c.bf16 %v3144, %v3143
        %v3192 = vpack.c.bf16 %v3146, %v3145
        %v3193 = vpack.c.bf16 %v3148, %v3147
        %v3194 = vpack.c.bf16 %v3150, %v3149
        %v3195 = vpack.c.bf16 %v3152, %v3151
        %v3196 = vpack.c.bf16 %v3154, %v3153
        %v3197 = vpack.c.bf16 %v3156, %v3155
        %v3198 = vpack.c.bf16 %v3158, %v3157
        %v3199 = vpack.c.bf16 %v3160, %v3159
        %v3200 = vpack.c.bf16 %v3162, %v3161
        %v3201 = vpack.c.bf16 %v3164, %v3163
        %v3202 = vpack.c.bf16 %v3166, %v3165
        %v3203 = vpack.c.bf16 %v3168, %v3167
        %v3204 = vpack.c.bf16 %v3170, %v3169
        %v3205 = vpack.c.bf16 %v3172, %v3171
        %v3206 = vpack.c.bf16 %v3174, %v3173
        %v3207 = vpack.c.bf16 %v3175, %v3175
        %v3208 = vld [vmem:[#allocation14] sm:$0xf]
        %v3209 = vld [vmem:[#allocation14 + $0x4] sm:$0xf]
        %v3210 = vld [vmem:[#allocation14 + $0x8] sm:$0xf]
        %v3211 = vld [vmem:[#allocation14 + $0xc] sm:$0xf]
        %v3212 = vld [vmem:[#allocation14 + $0x10] sm:$0xf]
        %v3213 = vld [vmem:[#allocation14 + $0x14] sm:$0xf]
        %v3214 = vld [vmem:[#allocation14 + $0x18] sm:$0xf]
        %v3215 = vld [vmem:[#allocation14 + $0x1c] sm:$0xf]
        %v3216 = vld [vmem:[#allocation14 + $0x20] sm:$0xf]
        %v3217 = vld [vmem:[#allocation14 + $0x24] sm:$0xf]
        %v3218 = vld [vmem:[#allocation14 + $0x28] sm:$0xf]
        %v3219 = vld [vmem:[#allocation14 + $0x2c] sm:$0xf]
        %v3220 = vld [vmem:[#allocation14 + $0x30] sm:$0xf]
        %v3221 = vld [vmem:[#allocation14 + $0x34] sm:$0xf]
        %v3222 = vld [vmem:[#allocation14 + $0x38] sm:$0xf]
        %v3223 = vld [vmem:[#allocation14 + $0x3c] sm:$0xf]
        %v3224 = vld [vmem:[%s10] sm:$0x1]
        %v3226 = vlaneseq
        %v3227 = vshrl.u32 %v3226, 7
        %v3228 = vsub.s32 0, %v3227
        %v3229 = vrot.slane %v3224, %v3228
        %v3247 = vunpack.c.l.b16 %v3208
        %v3248 = vunpack.c.l.b16 %v3209
        %v3249 = vunpack.c.l.b16 %v3210
        %v3250 = vunpack.c.l.b16 %v3211
        %v3251 = vunpack.c.l.b16 %v3212
        %v3252 = vunpack.c.l.b16 %v3213
        %v3253 = vunpack.c.l.b16 %v3214
        %v3254 = vunpack.c.l.b16 %v3215
        %v3255 = vunpack.c.l.b16 %v3216
        %v3256 = vunpack.c.l.b16 %v3217
        %v3257 = vunpack.c.l.b16 %v3218
        %v3258 = vunpack.c.l.b16 %v3219
        %v3259 = vunpack.c.l.b16 %v3220
        %v3260 = vunpack.c.l.b16 %v3221
        %v3261 = vunpack.c.l.b16 %v3222
        %v3262 = vunpack.c.l.b16 %v3223
        %v3263 = vpack.c.b16 %v3248, %v3247
        %v3264 = vpack.c.b16 %v3250, %v3249
        %v3265 = vpack.c.b16 %v3252, %v3251
        %v3266 = vpack.c.b16 %v3254, %v3253
        %v3267 = vpack.c.b16 %v3256, %v3255
        %v3268 = vpack.c.b16 %v3258, %v3257
        %v3269 = vpack.c.b16 %v3260, %v3259
        %v3270 = vpack.c.b16 %v3262, %v3261
        %3279 = vmatprep.subr.bf16.mxu0 0
        %3280 = vmatpush1.bf16.msra.mxu0 %v3263
        %3281 = vmatprep.subr.bf16.mxu0 0
        %3282 = vmatpush1.bf16.msra.mxu0 %v3264
        %3283 = vmatprep.subr.bf16.mxu0 0
        %3284 = vmatpush1.bf16.msra.mxu0 %v3265
        %3285 = vmatprep.subr.bf16.mxu0 0
        %3286 = vmatpush1.bf16.msra.mxu0 %v3266
        %3287 = vmatprep.subr.bf16.mxu0 0
        %3288 = vmatpush1.bf16.msra.mxu0 %v3267
        %3289 = vmatprep.subr.bf16.mxu0 0
        %3290 = vmatpush1.bf16.msra.mxu0 %v3268
        %3291 = vmatprep.subr.bf16.mxu0 0
        %3292 = vmatpush1.bf16.msra.mxu0 %v3269
        %3293 = vmatprep.subr.bf16.mxu0 0
        %3294 = vmatpush1.bf16.msra.mxu0 %v3270
        %3295 = vmatprep.subr.bf16.mxu0 0
        %3296 = vmatpush1.bf16.msra.mxu0 0
        %3297 = vmatprep.subr.bf16.mxu0 0
        %3298 = vmatpush1.bf16.msra.mxu0 0
        %3299 = vmatprep.subr.bf16.mxu0 0
        %3300 = vmatpush1.bf16.msra.mxu0 0
        %3301 = vmatprep.subr.bf16.mxu0 0
        %3302 = vmatpush1.bf16.msra.mxu0 0
        %3303 = vmatprep.subr.bf16.mxu0 0
        %3304 = vmatpush1.bf16.msra.mxu0 0
        %3305 = vmatprep.subr.bf16.mxu0 0
        %3306 = vmatpush1.bf16.msra.mxu0 0
        %3307 = vmatprep.subr.bf16.mxu0 0
        %3308 = vmatpush1.bf16.msra.mxu0 0
        %3309 = vmatprep.subr.bf16.mxu0 0
        %3310 = vmatpush1.bf16.msra.mxu0 0
        %3311 = vmatprep.mubr.bf16.mxu0 0
        %3312 = vmatmul.mubr.bf16.gmra.mrb[0].mxu0 %v3176
        %v3313 = vpop.f32.mrb[0].mxu0
        %v3314 = vadd.f32 %v3229, %v3313
        %v3315 = vpop.f32.mrb[0].mxu0
        %v3316 = vpop.f32.mrb[0].mxu0
        %v3317 = vadd.f32 %v3229, %v3316
        %v3318 = vpop.f32.mrb[0].mxu0
        %3319 = vmatprep.mubr.bf16.mxu0 0
        %3320 = vmatmul.mubr.bf16.gmra.mrb[0].mxu0 %v3177
        %v3321 = vpop.f32.mrb[0].mxu0
        %v3322 = vadd.f32 %v3229, %v3321
        %v3323 = vpop.f32.mrb[0].mxu0
        %v3324 = vpop.f32.mrb[0].mxu0
        %v3325 = vadd.f32 %v3229, %v3324
        %v3326 = vpop.f32.mrb[0].mxu0
        %3327 = vmatprep.mubr.bf16.mxu0 0
        %3328 = vmatmul.mubr.bf16.gmra.mrb[0].mxu0 %v3178
        %v3329 = vpop.f32.mrb[0].mxu0
        %v3330 = vadd.f32 %v3229, %v3329
        %v3331 = vpop.f32.mrb[0].mxu0
        %v3332 = vpop.f32.mrb[0].mxu0
        %v3333 = vadd.f32 %v3229, %v3332
        %v3334 = vpop.f32.mrb[0].mxu0
        %3335 = vmatprep.mubr.bf16.mxu0 0
        %3336 = vmatmul.mubr.bf16.gmra.mrb[0].mxu0 %v3179
        %v3337 = vpop.f32.mrb[0].mxu0
        %v3338 = vadd.f32 %v3229, %v3337
        %v3339 = vpop.f32.mrb[0].mxu0
        %v3340 = vpop.f32.mrb[0].mxu0
        %v3341 = vadd.f32 %v3229, %v3340
        %v3342 = vpop.f32.mrb[0].mxu0
        %3343 = vmatprep.mubr.bf16.mxu0 0
        %3344 = vmatmul.mubr.bf16.gmra.mrb[0].mxu0 %v3180
        %v3345 = vpop.f32.mrb[0].mxu0
        %v3346 = vadd.f32 %v3229, %v3345
        %v3347 = vpop.f32.mrb[0].mxu0
        %v3348 = vpop.f32.mrb[0].mxu0
        %v3349 = vadd.f32 %v3229, %v3348
        %v3350 = vpop.f32.mrb[0].mxu0
        %3351 = vmatprep.mubr.bf16.mxu0 0
        %3352 = vmatmul.mubr.bf16.gmra.mrb[0].mxu0 %v3181
        %v3353 = vpop.f32.mrb[0].mxu0
        %v3354 = vadd.f32 %v3229, %v3353
        %v3355 = vpop.f32.mrb[0].mxu0
        %v3356 = vpop.f32.mrb[0].mxu0
        %v3357 = vadd.f32 %v3229, %v3356
        %v3358 = vpop.f32.mrb[0].mxu0
        %3359 = vmatprep.mubr.bf16.mxu0 0
        %3360 = vmatmul.mubr.bf16.gmra.mrb[0].mxu0 %v3182
        %v3361 = vpop.f32.mrb[0].mxu0
        %v3362 = vadd.f32 %v3229, %v3361
        %v3363 = vpop.f32.mrb[0].mxu0
        %v3364 = vpop.f32.mrb[0].mxu0
        %v3365 = vadd.f32 %v3229, %v3364
        %v3366 = vpop.f32.mrb[0].mxu0
        %3367 = vmatprep.mubr.bf16.mxu0 0
        %3368 = vmatmul.mubr.bf16.gmra.mrb[0].mxu0 %v3183
        %v3369 = vpop.f32.mrb[0].mxu0
        %v3370 = vadd.f32 %v3229, %v3369
        %v3371 = vpop.f32.mrb[0].mxu0
        %v3372 = vpop.f32.mrb[0].mxu0
        %v3373 = vadd.f32 %v3229, %v3372
        %v3374 = vpop.f32.mrb[0].mxu0
        %3375 = vmatprep.mubr.bf16.mxu0 0
        %3376 = vmatmul.mubr.bf16.gmra.mrb[0].mxu0 %v3184
        %v3377 = vpop.f32.mrb[0].mxu0
        %v3378 = vadd.f32 %v3229, %v3377
        %v3379 = vpop.f32.mrb[0].mxu0
        %v3380 = vpop.f32.mrb[0].mxu0
        %v3381 = vadd.f32 %v3229, %v3380
        %v3382 = vpop.f32.mrb[0].mxu0
        %3383 = vmatprep.mubr.bf16.mxu0 0
        %3384 = vmatmul.mubr.bf16.gmra.mrb[0].mxu0 %v3185
        %v3385 = vpop.f32.mrb[0].mxu0
        %v3386 = vadd.f32 %v3229, %v3385
        %v3387 = vpop.f32.mrb[0].mxu0
        %v3388 = vpop.f32.mrb[0].mxu0
        %v3389 = vadd.f32 %v3229, %v3388
        %v3390 = vpop.f32.mrb[0].mxu0
        %3391 = vmatprep.mubr.bf16.mxu0 0
        %3392 = vmatmul.mubr.bf16.gmra.mrb[0].mxu0 %v3186
        %v3393 = vpop.f32.mrb[0].mxu0
        %v3394 = vadd.f32 %v3229, %v3393
        %v3395 = vpop.f32.mrb[0].mxu0
        %v3396 = vpop.f32.mrb[0].mxu0
        %v3397 = vadd.f32 %v3229, %v3396
        %v3398 = vpop.f32.mrb[0].mxu0
        %3399 = vmatprep.mubr.bf16.mxu0 0
        %3400 = vmatmul.mubr.bf16.gmra.mrb[0].mxu0 %v3187
        %v3401 = vpop.f32.mrb[0].mxu0
        %v3402 = vadd.f32 %v3229, %v3401
        %v3403 = vpop.f32.mrb[0].mxu0
        %v3404 = vpop.f32.mrb[0].mxu0
        %v3405 = vadd.f32 %v3229, %v3404
        %v3406 = vpop.f32.mrb[0].mxu0
        %3407 = vmatprep.mubr.bf16.mxu0 0
        %3408 = vmatmul.mubr.bf16.gmra.mrb[0].mxu0 %v3188
        %v3409 = vpop.f32.mrb[0].mxu0
        %v3410 = vadd.f32 %v3229, %v3409
        %v3411 = vpop.f32.mrb[0].mxu0
        %v3412 = vpop.f32.mrb[0].mxu0
        %v3413 = vadd.f32 %v3229, %v3412
        %v3414 = vpop.f32.mrb[0].mxu0
        %3415 = vmatprep.mubr.bf16.mxu0 0
        %3416 = vmatmul.mubr.bf16.gmra.mrb[0].mxu0 %v3189
        %v3417 = vpop.f32.mrb[0].mxu0
        %v3418 = vadd.f32 %v3229, %v3417
        %v3419 = vpop.f32.mrb[0].mxu0
        %v3420 = vpop.f32.mrb[0].mxu0
        %v3421 = vadd.f32 %v3229, %v3420
        %v3422 = vpop.f32.mrb[0].mxu0
        %3423 = vmatprep.mubr.bf16.mxu0 0
        %3424 = vmatmul.mubr.bf16.gmra.mrb[0].mxu0 %v3190
        %v3425 = vpop.f32.mrb[0].mxu0
        %v3426 = vadd.f32 %v3229, %v3425
        %v3427 = vpop.f32.mrb[0].mxu0
        %v3428 = vpop.f32.mrb[0].mxu0
        %v3429 = vadd.f32 %v3229, %v3428
        %v3430 = vpop.f32.mrb[0].mxu0
        %3431 = vmatprep.mubr.bf16.mxu0 0
        %3432 = vmatmul.mubr.bf16.gmra.mrb[0].mxu0 %v3191
        %v3433 = vpop.f32.mrb[0].mxu0
        %v3434 = vadd.f32 %v3229, %v3433
        %v3435 = vpop.f32.mrb[0].mxu0
        %v3436 = vpop.f32.mrb[0].mxu0
        %v3437 = vadd.f32 %v3229, %v3436
        %v3438 = vpop.f32.mrb[0].mxu0
        %3439 = vmatprep.mubr.bf16.mxu0 0
        %3440 = vmatmul.mubr.bf16.gmra.mrb[0].mxu0 %v3192
        %v3441 = vpop.f32.mrb[0].mxu0
        %v3442 = vadd.f32 %v3229, %v3441
        %v3443 = vpop.f32.mrb[0].mxu0
        %v3444 = vpop.f32.mrb[0].mxu0
        %v3445 = vadd.f32 %v3229, %v3444
        %v3446 = vpop.f32.mrb[0].mxu0
        %3447 = vmatprep.mubr.bf16.mxu0 0
        %3448 = vmatmul.mubr.bf16.gmra.mrb[0].mxu0 %v3193
        %v3449 = vpop.f32.mrb[0].mxu0
        %v3450 = vadd.f32 %v3229, %v3449
        %v3451 = vpop.f32.mrb[0].mxu0
        %v3452 = vpop.f32.mrb[0].mxu0
        %v3453 = vadd.f32 %v3229, %v3452
        %v3454 = vpop.f32.mrb[0].mxu0
        %3455 = vmatprep.mubr.bf16.mxu0 0
        %3456 = vmatmul.mubr.bf16.gmra.mrb[0].mxu0 %v3194
        %v3457 = vpop.f32.mrb[0].mxu0
        %v3458 = vadd.f32 %v3229, %v3457
        %v3459 = vpop.f32.mrb[0].mxu0
        %v3460 = vpop.f32.mrb[0].mxu0
        %v3461 = vadd.f32 %v3229, %v3460
        %v3462 = vpop.f32.mrb[0].mxu0
        %3463 = vmatprep.mubr.bf16.mxu0 0
        %3464 = vmatmul.mubr.bf16.gmra.mrb[0].mxu0 %v3195
        %v3465 = vpop.f32.mrb[0].mxu0
        %v3466 = vadd.f32 %v3229, %v3465
        %v3467 = vpop.f32.mrb[0].mxu0
        %v3468 = vpop.f32.mrb[0].mxu0
        %v3469 = vadd.f32 %v3229, %v3468
        %v3470 = vpop.f32.mrb[0].mxu0
        %3471 = vmatprep.mubr.bf16.mxu0 0
        %3472 = vmatmul.mubr.bf16.gmra.mrb[0].mxu0 %v3196
        %v3473 = vpop.f32.mrb[0].mxu0
        %v3474 = vadd.f32 %v3229, %v3473
        %v3475 = vpop.f32.mrb[0].mxu0
        %v3476 = vpop.f32.mrb[0].mxu0
        %v3477 = vadd.f32 %v3229, %v3476
        %v3478 = vpop.f32.mrb[0].mxu0
        %3479 = vmatprep.mubr.bf16.mxu0 0
        %3480 = vmatmul.mubr.bf16.gmra.mrb[0].mxu0 %v3197
        %v3481 = vpop.f32.mrb[0].mxu0
        %v3482 = vadd.f32 %v3229, %v3481
        %v3483 = vpop.f32.mrb[0].mxu0
        %v3484 = vpop.f32.mrb[0].mxu0
        %v3485 = vadd.f32 %v3229, %v3484
        %v3486 = vpop.f32.mrb[0].mxu0
        %3487 = vmatprep.mubr.bf16.mxu0 0
        %3488 = vmatmul.mubr.bf16.gmra.mrb[0].mxu0 %v3198
        %v3489 = vpop.f32.mrb[0].mxu0
        %v3490 = vadd.f32 %v3229, %v3489
        %v3491 = vpop.f32.mrb[0].mxu0
        %v3492 = vpop.f32.mrb[0].mxu0
        %v3493 = vadd.f32 %v3229, %v3492
        %v3494 = vpop.f32.mrb[0].mxu0
        %3495 = vmatprep.mubr.bf16.mxu0 0
        %3496 = vmatmul.mubr.bf16.gmra.mrb[0].mxu0 %v3199
        %v3497 = vpop.f32.mrb[0].mxu0
        %v3498 = vadd.f32 %v3229, %v3497
        %v3499 = vpop.f32.mrb[0].mxu0
        %v3500 = vpop.f32.mrb[0].mxu0
        %v3501 = vadd.f32 %v3229, %v3500
        %v3502 = vpop.f32.mrb[0].mxu0
        %3503 = vmatprep.mubr.bf16.mxu0 0
        %3504 = vmatmul.mubr.bf16.gmra.mrb[0].mxu0 %v3200
        %v3505 = vpop.f32.mrb[0].mxu0
        %v3506 = vadd.f32 %v3229, %v3505
        %v3507 = vpop.f32.mrb[0].mxu0
        %v3508 = vpop.f32.mrb[0].mxu0
        %v3509 = vadd.f32 %v3229, %v3508
        %v3510 = vpop.f32.mrb[0].mxu0
        %3511 = vmatprep.mubr.bf16.mxu0 0
        %3512 = vmatmul.mubr.bf16.gmra.mrb[0].mxu0 %v3201
        %v3513 = vpop.f32.mrb[0].mxu0
        %v3514 = vadd.f32 %v3229, %v3513
        %v3515 = vpop.f32.mrb[0].mxu0
        %v3516 = vpop.f32.mrb[0].mxu0
        %v3517 = vadd.f32 %v3229, %v3516
        %v3518 = vpop.f32.mrb[0].mxu0
        %3519 = vmatprep.mubr.bf16.mxu0 0
        %3520 = vmatmul.mubr.bf16.gmra.mrb[0].mxu0 %v3202
        %v3521 = vpop.f32.mrb[0].mxu0
        %v3522 = vadd.f32 %v3229, %v3521
        %v3523 = vpop.f32.mrb[0].mxu0
        %v3524 = vpop.f32.mrb[0].mxu0
        %v3525 = vadd.f32 %v3229, %v3524
        %v3526 = vpop.f32.mrb[0].mxu0
        %3527 = vmatprep.mubr.bf16.mxu0 0
        %3528 = vmatmul.mubr.bf16.gmra.mrb[0].mxu0 %v3203
        %v3529 = vpop.f32.mrb[0].mxu0
        %v3530 = vadd.f32 %v3229, %v3529
        %v3531 = vpop.f32.mrb[0].mxu0
        %v3532 = vpop.f32.mrb[0].mxu0
        %v3533 = vadd.f32 %v3229, %v3532
        %v3534 = vpop.f32.mrb[0].mxu0
        %3535 = vmatprep.mubr.bf16.mxu0 0
        %3536 = vmatmul.mubr.bf16.gmra.mrb[0].mxu0 %v3204
        %v3537 = vpop.f32.mrb[0].mxu0
        %v3538 = vadd.f32 %v3229, %v3537
        %v3539 = vpop.f32.mrb[0].mxu0
        %v3540 = vpop.f32.mrb[0].mxu0
        %v3541 = vadd.f32 %v3229, %v3540
        %v3542 = vpop.f32.mrb[0].mxu0
        %3543 = vmatprep.mubr.bf16.mxu0 0
        %3544 = vmatmul.mubr.bf16.gmra.mrb[0].mxu0 %v3205
        %v3545 = vpop.f32.mrb[0].mxu0
        %v3546 = vadd.f32 %v3229, %v3545
        %v3547 = vpop.f32.mrb[0].mxu0
        %v3548 = vpop.f32.mrb[0].mxu0
        %v3549 = vadd.f32 %v3229, %v3548
        %v3550 = vpop.f32.mrb[0].mxu0
        %3551 = vmatprep.mubr.bf16.mxu0 0
        %3552 = vmatmul.mubr.bf16.gmra.mrb[0].mxu0 %v3206
        %v3553 = vpop.f32.mrb[0].mxu0
        %v3554 = vadd.f32 %v3229, %v3553
        %v3555 = vpop.f32.mrb[0].mxu0
        %v3556 = vpop.f32.mrb[0].mxu0
        %v3557 = vadd.f32 %v3229, %v3556
        %v3558 = vpop.f32.mrb[0].mxu0
        %3559 = vmatprep.mubr.bf16.mxu0 0
        %3560 = vmatmul.mubr.bf16.gmra.mrb[0].mxu0 %v3207
        %v3561 = vpop.f32.mrb[0].mxu0
        %v3562 = vadd.f32 %v3229, %v3561
        %v3563 = vpop.f32.mrb[0].mxu0
        %v3564 = vpop.f32.mrb[0].mxu0
        %v3565 = vpop.f32.mrb[0].mxu0
        %3566 = vdwg.mxu0
        %3567 = vadd.xlane.f32.xlu0 %v3314
        %v3568 = vpop.xlane.xlu0 %3567
        %3569 = vadd.xlane.f32.xlu0 %v3317
        %v3570 = vpop.xlane.xlu0 %3569
        %3571 = vadd.xlane.f32.xlu0 %v3322
        %v3572 = vpop.xlane.xlu0 %3571
        %3573 = vadd.xlane.f32.xlu0 %v3325
        %v3574 = vpop.xlane.xlu0 %3573
        %3575 = vadd.xlane.f32.xlu0 %v3330
        %v3576 = vpop.xlane.xlu0 %3575
        %3577 = vadd.xlane.f32.xlu0 %v3333
        %v3578 = vpop.xlane.xlu0 %3577
        %3579 = vadd.xlane.f32.xlu0 %v3338
        %v3580 = vpop.xlane.xlu0 %3579
        %3581 = vadd.xlane.f32.xlu0 %v3341
        %v3582 = vpop.xlane.xlu0 %3581
        %3583 = vadd.xlane.f32.xlu0 %v3346
        %v3584 = vpop.xlane.xlu0 %3583
        %3585 = vadd.xlane.f32.xlu0 %v3349
        %v3586 = vpop.xlane.xlu0 %3585
        %3587 = vadd.xlane.f32.xlu0 %v3354
        %v3588 = vpop.xlane.xlu0 %3587
        %3589 = vadd.xlane.f32.xlu0 %v3357
        %v3590 = vpop.xlane.xlu0 %3589
        %3591 = vadd.xlane.f32.xlu0 %v3362
        %v3592 = vpop.xlane.xlu0 %3591
        %3593 = vadd.xlane.f32.xlu0 %v3365
        %v3594 = vpop.xlane.xlu0 %3593
        %3595 = vadd.xlane.f32.xlu0 %v3370
        %v3596 = vpop.xlane.xlu0 %3595
        %3597 = vadd.xlane.f32.xlu0 %v3373
        %v3598 = vpop.xlane.xlu0 %3597
        %3599 = vadd.xlane.f32.xlu0 %v3378
        %v3600 = vpop.xlane.xlu0 %3599
        %3601 = vadd.xlane.f32.xlu0 %v3381
        %v3602 = vpop.xlane.xlu0 %3601
        %3603 = vadd.xlane.f32.xlu0 %v3386
        %v3604 = vpop.xlane.xlu0 %3603
        %3605 = vadd.xlane.f32.xlu0 %v3389
        %v3606 = vpop.xlane.xlu0 %3605
        %3607 = vadd.xlane.f32.xlu0 %v3394
        %v3608 = vpop.xlane.xlu0 %3607
        %3609 = vadd.xlane.f32.xlu0 %v3397
        %v3610 = vpop.xlane.xlu0 %3609
        %3611 = vadd.xlane.f32.xlu0 %v3402
        %v3612 = vpop.xlane.xlu0 %3611
        %3613 = vadd.xlane.f32.xlu0 %v3405
        %v3614 = vpop.xlane.xlu0 %3613
        %3615 = vadd.xlane.f32.xlu0 %v3410
        %v3616 = vpop.xlane.xlu0 %3615
        %3617 = vadd.xlane.f32.xlu0 %v3413
        %v3618 = vpop.xlane.xlu0 %3617
        %3619 = vadd.xlane.f32.xlu0 %v3418
        %v3620 = vpop.xlane.xlu0 %3619
        %3621 = vadd.xlane.f32.xlu0 %v3421
        %v3622 = vpop.xlane.xlu0 %3621
        %3623 = vadd.xlane.f32.xlu0 %v3426
        %v3624 = vpop.xlane.xlu0 %3623
        %3625 = vadd.xlane.f32.xlu0 %v3429
        %v3626 = vpop.xlane.xlu0 %3625
        %3627 = vadd.xlane.f32.xlu0 %v3434
        %v3628 = vpop.xlane.xlu0 %3627
        %3629 = vadd.xlane.f32.xlu0 %v3437
        %v3630 = vpop.xlane.xlu0 %3629
        %3631 = vadd.xlane.f32.xlu0 %v3442
        %v3632 = vpop.xlane.xlu0 %3631
        %3633 = vadd.xlane.f32.xlu0 %v3445
        %v3634 = vpop.xlane.xlu0 %3633
        %3635 = vadd.xlane.f32.xlu0 %v3450
        %v3636 = vpop.xlane.xlu0 %3635
        %3637 = vadd.xlane.f32.xlu0 %v3453
        %v3638 = vpop.xlane.xlu0 %3637
        %3639 = vadd.xlane.f32.xlu0 %v3458
        %v3640 = vpop.xlane.xlu0 %3639
        %3641 = vadd.xlane.f32.xlu0 %v3461
        %v3642 = vpop.xlane.xlu0 %3641
        %3643 = vadd.xlane.f32.xlu0 %v3466
        %v3644 = vpop.xlane.xlu0 %3643
        %3645 = vadd.xlane.f32.xlu0 %v3469
        %v3646 = vpop.xlane.xlu0 %3645
        %3647 = vadd.xlane.f32.xlu0 %v3474
        %v3648 = vpop.xlane.xlu0 %3647
        %3649 = vadd.xlane.f32.xlu0 %v3477
        %v3650 = vpop.xlane.xlu0 %3649
        %3651 = vadd.xlane.f32.xlu0 %v3482
        %v3652 = vpop.xlane.xlu0 %3651
        %3653 = vadd.xlane.f32.xlu0 %v3485
        %v3654 = vpop.xlane.xlu0 %3653
        %3655 = vadd.xlane.f32.xlu0 %v3490
        %v3656 = vpop.xlane.xlu0 %3655
        %3657 = vadd.xlane.f32.xlu0 %v3493
        %v3658 = vpop.xlane.xlu0 %3657
        %3659 = vadd.xlane.f32.xlu0 %v3498
        %v3660 = vpop.xlane.xlu0 %3659
        %3661 = vadd.xlane.f32.xlu0 %v3501
        %v3662 = vpop.xlane.xlu0 %3661
        %3663 = vadd.xlane.f32.xlu0 %v3506
        %v3664 = vpop.xlane.xlu0 %3663
        %3665 = vadd.xlane.f32.xlu0 %v3509
        %v3666 = vpop.xlane.xlu0 %3665
        %3667 = vadd.xlane.f32.xlu0 %v3514
        %v3668 = vpop.xlane.xlu0 %3667
        %3669 = vadd.xlane.f32.xlu0 %v3517
        %v3670 = vpop.xlane.xlu0 %3669
        %3671 = vadd.xlane.f32.xlu0 %v3522
        %v3672 = vpop.xlane.xlu0 %3671
        %3673 = vadd.xlane.f32.xlu0 %v3525
        %v3674 = vpop.xlane.xlu0 %3673
        %3675 = vadd.xlane.f32.xlu0 %v3530
        %v3676 = vpop.xlane.xlu0 %3675
        %3677 = vadd.xlane.f32.xlu0 %v3533
        %v3678 = vpop.xlane.xlu0 %3677
        %3679 = vadd.xlane.f32.xlu0 %v3538
        %v3680 = vpop.xlane.xlu0 %3679
        %3681 = vadd.xlane.f32.xlu0 %v3541
        %v3682 = vpop.xlane.xlu0 %3681
        %3683 = vadd.xlane.f32.xlu0 %v3546
        %v3684 = vpop.xlane.xlu0 %3683
        %3685 = vadd.xlane.f32.xlu0 %v3549
        %v3686 = vpop.xlane.xlu0 %3685
        %3687 = vadd.xlane.f32.xlu0 %v3554
        %v3688 = vpop.xlane.xlu0 %3687
        %3689 = vadd.xlane.f32.xlu0 %v3557
        %v3690 = vpop.xlane.xlu0 %3689
        %3691 = vadd.xlane.f32.xlu0 %v3562
        %v3692 = vpop.xlane.xlu0 %3691
        %v3693 = vrcp.pop 128.0
        %v3694 = vmul.f32 %v3568, %v3693
        %v3695 = vmul.f32 %v3570, %v3693
        %v3696 = vmul.f32 %v3572, %v3693
        %v3697 = vmul.f32 %v3574, %v3693
        %v3698 = vmul.f32 %v3576, %v3693
        %v3699 = vmul.f32 %v3578, %v3693
        %v3700 = vmul.f32 %v3580, %v3693
        %v3701 = vmul.f32 %v3582, %v3693
        %v3702 = vmul.f32 %v3584, %v3693
        %v3703 = vmul.f32 %v3586, %v3693
        %v3704 = vmul.f32 %v3588, %v3693
        %v3705 = vmul.f32 %v3590, %v3693
        %v3706 = vmul.f32 %v3592, %v3693
        %v3707 = vmul.f32 %v3594, %v3693
        %v3708 = vmul.f32 %v3596, %v3693
        %v3709 = vmul.f32 %v3598, %v3693
        %v3710 = vmul.f32 %v3600, %v3693
        %v3711 = vmul.f32 %v3602, %v3693
        %v3712 = vmul.f32 %v3604, %v3693
        %v3713 = vmul.f32 %v3606, %v3693
        %v3714 = vmul.f32 %v3608, %v3693
        %v3715 = vmul.f32 %v3610, %v3693
        %v3716 = vmul.f32 %v3612, %v3693
        %v3717 = vmul.f32 %v3614, %v3693
        %v3718 = vmul.f32 %v3616, %v3693
        %v3719 = vmul.f32 %v3618, %v3693
        %v3720 = vmul.f32 %v3620, %v3693
        %v3721 = vmul.f32 %v3622, %v3693
        %v3722 = vmul.f32 %v3624, %v3693
        %v3723 = vmul.f32 %v3626, %v3693
        %v3724 = vmul.f32 %v3628, %v3693
        %v3725 = vmul.f32 %v3630, %v3693
        %v3726 = vmul.f32 %v3632, %v3693
        %v3727 = vmul.f32 %v3634, %v3693
        %v3728 = vmul.f32 %v3636, %v3693
        %v3729 = vmul.f32 %v3638, %v3693
        %v3730 = vmul.f32 %v3640, %v3693
        %v3731 = vmul.f32 %v3642, %v3693
        %v3732 = vmul.f32 %v3644, %v3693
        %v3733 = vmul.f32 %v3646, %v3693
        %v3734 = vmul.f32 %v3648, %v3693
        %v3735 = vmul.f32 %v3650, %v3693
        %v3736 = vmul.f32 %v3652, %v3693
        %v3737 = vmul.f32 %v3654, %v3693
        %v3738 = vmul.f32 %v3656, %v3693
        %v3739 = vmul.f32 %v3658, %v3693
        %v3740 = vmul.f32 %v3660, %v3693
        %v3741 = vmul.f32 %v3662, %v3693
        %v3742 = vmul.f32 %v3664, %v3693
        %v3743 = vmul.f32 %v3666, %v3693
        %v3744 = vmul.f32 %v3668, %v3693
        %v3745 = vmul.f32 %v3670, %v3693
        %v3746 = vmul.f32 %v3672, %v3693
        %v3747 = vmul.f32 %v3674, %v3693
        %v3748 = vmul.f32 %v3676, %v3693
        %v3749 = vmul.f32 %v3678, %v3693
        %v3750 = vmul.f32 %v3680, %v3693
        %v3751 = vmul.f32 %v3682, %v3693
        %v3752 = vmul.f32 %v3684, %v3693
        %v3753 = vmul.f32 %v3686, %v3693
        %v3754 = vmul.f32 %v3688, %v3693
        %v3755 = vmul.f32 %v3690, %v3693
        %v3756 = vmul.f32 %v3692, %v3693
        %v3757 = vsub.f32 %v3314, %v3694
        %v3758 = vsub.f32 %v3317, %v3695
        %v3759 = vsub.f32 %v3322, %v3696
        %v3760 = vsub.f32 %v3325, %v3697
        %v3761 = vsub.f32 %v3330, %v3698
        %v3762 = vsub.f32 %v3333, %v3699
        %v3763 = vsub.f32 %v3338, %v3700
        %v3764 = vsub.f32 %v3341, %v3701
        %v3765 = vsub.f32 %v3346, %v3702
        %v3766 = vsub.f32 %v3349, %v3703
        %v3767 = vsub.f32 %v3354, %v3704
        %v3768 = vsub.f32 %v3357, %v3705
        %v3769 = vsub.f32 %v3362, %v3706
        %v3770 = vsub.f32 %v3365, %v3707
        %v3771 = vsub.f32 %v3370, %v3708
        %v3772 = vsub.f32 %v3373, %v3709
        %v3773 = vsub.f32 %v3378, %v3710
        %v3774 = vsub.f32 %v3381, %v3711
        %v3775 = vsub.f32 %v3386, %v3712
        %v3776 = vsub.f32 %v3389, %v3713
        %v3777 = vsub.f32 %v3394, %v3714
        %v3778 = vsub.f32 %v3397, %v3715
        %v3779 = vsub.f32 %v3402, %v3716
        %v3780 = vsub.f32 %v3405, %v3717
        %v3781 = vsub.f32 %v3410, %v3718
        %v3782 = vsub.f32 %v3413, %v3719
        %v3783 = vsub.f32 %v3418, %v3720
        %v3784 = vsub.f32 %v3421, %v3721
        %v3785 = vsub.f32 %v3426, %v3722
        %v3786 = vsub.f32 %v3429, %v3723
        %v3787 = vsub.f32 %v3434, %v3724
        %v3788 = vsub.f32 %v3437, %v3725
        %v3789 = vsub.f32 %v3442, %v3726
        %v3790 = vsub.f32 %v3445, %v3727
        %v3791 = vsub.f32 %v3450, %v3728
        %v3792 = vsub.f32 %v3453, %v3729
        %v3793 = vsub.f32 %v3458, %v3730
        %v3794 = vsub.f32 %v3461, %v3731
        %v3795 = vsub.f32 %v3466, %v3732
        %v3796 = vsub.f32 %v3469, %v3733
        %v3797 = vsub.f32 %v3474, %v3734
        %v3798 = vsub.f32 %v3477, %v3735
        %v3799 = vsub.f32 %v3482, %v3736
        %v3800 = vsub.f32 %v3485, %v3737
        %v3801 = vsub.f32 %v3490, %v3738
        %v3802 = vsub.f32 %v3493, %v3739
        %v3803 = vsub.f32 %v3498, %v3740
        %v3804 = vsub.f32 %v3501, %v3741
        %v3805 = vsub.f32 %v3506, %v3742
        %v3806 = vsub.f32 %v3509, %v3743
        %v3807 = vsub.f32 %v3514, %v3744
        %v3808 = vsub.f32 %v3517, %v3745
        %v3809 = vsub.f32 %v3522, %v3746
        %v3810 = vsub.f32 %v3525, %v3747
        %v3811 = vsub.f32 %v3530, %v3748
        %v3812 = vsub.f32 %v3533, %v3749
        %v3813 = vsub.f32 %v3538, %v3750
        %v3814 = vsub.f32 %v3541, %v3751
        %v3815 = vsub.f32 %v3546, %v3752
        %v3816 = vsub.f32 %v3549, %v3753
        %v3817 = vsub.f32 %v3554, %v3754
        %v3818 = vsub.f32 %v3557, %v3755
        %v3819 = vsub.f32 %v3562, %v3756
        %v3820 = vmul.f32 %v3757, %v3757
        %v3821 = vmul.f32 %v3758, %v3758
        %v3822 = vmul.f32 %v3759, %v3759
        %v3823 = vmul.f32 %v3760, %v3760
        %v3824 = vmul.f32 %v3761, %v3761
        %v3825 = vmul.f32 %v3762, %v3762
        %v3826 = vmul.f32 %v3763, %v3763
        %v3827 = vmul.f32 %v3764, %v3764
        %v3828 = vmul.f32 %v3765, %v3765
        %v3829 = vmul.f32 %v3766, %v3766
        %v3830 = vmul.f32 %v3767, %v3767
        %v3831 = vmul.f32 %v3768, %v3768
        %v3832 = vmul.f32 %v3769, %v3769
        %v3833 = vmul.f32 %v3770, %v3770
        %v3834 = vmul.f32 %v3771, %v3771
        %v3835 = vmul.f32 %v3772, %v3772
        %v3836 = vmul.f32 %v3773, %v3773
        %v3837 = vmul.f32 %v3774, %v3774
        %v3838 = vmul.f32 %v3775, %v3775
        %v3839 = vmul.f32 %v3776, %v3776
        %v3840 = vmul.f32 %v3777, %v3777
        %v3841 = vmul.f32 %v3778, %v3778
        %v3842 = vmul.f32 %v3779, %v3779
        %v3843 = vmul.f32 %v3780, %v3780
        %v3844 = vmul.f32 %v3781, %v3781
        %v3845 = vmul.f32 %v3782, %v3782
        %v3846 = vmul.f32 %v3783, %v3783
        %v3847 = vmul.f32 %v3784, %v3784
        %v3848 = vmul.f32 %v3785, %v3785
        %v3849 = vmul.f32 %v3786, %v3786
        %v3850 = vmul.f32 %v3787, %v3787
        %v3851 = vmul.f32 %v3788, %v3788
        %v3852 = vmul.f32 %v3789, %v3789
        %v3853 = vmul.f32 %v3790, %v3790
        %v3854 = vmul.f32 %v3791, %v3791
        %v3855 = vmul.f32 %v3792, %v3792
        %v3856 = vmul.f32 %v3793, %v3793
        %v3857 = vmul.f32 %v3794, %v3794
        %v3858 = vmul.f32 %v3795, %v3795
        %v3859 = vmul.f32 %v3796, %v3796
        %v3860 = vmul.f32 %v3797, %v3797
        %v3861 = vmul.f32 %v3798, %v3798
        %v3862 = vmul.f32 %v3799, %v3799
        %v3863 = vmul.f32 %v3800, %v3800
        %v3864 = vmul.f32 %v3801, %v3801
        %v3865 = vmul.f32 %v3802, %v3802
        %v3866 = vmul.f32 %v3803, %v3803
        %v3867 = vmul.f32 %v3804, %v3804
        %v3868 = vmul.f32 %v3805, %v3805
        %v3869 = vmul.f32 %v3806, %v3806
        %v3870 = vmul.f32 %v3807, %v3807
        %v3871 = vmul.f32 %v3808, %v3808
        %v3872 = vmul.f32 %v3809, %v3809
        %v3873 = vmul.f32 %v3810, %v3810
        %v3874 = vmul.f32 %v3811, %v3811
        %v3875 = vmul.f32 %v3812, %v3812
        %v3876 = vmul.f32 %v3813, %v3813
        %v3877 = vmul.f32 %v3814, %v3814
        %v3878 = vmul.f32 %v3815, %v3815
        %v3879 = vmul.f32 %v3816, %v3816
        %v3880 = vmul.f32 %v3817, %v3817
        %v3881 = vmul.f32 %v3818, %v3818
        %v3882 = vmul.f32 %v3819, %v3819
        %3883 = vadd.xlane.f32.xlu0 %v3820
        %v3884 = vpop.xlane.xlu0 %3883
        %3885 = vadd.xlane.f32.xlu0 %v3821
        %v3886 = vpop.xlane.xlu0 %3885
        %3887 = vadd.xlane.f32.xlu0 %v3822
        %v3888 = vpop.xlane.xlu0 %3887
        %3889 = vadd.xlane.f32.xlu0 %v3823
        %v3890 = vpop.xlane.xlu0 %3889
        %3891 = vadd.xlane.f32.xlu0 %v3824
        %v3892 = vpop.xlane.xlu0 %3891
        %3893 = vadd.xlane.f32.xlu0 %v3825
        %v3894 = vpop.xlane.xlu0 %3893
        %3895 = vadd.xlane.f32.xlu0 %v3826
        %v3896 = vpop.xlane.xlu0 %3895
        %3897 = vadd.xlane.f32.xlu0 %v3827
        %v3898 = vpop.xlane.xlu0 %3897
        %3899 = vadd.xlane.f32.xlu0 %v3828
        %v3900 = vpop.xlane.xlu0 %3899
        %3901 = vadd.xlane.f32.xlu0 %v3829
        %v3902 = vpop.xlane.xlu0 %3901
        %3903 = vadd.xlane.f32.xlu0 %v3830
        %v3904 = vpop.xlane.xlu0 %3903
        %3905 = vadd.xlane.f32.xlu0 %v3831
        %v3906 = vpop.xlane.xlu0 %3905
        %3907 = vadd.xlane.f32.xlu0 %v3832
        %v3908 = vpop.xlane.xlu0 %3907
        %3909 = vadd.xlane.f32.xlu0 %v3833
        %v3910 = vpop.xlane.xlu0 %3909
        %3911 = vadd.xlane.f32.xlu0 %v3834
        %v3912 = vpop.xlane.xlu0 %3911
        %3913 = vadd.xlane.f32.xlu0 %v3835
        %v3914 = vpop.xlane.xlu0 %3913
        %3915 = vadd.xlane.f32.xlu0 %v3836
        %v3916 = vpop.xlane.xlu0 %3915
        %3917 = vadd.xlane.f32.xlu0 %v3837
        %v3918 = vpop.xlane.xlu0 %3917
        %3919 = vadd.xlane.f32.xlu0 %v3838
        %v3920 = vpop.xlane.xlu0 %3919
        %3921 = vadd.xlane.f32.xlu0 %v3839
        %v3922 = vpop.xlane.xlu0 %3921
        %3923 = vadd.xlane.f32.xlu0 %v3840
        %v3924 = vpop.xlane.xlu0 %3923
        %3925 = vadd.xlane.f32.xlu0 %v3841
        %v3926 = vpop.xlane.xlu0 %3925
        %3927 = vadd.xlane.f32.xlu0 %v3842
        %v3928 = vpop.xlane.xlu0 %3927
        %3929 = vadd.xlane.f32.xlu0 %v3843
        %v3930 = vpop.xlane.xlu0 %3929
        %3931 = vadd.xlane.f32.xlu0 %v3844
        %v3932 = vpop.xlane.xlu0 %3931
        %3933 = vadd.xlane.f32.xlu0 %v3845
        %v3934 = vpop.xlane.xlu0 %3933
        %3935 = vadd.xlane.f32.xlu0 %v3846
        %v3936 = vpop.xlane.xlu0 %3935
        %3937 = vadd.xlane.f32.xlu0 %v3847
        %v3938 = vpop.xlane.xlu0 %3937
        %3939 = vadd.xlane.f32.xlu0 %v3848
        %v3940 = vpop.xlane.xlu0 %3939
        %3941 = vadd.xlane.f32.xlu0 %v3849
        %v3942 = vpop.xlane.xlu0 %3941
        %3943 = vadd.xlane.f32.xlu0 %v3850
        %v3944 = vpop.xlane.xlu0 %3943
        %3945 = vadd.xlane.f32.xlu0 %v3851
        %v3946 = vpop.xlane.xlu0 %3945
        %3947 = vadd.xlane.f32.xlu0 %v3852
        %v3948 = vpop.xlane.xlu0 %3947
        %3949 = vadd.xlane.f32.xlu0 %v3853
        %v3950 = vpop.xlane.xlu0 %3949
        %3951 = vadd.xlane.f32.xlu0 %v3854
        %v3952 = vpop.xlane.xlu0 %3951
        %3953 = vadd.xlane.f32.xlu0 %v3855
        %v3954 = vpop.xlane.xlu0 %3953
        %3955 = vadd.xlane.f32.xlu0 %v3856
        %v3956 = vpop.xlane.xlu0 %3955
        %3957 = vadd.xlane.f32.xlu0 %v3857
        %v3958 = vpop.xlane.xlu0 %3957
        %3959 = vadd.xlane.f32.xlu0 %v3858
        %v3960 = vpop.xlane.xlu0 %3959
        %3961 = vadd.xlane.f32.xlu0 %v3859
        %v3962 = vpop.xlane.xlu0 %3961
        %3963 = vadd.xlane.f32.xlu0 %v3860
        %v3964 = vpop.xlane.xlu0 %3963
        %3965 = vadd.xlane.f32.xlu0 %v3861
        %v3966 = vpop.xlane.xlu0 %3965
        %3967 = vadd.xlane.f32.xlu0 %v3862
        %v3968 = vpop.xlane.xlu0 %3967
        %3969 = vadd.xlane.f32.xlu0 %v3863
        %v3970 = vpop.xlane.xlu0 %3969
        %3971 = vadd.xlane.f32.xlu0 %v3864
        %v3972 = vpop.xlane.xlu0 %3971
        %3973 = vadd.xlane.f32.xlu0 %v3865
        %v3974 = vpop.xlane.xlu0 %3973
        %3975 = vadd.xlane.f32.xlu0 %v3866
        %v3976 = vpop.xlane.xlu0 %3975
        %3977 = vadd.xlane.f32.xlu0 %v3867
        %v3978 = vpop.xlane.xlu0 %3977
        %3979 = vadd.xlane.f32.xlu0 %v3868
        %v3980 = vpop.xlane.xlu0 %3979
        %3981 = vadd.xlane.f32.xlu0 %v3869
        %v3982 = vpop.xlane.xlu0 %3981
        %3983 = vadd.xlane.f32.xlu0 %v3870
        %v3984 = vpop.xlane.xlu0 %3983
        %3985 = vadd.xlane.f32.xlu0 %v3871
        %v3986 = vpop.xlane.xlu0 %3985
        %3987 = vadd.xlane.f32.xlu0 %v3872
        %v3988 = vpop.xlane.xlu0 %3987
        %3989 = vadd.xlane.f32.xlu0 %v3873
        %v3990 = vpop.xlane.xlu0 %3989
        %3991 = vadd.xlane.f32.xlu0 %v3874
        %v3992 = vpop.xlane.xlu0 %3991
        %3993 = vadd.xlane.f32.xlu0 %v3875
        %v3994 = vpop.xlane.xlu0 %3993
        %3995 = vadd.xlane.f32.xlu0 %v3876
        %v3996 = vpop.xlane.xlu0 %3995
        %3997 = vadd.xlane.f32.xlu0 %v3877
        %v3998 = vpop.xlane.xlu0 %3997
        %3999 = vadd.xlane.f32.xlu0 %v3878
        %v4000 = vpop.xlane.xlu0 %3999
        %4001 = vadd.xlane.f32.xlu0 %v3879
        %v4002 = vpop.xlane.xlu0 %4001
        %4003 = vadd.xlane.f32.xlu0 %v3880
        %v4004 = vpop.xlane.xlu0 %4003
        %4005 = vadd.xlane.f32.xlu0 %v3881
        %v4006 = vpop.xlane.xlu0 %4005
        %4007 = vadd.xlane.f32.xlu0 %v3882
        %v4008 = vpop.xlane.xlu0 %4007
        %v4009 = vmul.f32 %v3884, %v3693
        %v4010 = vmul.f32 %v3886, %v3693
        %v4011 = vmul.f32 %v3888, %v3693
        %v4012 = vmul.f32 %v3890, %v3693
        %v4013 = vmul.f32 %v3892, %v3693
        %v4014 = vmul.f32 %v3894, %v3693
        %v4015 = vmul.f32 %v3896, %v3693
        %v4016 = vmul.f32 %v3898, %v3693
        %v4017 = vmul.f32 %v3900, %v3693
        %v4018 = vmul.f32 %v3902, %v3693
        %v4019 = vmul.f32 %v3904, %v3693
        %v4020 = vmul.f32 %v3906, %v3693
        %v4021 = vmul.f32 %v3908, %v3693
        %v4022 = vmul.f32 %v3910, %v3693
        %v4023 = vmul.f32 %v3912, %v3693
        %v4024 = vmul.f32 %v3914, %v3693
        %v4025 = vmul.f32 %v3916, %v3693
        %v4026 = vmul.f32 %v3918, %v3693
        %v4027 = vmul.f32 %v3920, %v3693
        %v4028 = vmul.f32 %v3922, %v3693
        %v4029 = vmul.f32 %v3924, %v3693
        %v4030 = vmul.f32 %v3926, %v3693
        %v4031 = vmul.f32 %v3928, %v3693
        %v4032 = vmul.f32 %v3930, %v3693
        %v4033 = vmul.f32 %v3932, %v3693
        %v4034 = vmul.f32 %v3934, %v3693
        %v4035 = vmul.f32 %v3936, %v3693
        %v4036 = vmul.f32 %v3938, %v3693
        %v4037 = vmul.f32 %v3940, %v3693
        %v4038 = vmul.f32 %v3942, %v3693
        %v4039 = vmul.f32 %v3944, %v3693
        %v4040 = vmul.f32 %v3946, %v3693
        %v4041 = vmul.f32 %v3948, %v3693
        %v4042 = vmul.f32 %v3950, %v3693
        %v4043 = vmul.f32 %v3952, %v3693
        %v4044 = vmul.f32 %v3954, %v3693
        %v4045 = vmul.f32 %v3956, %v3693
        %v4046 = vmul.f32 %v3958, %v3693
        %v4047 = vmul.f32 %v3960, %v3693
        %v4048 = vmul.f32 %v3962, %v3693
        %v4049 = vmul.f32 %v3964, %v3693
        %v4050 = vmul.f32 %v3966, %v3693
        %v4051 = vmul.f32 %v3968, %v3693
        %v4052 = vmul.f32 %v3970, %v3693
        %v4053 = vmul.f32 %v3972, %v3693
        %v4054 = vmul.f32 %v3974, %v3693
        %v4055 = vmul.f32 %v3976, %v3693
        %v4056 = vmul.f32 %v3978, %v3693
        %v4057 = vmul.f32 %v3980, %v3693
        %v4058 = vmul.f32 %v3982, %v3693
        %v4059 = vmul.f32 %v3984, %v3693
        %v4060 = vmul.f32 %v3986, %v3693
        %v4061 = vmul.f32 %v3988, %v3693
        %v4062 = vmul.f32 %v3990, %v3693
        %v4063 = vmul.f32 %v3992, %v3693
        %v4064 = vmul.f32 %v3994, %v3693
        %v4065 = vmul.f32 %v3996, %v3693
        %v4066 = vmul.f32 %v3998, %v3693
        %v4067 = vmul.f32 %v4000, %v3693
        %v4068 = vmul.f32 %v4002, %v3693
        %v4069 = vmul.f32 %v4004, %v3693
        %v4070 = vmul.f32 %v4006, %v3693
        %v4071 = vmul.f32 %v4008, %v3693
        %v4072 = vadd.f32 %v4009, 1e-05
        %v4073 = vadd.f32 %v4010, 1e-05
        %v4074 = vadd.f32 %v4011, 1e-05
        %v4075 = vadd.f32 %v4012, 1e-05
        %v4076 = vadd.f32 %v4013, 1e-05
        %v4077 = vadd.f32 %v4014, 1e-05
        %v4078 = vadd.f32 %v4015, 1e-05
        %v4079 = vadd.f32 %v4016, 1e-05
        %v4080 = vadd.f32 %v4017, 1e-05
        %v4081 = vadd.f32 %v4018, 1e-05
        %v4082 = vadd.f32 %v4019, 1e-05
        %v4083 = vadd.f32 %v4020, 1e-05
        %v4084 = vadd.f32 %v4021, 1e-05
        %v4085 = vadd.f32 %v4022, 1e-05
        %v4086 = vadd.f32 %v4023, 1e-05
        %v4087 = vadd.f32 %v4024, 1e-05
        %v4088 = vadd.f32 %v4025, 1e-05
        %v4089 = vadd.f32 %v4026, 1e-05
        %v4090 = vadd.f32 %v4027, 1e-05
        %v4091 = vadd.f32 %v4028, 1e-05
        %v4092 = vadd.f32 %v4029, 1e-05
        %v4093 = vadd.f32 %v4030, 1e-05
        %v4094 = vadd.f32 %v4031, 1e-05
        %v4095 = vadd.f32 %v4032, 1e-05
        %v4096 = vadd.f32 %v4033, 1e-05
        %v4097 = vadd.f32 %v4034, 1e-05
        %v4098 = vadd.f32 %v4035, 1e-05
        %v4099 = vadd.f32 %v4036, 1e-05
        %v4100 = vadd.f32 %v4037, 1e-05
        %v4101 = vadd.f32 %v4038, 1e-05
        %v4102 = vadd.f32 %v4039, 1e-05
        %v4103 = vadd.f32 %v4040, 1e-05
        %v4104 = vadd.f32 %v4041, 1e-05
        %v4105 = vadd.f32 %v4042, 1e-05
        %v4106 = vadd.f32 %v4043, 1e-05
        %v4107 = vadd.f32 %v4044, 1e-05
        %v4108 = vadd.f32 %v4045, 1e-05
        %v4109 = vadd.f32 %v4046, 1e-05
        %v4110 = vadd.f32 %v4047, 1e-05
        %v4111 = vadd.f32 %v4048, 1e-05
        %v4112 = vadd.f32 %v4049, 1e-05
        %v4113 = vadd.f32 %v4050, 1e-05
        %v4114 = vadd.f32 %v4051, 1e-05
        %v4115 = vadd.f32 %v4052, 1e-05
        %v4116 = vadd.f32 %v4053, 1e-05
        %v4117 = vadd.f32 %v4054, 1e-05
        %v4118 = vadd.f32 %v4055, 1e-05
        %v4119 = vadd.f32 %v4056, 1e-05
        %v4120 = vadd.f32 %v4057, 1e-05
        %v4121 = vadd.f32 %v4058, 1e-05
        %v4122 = vadd.f32 %v4059, 1e-05
        %v4123 = vadd.f32 %v4060, 1e-05
        %v4124 = vadd.f32 %v4061, 1e-05
        %v4125 = vadd.f32 %v4062, 1e-05
        %v4126 = vadd.f32 %v4063, 1e-05
        %v4127 = vadd.f32 %v4064, 1e-05
        %v4128 = vadd.f32 %v4065, 1e-05
        %v4129 = vadd.f32 %v4066, 1e-05
        %v4130 = vadd.f32 %v4067, 1e-05
        %v4131 = vadd.f32 %v4068, 1e-05
        %v4132 = vadd.f32 %v4069, 1e-05
        %v4133 = vadd.f32 %v4070, 1e-05
        %v4134 = vadd.f32 %v4071, 1e-05
        %v4135 = vrsqrt.pop %v4072
        %v4136 = vrsqrt.pop %v4073
        %v4137 = vrsqrt.pop %v4074
        %v4138 = vrsqrt.pop %v4075
        %v4139 = vrsqrt.pop %v4076
        %v4140 = vrsqrt.pop %v4077
        %v4141 = vrsqrt.pop %v4078
        %v4142 = vrsqrt.pop %v4079
        %v4143 = vrsqrt.pop %v4080
        %v4144 = vrsqrt.pop %v4081
        %v4145 = vrsqrt.pop %v4082
        %v4146 = vrsqrt.pop %v4083
        %v4147 = vrsqrt.pop %v4084
        %v4148 = vrsqrt.pop %v4085
        %v4149 = vrsqrt.pop %v4086
        %v4150 = vrsqrt.pop %v4087
        %v4151 = vrsqrt.pop %v4088
        %v4152 = vrsqrt.pop %v4089
        %v4153 = vrsqrt.pop %v4090
        %v4154 = vrsqrt.pop %v4091
        %v4155 = vrsqrt.pop %v4092
        %v4156 = vrsqrt.pop %v4093
        %v4157 = vrsqrt.pop %v4094
        %v4158 = vrsqrt.pop %v4095
        %v4159 = vrsqrt.pop %v4096
        %v4160 = vrsqrt.pop %v4097
        %v4161 = vrsqrt.pop %v4098
        %v4162 = vrsqrt.pop %v4099
        %v4163 = vrsqrt.pop %v4100
        %v4164 = vrsqrt.pop %v4101
        %v4165 = vrsqrt.pop %v4102
        %v4166 = vrsqrt.pop %v4103
        %v4167 = vrsqrt.pop %v4104
        %v4168 = vrsqrt.pop %v4105
        %v4169 = vrsqrt.pop %v4106
        %v4170 = vrsqrt.pop %v4107
        %v4171 = vrsqrt.pop %v4108
        %v4172 = vrsqrt.pop %v4109
        %v4173 = vrsqrt.pop %v4110
        %v4174 = vrsqrt.pop %v4111
        %v4175 = vrsqrt.pop %v4112
        %v4176 = vrsqrt.pop %v4113
        %v4177 = vrsqrt.pop %v4114
        %v4178 = vrsqrt.pop %v4115
        %v4179 = vrsqrt.pop %v4116
        %v4180 = vrsqrt.pop %v4117
        %v4181 = vrsqrt.pop %v4118
        %v4182 = vrsqrt.pop %v4119
        %v4183 = vrsqrt.pop %v4120
        %v4184 = vrsqrt.pop %v4121
        %v4185 = vrsqrt.pop %v4122
        %v4186 = vrsqrt.pop %v4123
        %v4187 = vrsqrt.pop %v4124
        %v4188 = vrsqrt.pop %v4125
        %v4189 = vrsqrt.pop %v4126
        %v4190 = vrsqrt.pop %v4127
        %v4191 = vrsqrt.pop %v4128
        %v4192 = vrsqrt.pop %v4129
        %v4193 = vrsqrt.pop %v4130
        %v4194 = vrsqrt.pop %v4131
        %v4195 = vrsqrt.pop %v4132
        %v4196 = vrsqrt.pop %v4133
        %v4197 = vrsqrt.pop %v4134
        %v4198 = vmul.f32 %v3757, %v4135
        %v4199 = vmul.f32 %v3758, %v4136
        %v4200 = vmul.f32 %v3759, %v4137
        %v4201 = vmul.f32 %v3760, %v4138
        %v4202 = vmul.f32 %v3761, %v4139
        %v4203 = vmul.f32 %v3762, %v4140
        %v4204 = vmul.f32 %v3763, %v4141
        %v4205 = vmul.f32 %v3764, %v4142
        %v4206 = vmul.f32 %v3765, %v4143
        %v4207 = vmul.f32 %v3766, %v4144
        %v4208 = vmul.f32 %v3767, %v4145
        %v4209 = vmul.f32 %v3768, %v4146
        %v4210 = vmul.f32 %v3769, %v4147
        %v4211 = vmul.f32 %v3770, %v4148
        %v4212 = vmul.f32 %v3771, %v4149
        %v4213 = vmul.f32 %v3772, %v4150
        %v4214 = vmul.f32 %v3773, %v4151
        %v4215 = vmul.f32 %v3774, %v4152
        %v4216 = vmul.f32 %v3775, %v4153
        %v4217 = vmul.f32 %v3776, %v4154
        %v4218 = vmul.f32 %v3777, %v4155
        %v4219 = vmul.f32 %v3778, %v4156
        %v4220 = vmul.f32 %v3779, %v4157
        %v4221 = vmul.f32 %v3780, %v4158
        %v4222 = vmul.f32 %v3781, %v4159
        %v4223 = vmul.f32 %v3782, %v4160
        %v4224 = vmul.f32 %v3783, %v4161
        %v4225 = vmul.f32 %v3784, %v4162
        %v4226 = vmul.f32 %v3785, %v4163
        %v4227 = vmul.f32 %v3786, %v4164
        %v4228 = vmul.f32 %v3787, %v4165
        %v4229 = vmul.f32 %v3788, %v4166
        %v4230 = vmul.f32 %v3789, %v4167
        %v4231 = vmul.f32 %v3790, %v4168
        %v4232 = vmul.f32 %v3791, %v4169
        %v4233 = vmul.f32 %v3792, %v4170
        %v4234 = vmul.f32 %v3793, %v4171
        %v4235 = vmul.f32 %v3794, %v4172
        %v4236 = vmul.f32 %v3795, %v4173
        %v4237 = vmul.f32 %v3796, %v4174
        %v4238 = vmul.f32 %v3797, %v4175
        %v4239 = vmul.f32 %v3798, %v4176
        %v4240 = vmul.f32 %v3799, %v4177
        %v4241 = vmul.f32 %v3800, %v4178
        %v4242 = vmul.f32 %v3801, %v4179
        %v4243 = vmul.f32 %v3802, %v4180
        %v4244 = vmul.f32 %v3803, %v4181
        %v4245 = vmul.f32 %v3804, %v4182
        %v4246 = vmul.f32 %v3805, %v4183
        %v4247 = vmul.f32 %v3806, %v4184
        %v4248 = vmul.f32 %v3807, %v4185
        %v4249 = vmul.f32 %v3808, %v4186
        %v4250 = vmul.f32 %v3809, %v4187
        %v4251 = vmul.f32 %v3810, %v4188
        %v4252 = vmul.f32 %v3811, %v4189
        %v4253 = vmul.f32 %v3812, %v4190
        %v4254 = vmul.f32 %v3813, %v4191
        %v4255 = vmul.f32 %v3814, %v4192
        %v4256 = vmul.f32 %v3815, %v4193
        %v4257 = vmul.f32 %v3816, %v4194
        %v4258 = vmul.f32 %v3817, %v4195
        %v4259 = vmul.f32 %v3818, %v4196
        %v4260 = vmul.f32 %v3819, %v4197
        %v4261 = vld [vmem:[%s11] sm:$0x1]
        %v4263 = vlaneseq
        %v4264 = vshrl.u32 %v4263, 7
        %v4265 = vsub.s32 0, %v4264
        %v4266 = vrot.slane %v4261, %v4265
        %v4268 = vmul.f32 %v4198, %v4266
        %v4269 = vmul.f32 %v4199, %v4266
        %v4270 = vmul.f32 %v4200, %v4266
        %v4271 = vmul.f32 %v4201, %v4266
        %v4272 = vmul.f32 %v4202, %v4266
        %v4273 = vmul.f32 %v4203, %v4266
        %v4274 = vmul.f32 %v4204, %v4266
        %v4275 = vmul.f32 %v4205, %v4266
        %v4276 = vmul.f32 %v4206, %v4266
        %v4277 = vmul.f32 %v4207, %v4266
        %v4278 = vmul.f32 %v4208, %v4266
        %v4279 = vmul.f32 %v4209, %v4266
        %v4280 = vmul.f32 %v4210, %v4266
        %v4281 = vmul.f32 %v4211, %v4266
        %v4282 = vmul.f32 %v4212, %v4266
        %v4283 = vmul.f32 %v4213, %v4266
        %v4284 = vmul.f32 %v4214, %v4266
        %v4285 = vmul.f32 %v4215, %v4266
        %v4286 = vmul.f32 %v4216, %v4266
        %v4287 = vmul.f32 %v4217, %v4266
        %v4288 = vmul.f32 %v4218, %v4266
        %v4289 = vmul.f32 %v4219, %v4266
        %v4290 = vmul.f32 %v4220, %v4266
        %v4291 = vmul.f32 %v4221, %v4266
        %v4292 = vmul.f32 %v4222, %v4266
        %v4293 = vmul.f32 %v4223, %v4266
        %v4294 = vmul.f32 %v4224, %v4266
        %v4295 = vmul.f32 %v4225, %v4266
        %v4296 = vmul.f32 %v4226, %v4266
        %v4297 = vmul.f32 %v4227, %v4266
        %v4298 = vmul.f32 %v4228, %v4266
        %v4299 = vmul.f32 %v4229, %v4266
        %v4300 = vmul.f32 %v4230, %v4266
        %v4301 = vmul.f32 %v4231, %v4266
        %v4302 = vmul.f32 %v4232, %v4266
        %v4303 = vmul.f32 %v4233, %v4266
        %v4304 = vmul.f32 %v4234, %v4266
        %v4305 = vmul.f32 %v4235, %v4266
        %v4306 = vmul.f32 %v4236, %v4266
        %v4307 = vmul.f32 %v4237, %v4266
        %v4308 = vmul.f32 %v4238, %v4266
        %v4309 = vmul.f32 %v4239, %v4266
        %v4310 = vmul.f32 %v4240, %v4266
        %v4311 = vmul.f32 %v4241, %v4266
        %v4312 = vmul.f32 %v4242, %v4266
        %v4313 = vmul.f32 %v4243, %v4266
        %v4314 = vmul.f32 %v4244, %v4266
        %v4315 = vmul.f32 %v4245, %v4266
        %v4316 = vmul.f32 %v4246, %v4266
        %v4317 = vmul.f32 %v4247, %v4266
        %v4318 = vmul.f32 %v4248, %v4266
        %v4319 = vmul.f32 %v4249, %v4266
        %v4320 = vmul.f32 %v4250, %v4266
        %v4321 = vmul.f32 %v4251, %v4266
        %v4322 = vmul.f32 %v4252, %v4266
        %v4323 = vmul.f32 %v4253, %v4266
        %v4324 = vmul.f32 %v4254, %v4266
        %v4325 = vmul.f32 %v4255, %v4266
        %v4326 = vmul.f32 %v4256, %v4266
        %v4327 = vmul.f32 %v4257, %v4266
        %v4328 = vmul.f32 %v4258, %v4266
        %v4329 = vmul.f32 %v4259, %v4266
        %v4330 = vmul.f32 %v4260, %v4266
        %v4331 = vld [vmem:[%s12] sm:$0x1]
        %v4333 = vlaneseq
        %v4334 = vshrl.u32 %v4333, 7
        %v4335 = vsub.s32 0, %v4334
        %v4336 = vrot.slane %v4331, %v4335
        %v4338 = vadd.f32 %v4268, %v4336
        %v4339 = vadd.f32 %v4269, %v4336
        %v4340 = vadd.f32 %v4270, %v4336
        %v4341 = vadd.f32 %v4271, %v4336
        %v4342 = vadd.f32 %v4272, %v4336
        %v4343 = vadd.f32 %v4273, %v4336
        %v4344 = vadd.f32 %v4274, %v4336
        %v4345 = vadd.f32 %v4275, %v4336
        %v4346 = vadd.f32 %v4276, %v4336
        %v4347 = vadd.f32 %v4277, %v4336
        %v4348 = vadd.f32 %v4278, %v4336
        %v4349 = vadd.f32 %v4279, %v4336
        %v4350 = vadd.f32 %v4280, %v4336
        %v4351 = vadd.f32 %v4281, %v4336
        %v4352 = vadd.f32 %v4282, %v4336
        %v4353 = vadd.f32 %v4283, %v4336
        %v4354 = vadd.f32 %v4284, %v4336
        %v4355 = vadd.f32 %v4285, %v4336
        %v4356 = vadd.f32 %v4286, %v4336
        %v4357 = vadd.f32 %v4287, %v4336
        %v4358 = vadd.f32 %v4288, %v4336
        %v4359 = vadd.f32 %v4289, %v4336
        %v4360 = vadd.f32 %v4290, %v4336
        %v4361 = vadd.f32 %v4291, %v4336
        %v4362 = vadd.f32 %v4292, %v4336
        %v4363 = vadd.f32 %v4293, %v4336
        %v4364 = vadd.f32 %v4294, %v4336
        %v4365 = vadd.f32 %v4295, %v4336
        %v4366 = vadd.f32 %v4296, %v4336
        %v4367 = vadd.f32 %v4297, %v4336
        %v4368 = vadd.f32 %v4298, %v4336
        %v4369 = vadd.f32 %v4299, %v4336
        %v4370 = vadd.f32 %v4300, %v4336
        %v4371 = vadd.f32 %v4301, %v4336
        %v4372 = vadd.f32 %v4302, %v4336
        %v4373 = vadd.f32 %v4303, %v4336
        %v4374 = vadd.f32 %v4304, %v4336
        %v4375 = vadd.f32 %v4305, %v4336
        %v4376 = vadd.f32 %v4306, %v4336
        %v4377 = vadd.f32 %v4307, %v4336
        %v4378 = vadd.f32 %v4308, %v4336
        %v4379 = vadd.f32 %v4309, %v4336
        %v4380 = vadd.f32 %v4310, %v4336
        %v4381 = vadd.f32 %v4311, %v4336
        %v4382 = vadd.f32 %v4312, %v4336
        %v4383 = vadd.f32 %v4313, %v4336
        %v4384 = vadd.f32 %v4314, %v4336
        %v4385 = vadd.f32 %v4315, %v4336
        %v4386 = vadd.f32 %v4316, %v4336
        %v4387 = vadd.f32 %v4317, %v4336
        %v4388 = vadd.f32 %v4318, %v4336
        %v4389 = vadd.f32 %v4319, %v4336
        %v4390 = vadd.f32 %v4320, %v4336
        %v4391 = vadd.f32 %v4321, %v4336
        %v4392 = vadd.f32 %v4322, %v4336
        %v4393 = vadd.f32 %v4323, %v4336
        %v4394 = vadd.f32 %v4324, %v4336
        %v4395 = vadd.f32 %v4325, %v4336
        %v4396 = vadd.f32 %v4326, %v4336
        %v4397 = vadd.f32 %v4327, %v4336
        %v4398 = vadd.f32 %v4328, %v4336
        %v4399 = vadd.f32 %v4329, %v4336
        %v4400 = vadd.f32 %v4330, %v4336
        %v4401 = vadd.f32 %v4338, %v711
        %v4402 = vadd.f32 %v4339, %v712
        %v4403 = vadd.f32 %v4340, %v713
        %v4404 = vadd.f32 %v4341, %v714
        %v4405 = vadd.f32 %v4342, %v715
        %v4406 = vadd.f32 %v4343, %v716
        %v4407 = vadd.f32 %v4344, %v717
        %v4408 = vadd.f32 %v4345, %v718
        %v4409 = vadd.f32 %v4346, %v719
        %v4410 = vadd.f32 %v4347, %v720
        %v4411 = vadd.f32 %v4348, %v721
        %v4412 = vadd.f32 %v4349, %v722
        %v4413 = vadd.f32 %v4350, %v723
        %v4414 = vadd.f32 %v4351, %v724
        %v4415 = vadd.f32 %v4352, %v725
        %v4416 = vadd.f32 %v4353, %v726
        %v4417 = vadd.f32 %v4354, %v727
        %v4418 = vadd.f32 %v4355, %v728
        %v4419 = vadd.f32 %v4356, %v729
        %v4420 = vadd.f32 %v4357, %v730
        %v4421 = vadd.f32 %v4358, %v731
        %v4422 = vadd.f32 %v4359, %v732
        %v4423 = vadd.f32 %v4360, %v733
        %v4424 = vadd.f32 %v4361, %v734
        %v4425 = vadd.f32 %v4362, %v735
        %v4426 = vadd.f32 %v4363, %v736
        %v4427 = vadd.f32 %v4364, %v737
        %v4428 = vadd.f32 %v4365, %v738
        %v4429 = vadd.f32 %v4366, %v739
        %v4430 = vadd.f32 %v4367, %v740
        %v4431 = vadd.f32 %v4368, %v741
        %v4432 = vadd.f32 %v4369, %v742
        %v4433 = vadd.f32 %v4370, %v743
        %v4434 = vadd.f32 %v4371, %v744
        %v4435 = vadd.f32 %v4372, %v745
        %v4436 = vadd.f32 %v4373, %v746
        %v4437 = vadd.f32 %v4374, %v747
        %v4438 = vadd.f32 %v4375, %v748
        %v4439 = vadd.f32 %v4376, %v749
        %v4440 = vadd.f32 %v4377, %v750
        %v4441 = vadd.f32 %v4378, %v751
        %v4442 = vadd.f32 %v4379, %v752
        %v4443 = vadd.f32 %v4380, %v753
        %v4444 = vadd.f32 %v4381, %v754
        %v4445 = vadd.f32 %v4382, %v755
        %v4446 = vadd.f32 %v4383, %v756
        %v4447 = vadd.f32 %v4384, %v757
        %v4448 = vadd.f32 %v4385, %v758
        %v4449 = vadd.f32 %v4386, %v759
        %v4450 = vadd.f32 %v4387, %v760
        %v4451 = vadd.f32 %v4388, %v761
        %v4452 = vadd.f32 %v4389, %v762
        %v4453 = vadd.f32 %v4390, %v763
        %v4454 = vadd.f32 %v4391, %v764
        %v4455 = vadd.f32 %v4392, %v765
        %v4456 = vadd.f32 %v4393, %v766
        %v4457 = vadd.f32 %v4394, %v767
        %v4458 = vadd.f32 %v4395, %v768
        %v4459 = vadd.f32 %v4396, %v769
        %v4460 = vadd.f32 %v4397, %v770
        %v4461 = vadd.f32 %v4398, %v771
        %v4462 = vadd.f32 %v4399, %v772
        %v4463 = vadd.f32 %v4400, %v773
        %v4464 = vpack.c.bf16 %v4402, %v4401
        %v4465 = vpack.c.bf16 %v4404, %v4403
        %v4466 = vpack.c.bf16 %v4406, %v4405
        %v4467 = vpack.c.bf16 %v4408, %v4407
        %v4468 = vpack.c.bf16 %v4410, %v4409
        %v4469 = vpack.c.bf16 %v4412, %v4411
        %v4470 = vpack.c.bf16 %v4414, %v4413
        %v4471 = vpack.c.bf16 %v4416, %v4415
        %v4472 = vpack.c.bf16 %v4418, %v4417
        %v4473 = vpack.c.bf16 %v4420, %v4419
        %v4474 = vpack.c.bf16 %v4422, %v4421
        %v4475 = vpack.c.bf16 %v4424, %v4423
        %v4476 = vpack.c.bf16 %v4426, %v4425
        %v4477 = vpack.c.bf16 %v4428, %v4427
        %v4478 = vpack.c.bf16 %v4430, %v4429
        %v4479 = vpack.c.bf16 %v4432, %v4431
        %v4480 = vpack.c.bf16 %v4434, %v4433
        %v4481 = vpack.c.bf16 %v4436, %v4435
        %v4482 = vpack.c.bf16 %v4438, %v4437
        %v4483 = vpack.c.bf16 %v4440, %v4439
        %v4484 = vpack.c.bf16 %v4442, %v4441
        %v4485 = vpack.c.bf16 %v4444, %v4443
        %v4486 = vpack.c.bf16 %v4446, %v4445
        %v4487 = vpack.c.bf16 %v4448, %v4447
        %v4488 = vpack.c.bf16 %v4450, %v4449
        %v4489 = vpack.c.bf16 %v4452, %v4451
        %v4490 = vpack.c.bf16 %v4454, %v4453
        %v4491 = vpack.c.bf16 %v4456, %v4455
        %v4492 = vpack.c.bf16 %v4458, %v4457
        %v4493 = vpack.c.bf16 %v4460, %v4459
        %v4494 = vpack.c.bf16 %v4462, %v4461
        %v4495 = vpack.c.bf16 %v4463, %v4463
        %v4528 = vunpack.c.l.b16 %v4464
        %v4529 = vunpack.c.h.b16 %v4464
        %v4530 = vunpack.c.l.b16 %v4465
        %v4531 = vunpack.c.h.b16 %v4465
        %v4532 = vunpack.c.l.b16 %v4466
        %v4533 = vunpack.c.h.b16 %v4466
        %v4534 = vunpack.c.l.b16 %v4467
        %v4535 = vunpack.c.h.b16 %v4467
        %v4536 = vunpack.c.l.b16 %v4468
        %v4537 = vunpack.c.h.b16 %v4468
        %v4538 = vunpack.c.l.b16 %v4469
        %v4539 = vunpack.c.h.b16 %v4469
        %v4540 = vunpack.c.l.b16 %v4470
        %v4541 = vunpack.c.h.b16 %v4470
        %v4542 = vunpack.c.l.b16 %v4471
        %v4543 = vunpack.c.h.b16 %v4471
        %v4544 = vunpack.c.l.b16 %v4472
        %v4545 = vunpack.c.h.b16 %v4472
        %v4546 = vunpack.c.l.b16 %v4473
        %v4547 = vunpack.c.h.b16 %v4473
        %v4548 = vunpack.c.l.b16 %v4474
        %v4549 = vunpack.c.h.b16 %v4474
        %v4550 = vunpack.c.l.b16 %v4475
        %v4551 = vunpack.c.h.b16 %v4475
        %v4552 = vunpack.c.l.b16 %v4476
        %v4553 = vunpack.c.h.b16 %v4476
        %v4554 = vunpack.c.l.b16 %v4477
        %v4555 = vunpack.c.h.b16 %v4477
        %v4556 = vunpack.c.l.b16 %v4478
        %v4557 = vunpack.c.h.b16 %v4478
        %v4558 = vunpack.c.l.b16 %v4479
        %v4559 = vunpack.c.h.b16 %v4479
        %v4560 = vunpack.c.l.b16 %v4480
        %v4561 = vunpack.c.h.b16 %v4480
        %v4562 = vunpack.c.l.b16 %v4481
        %v4563 = vunpack.c.h.b16 %v4481
        %v4564 = vunpack.c.l.b16 %v4482
        %v4565 = vunpack.c.h.b16 %v4482
        %v4566 = vunpack.c.l.b16 %v4483
        %v4567 = vunpack.c.h.b16 %v4483
        %v4568 = vunpack.c.l.b16 %v4484
        %v4569 = vunpack.c.h.b16 %v4484
        %v4570 = vunpack.c.l.b16 %v4485
        %v4571 = vunpack.c.h.b16 %v4485
        %v4572 = vunpack.c.l.b16 %v4486
        %v4573 = vunpack.c.h.b16 %v4486
        %v4574 = vunpack.c.l.b16 %v4487
        %v4575 = vunpack.c.h.b16 %v4487
        %v4576 = vunpack.c.l.b16 %v4488
        %v4577 = vunpack.c.h.b16 %v4488
        %v4578 = vunpack.c.l.b16 %v4489
        %v4579 = vunpack.c.h.b16 %v4489
        %v4580 = vunpack.c.l.b16 %v4490
        %v4581 = vunpack.c.h.b16 %v4490
        %v4582 = vunpack.c.l.b16 %v4491
        %v4583 = vunpack.c.h.b16 %v4491
        %v4584 = vunpack.c.l.b16 %v4492
        %v4585 = vunpack.c.h.b16 %v4492
        %v4586 = vunpack.c.l.b16 %v4493
        %v4587 = vunpack.c.h.b16 %v4493
        %v4588 = vunpack.c.l.b16 %v4494
        %v4589 = vunpack.c.h.b16 %v4494
        %v4590 = vunpack.c.l.b16 %v4495
        %v4591 = vpack.c.b16 %v4528, %v4528
        %v4592 = vpack.c.b16 %v4529, %v4529
        %v4593 = vpack.c.b16 %v4530, %v4530
        %v4594 = vpack.c.b16 %v4531, %v4531
        %v4595 = vpack.c.b16 %v4532, %v4532
        %v4596 = vpack.c.b16 %v4533, %v4533
        %v4597 = vpack.c.b16 %v4534, %v4534
        %v4598 = vpack.c.b16 %v4535, %v4535
        %v4599 = vpack.c.b16 %v4536, %v4536
        %v4600 = vpack.c.b16 %v4537, %v4537
        %v4601 = vpack.c.b16 %v4538, %v4538
        %v4602 = vpack.c.b16 %v4539, %v4539
        %v4603 = vpack.c.b16 %v4540, %v4540
        %v4604 = vpack.c.b16 %v4541, %v4541
        %v4605 = vpack.c.b16 %v4542, %v4542
        %v4606 = vpack.c.b16 %v4543, %v4543
        %v4607 = vpack.c.b16 %v4544, %v4544
        %v4608 = vpack.c.b16 %v4545, %v4545
        %v4609 = vpack.c.b16 %v4546, %v4546
        %v4610 = vpack.c.b16 %v4547, %v4547
        %v4611 = vpack.c.b16 %v4548, %v4548
        %v4612 = vpack.c.b16 %v4549, %v4549
        %v4613 = vpack.c.b16 %v4550, %v4550
        %v4614 = vpack.c.b16 %v4551, %v4551
        %v4615 = vpack.c.b16 %v4552, %v4552
        %v4616 = vpack.c.b16 %v4553, %v4553
        %v4617 = vpack.c.b16 %v4554, %v4554
        %v4618 = vpack.c.b16 %v4555, %v4555
        %v4619 = vpack.c.b16 %v4556, %v4556
        %v4620 = vpack.c.b16 %v4557, %v4557
        %v4621 = vpack.c.b16 %v4558, %v4558
        %v4622 = vpack.c.b16 %v4559, %v4559
        %v4623 = vpack.c.b16 %v4560, %v4560
        %v4624 = vpack.c.b16 %v4561, %v4561
        %v4625 = vpack.c.b16 %v4562, %v4562
        %v4626 = vpack.c.b16 %v4563, %v4563
        %v4627 = vpack.c.b16 %v4564, %v4564
        %v4628 = vpack.c.b16 %v4565, %v4565
        %v4629 = vpack.c.b16 %v4566, %v4566
        %v4630 = vpack.c.b16 %v4567, %v4567
        %v4631 = vpack.c.b16 %v4568, %v4568
        %v4632 = vpack.c.b16 %v4569, %v4569
        %v4633 = vpack.c.b16 %v4570, %v4570
        %v4634 = vpack.c.b16 %v4571, %v4571
        %v4635 = vpack.c.b16 %v4572, %v4572
        %v4636 = vpack.c.b16 %v4573, %v4573
        %v4637 = vpack.c.b16 %v4574, %v4574
        %v4638 = vpack.c.b16 %v4575, %v4575
        %v4639 = vpack.c.b16 %v4576, %v4576
        %v4640 = vpack.c.b16 %v4577, %v4577
        %v4641 = vpack.c.b16 %v4578, %v4578
        %v4642 = vpack.c.b16 %v4579, %v4579
        %v4643 = vpack.c.b16 %v4580, %v4580
        %v4644 = vpack.c.b16 %v4581, %v4581
        %v4645 = vpack.c.b16 %v4582, %v4582
        %v4646 = vpack.c.b16 %v4583, %v4583
        %v4647 = vpack.c.b16 %v4584, %v4584
        %v4648 = vpack.c.b16 %v4585, %v4585
        %v4649 = vpack.c.b16 %v4586, %v4586
        %v4650 = vpack.c.b16 %v4587, %v4587
        %v4651 = vpack.c.b16 %v4588, %v4588
        %v4652 = vpack.c.b16 %v4589, %v4589
        %v4653 = vpack.c.b16 %v4590, %v4590
        %4717 = vst [vmem:[%s626] sm:$0xf] %v4591
        %4718 = vst [vmem:[%s626 + $0x4] sm:$0xf] %v4592
        %4719 = vst [vmem:[%s626 + $0x8] sm:$0xf] %v4593
        %4720 = vst [vmem:[%s626 + $0xc] sm:$0xf] %v4594
        %4721 = vst [vmem:[%s626 + $0x10] sm:$0xf] %v4595
        %4722 = vst [vmem:[%s626 + $0x14] sm:$0xf] %v4596
        %4723 = vst [vmem:[%s626 + $0x18] sm:$0xf] %v4597
        %4724 = vst [vmem:[%s626 + $0x1c] sm:$0xf] %v4598
        %4725 = vst [vmem:[%s626 + $0x20] sm:$0xf] %v4599
        %4726 = vst [vmem:[%s626 + $0x24] sm:$0xf] %v4600
        %4727 = vst [vmem:[%s626 + $0x28] sm:$0xf] %v4601
        %4728 = vst [vmem:[%s626 + $0x2c] sm:$0xf] %v4602
        %4729 = vst [vmem:[%s626 + $0x30] sm:$0xf] %v4603
        %4730 = vst [vmem:[%s626 + $0x34] sm:$0xf] %v4604
        %4731 = vst [vmem:[%s626 + $0x38] sm:$0xf] %v4605
        %4732 = vst [vmem:[%s626 + $0x3c] sm:$0xf] %v4606
        %4733 = vst [vmem:[%s626 + $0x40] sm:$0xf] %v4607
        %4734 = vst [vmem:[%s626 + $0x44] sm:$0xf] %v4608
        %4735 = vst [vmem:[%s626 + $0x48] sm:$0xf] %v4609
        %4736 = vst [vmem:[%s626 + $0x4c] sm:$0xf] %v4610
        %4737 = vst [vmem:[%s626 + $0x50] sm:$0xf] %v4611
        %4738 = vst [vmem:[%s626 + $0x54] sm:$0xf] %v4612
        %4739 = vst [vmem:[%s626 + $0x58] sm:$0xf] %v4613
        %4740 = vst [vmem:[%s626 + $0x5c] sm:$0xf] %v4614
        %4741 = vst [vmem:[%s626 + $0x60] sm:$0xf] %v4615
        %4742 = vst [vmem:[%s626 + $0x64] sm:$0xf] %v4616
        %4743 = vst [vmem:[%s626 + $0x68] sm:$0xf] %v4617
        %4744 = vst [vmem:[%s626 + $0x6c] sm:$0xf] %v4618
        %4745 = vst [vmem:[%s626 + $0x70] sm:$0xf] %v4619
        %4746 = vst [vmem:[%s626 + $0x74] sm:$0xf] %v4620
        %4747 = vst [vmem:[%s626 + $0x78] sm:$0xf] %v4621
        %4748 = vst [vmem:[%s626 + $0x7c] sm:$0xf] %v4622
        %4749 = vst [vmem:[%s626 + $0x80] sm:$0xf] %v4623
        %4750 = vst [vmem:[%s626 + $0x84] sm:$0xf] %v4624
        %4751 = vst [vmem:[%s626 + $0x88] sm:$0xf] %v4625
        %4752 = vst [vmem:[%s626 + $0x8c] sm:$0xf] %v4626
        %4753 = vst [vmem:[%s626 + $0x90] sm:$0xf] %v4627
        %4754 = vst [vmem:[%s626 + $0x94] sm:$0xf] %v4628
        %4755 = vst [vmem:[%s626 + $0x98] sm:$0xf] %v4629
        %4756 = vst [vmem:[%s626 + $0x9c] sm:$0xf] %v4630
        %4757 = vst [vmem:[%s626 + $0xa0] sm:$0xf] %v4631
        %4758 = vst [vmem:[%s626 + $0xa4] sm:$0xf] %v4632
        %4759 = vst [vmem:[%s626 + $0xa8] sm:$0xf] %v4633
        %4760 = vst [vmem:[%s626 + $0xac] sm:$0xf] %v4634
        %4761 = vst [vmem:[%s626 + $0xb0] sm:$0xf] %v4635
        %4762 = vst [vmem:[%s626 + $0xb4] sm:$0xf] %v4636
        %4763 = vst [vmem:[%s626 + $0xb8] sm:$0xf] %v4637
        %4764 = vst [vmem:[%s626 + $0xbc] sm:$0xf] %v4638
        %4765 = vst [vmem:[%s626 + $0xc0] sm:$0xf] %v4639
        %4766 = vst [vmem:[%s626 + $0xc4] sm:$0xf] %v4640
        %4767 = vst [vmem:[%s626 + $0xc8] sm:$0xf] %v4641
        %4768 = vst [vmem:[%s626 + $0xcc] sm:$0xf] %v4642
        %4769 = vst [vmem:[%s626 + $0xd0] sm:$0xf] %v4643
        %4770 = vst [vmem:[%s626 + $0xd4] sm:$0xf] %v4644
        %4771 = vst [vmem:[%s626 + $0xd8] sm:$0xf] %v4645
        %4772 = vst [vmem:[%s626 + $0xdc] sm:$0xf] %v4646
        %4773 = vst [vmem:[%s626 + $0xe0] sm:$0xf] %v4647
        %4774 = vst [vmem:[%s626 + $0xe4] sm:$0xf] %v4648
        %4775 = vst [vmem:[%s626 + $0xe8] sm:$0xf] %v4649
        %4776 = vst [vmem:[%s626 + $0xec] sm:$0xf] %v4650
        %4777 = vst [vmem:[%s626 + $0xf0] sm:$0xf] %v4651
        %4778 = vst [vmem:[%s626 + $0xf4] sm:$0xf] %v4652
        %4779 = vst [vmem:[%s626 + $0xf8] sm:$0xf] %v4653
        %s4780 = sand.u32 %s332, 1
        %s4781 = scalar_lea.sflag [#allocation4], %s4780
        %s4782 = sand.u32 %s332, 1
        %s4783 = smul.addr %s4782, 252
        %s4784 = scalar_lea.vmem [#allocation16], %s4783
        // Predicated region
        $region105: #{edge_processor.1} parent=71 // pred_check
          %p4785 = pneg %p342
        $region106: #{edge_processor.1} parent=71 // pred_check_branch
          %4787 = sbr.rel (%p4785) target = $region108
        $region107: #{edge_processor.1} parent=71 // pred_region
          %s4788 = smul.u32 63, %s36
          %s4789 = ssub.s32 125, %s4788
          %p4790 = scmp.lt.s32.totalorder %s4789, 63
          %s4791 = scalar_select %p4790, %s4789, 63
          %s4792 = smul.u32 64, %s4791
          %s4794 = ssub.s32 4032, %s4792
          %4795 = vsyncadd %s4781, %s4794
          %p4796 = scmp.ne.s32.totalorder 0, %s4792
          %s4797 = smul.addr %s4788, 64
          %s4798 = scalar_lea.hbm %s13, %s4797
          %s4799 = smul.u32 4, %s4791
          %s4800 = sshll.u32 %s4784, 4
          %s4801 = int_to_ptr.vmem [resolvable:$true] %s4800
          %s4802 = sshll.u32 %s4799, 4
          %4806 = dma.vmem_to_hbm [thread:$0]  (%p4796), %s4801, %s4802, %s4798, %s4781, 64, 64, 4
        $region108: #{edge_processor.1} parent=71 // pred_fallthru
          _
      $region72: #{edge_processor.1} parent=5 // pred_fallthru
        _
      %p4807 = scmp.le.s32.totalorder 2, %s31
      // Predicated region
      $region109: #{edge_processor.1} parent=5 // pred_check
        %p4808 = pneg %p4807
      $region110: #{edge_processor.1} parent=5 // pred_check_branch
        %4810 = sbr.rel (%p4808) target = $region112
      $region111: #{edge_processor.1} parent=5 // pred_region
        %s4811 = ssub.s32 %s31, 2
        // Predicated region
        $region113: #{edge_processor.1} parent=111 // pred_check
          %p4812 = pneg %p348
        $region114: #{edge_processor.1} parent=111 // pred_check_branch
          %4814 = sbr.rel (%p4812) target = $region116
        $region115: #{edge_processor.1} parent=111 // pred_region
          %s4815 = sand.u32 %s333, 1
          %s4816 = scalar_lea.sflag [#allocation4], %s4815
          %s4817 = sand.u32 %s333, 1
          %s4818 = smul.addr %s4817, 252
          %s4819 = scalar_lea.vmem [#allocation16], %s4818
          %4820 = dma.done %s4816, 4032
        $region116: #{edge_processor.1} parent=111 // pred_fallthru
          _
      $region112: #{edge_processor.1} parent=5 // pred_fallthru
        _
    $region6: #{edge_processor.1} parent=1 // loop_footer
      %s35 = sadd.s32 1, %s31
    $region7: #{edge_processor.1} parent=1 // loop_footer_branch
      %30 = sbr.rel target = $region3
    $region8: #{edge_processor.1} parent=1 // loop_exit
      _
    %4821 = vsyncpa [#allocation3], 1
    %s4822 = scalar_lea.sflag [#allocation3], 1
    %4823 = vsyncpa %s4822, 1
    %4824 = vsyncpa [#allocation6], 1
    %s4825 = scalar_lea.sflag [#allocation6], 1
    %4826 = vsyncpa %s4825, 1
    %4827 = vsyncpa [#allocation9], 1
    %4828 = vsyncpa [#allocation12], 1
    %4829 = vsyncpa [#allocation15], 1
    %4830 = vsyncpa [#allocation4], 1
    %s4831 = scalar_lea.sflag [#allocation4], 1
    %4832 = vsyncpa %s4831, 1

</llo_original>
